<compile_context>
chip_gen: v6e
topology: v6e:2x2x1
jax: 0.10.0
libtpu: 0.0.40
codegen_flags: <defaults>
</compile_context>

<pallas_src>
import jax
import jax.numpy as jnp
from jax import lax
from jax.experimental import pallas as pl
from jax.experimental.pallas import tpu as pltpu

NUM_ANCHORS = 4
NUM_CLASSES = 21
HEAD_C = NUM_ANCHORS * (4 + NUM_CLASSES)   # 100 = 16 loc + 84 conf channels
MAX_C = 32                                 # widest activation channel count


# ----------------------------------------------------------------------------
# Fused Pallas kernel: whole SIMSSD forward for one batch element
# ----------------------------------------------------------------------------
def _fused_simssd_kernel(x_ref,
                         w1, b1, w2, b2, w3, b3, w4, b4, w5, b5, wh, bh,
                         out_ref,
                         pad_ref, patch_ref):
    """x_ref: (1, H, W, 3); weights w*: (9*Cin, Cout); biases b*: (1, Cout).

    pad_ref:   (H+2, W+2, 32)  VMEM scratch for padded activations (reused).
    patch_ref: ((H/2)*(W/2), 288) VMEM scratch for im2col patch matrices.
    out_ref:   (1, (H/8)*(W/8), 100) fused loc|conf head output.
    """

    def conv3x3(x, w_ref, b_ref, *, stride, relu):
        # x: (h, w, cin) value already in VMEM/vregs.
        h, w, cin = x.shape
        cout = b_ref.shape[-1]
        hp, wp = h + 2, w + 2
        ho, wo = h // stride, w // stride          # pad=1, k=3 (h, w even if stride=2)
        m = ho * wo

        # 'same' zero padding, done entirely in the VMEM scratch.
        pad_ref[0:hp, 0:wp, 0:cin] = jnp.zeros((hp, wp, cin), jnp.float32)
        pad_ref[1:h + 1, 1:w + 1, 0:cin] = x

        # im2col: gather the 9 (strided) taps into one (m, 9*cin) patch matrix.
        for ky in range(3):
            for kx in range(3):
                k = 3 * ky + kx
                if stride == 1:
                    t = pad_ref[ky:ky + ho, kx:kx + wo, 0:cin]
                else:  # stride == 2: strided cols via pl.ds, strided rows via reshape
                    t = pad_ref[ky:ky + 2 * ho, pl.ds(kx, wo, 2), 0:cin]
                    t = t.reshape(ho, 2, wo, cin)[:, 0]
                patch_ref[0:m, k * cin:(k + 1) * cin] = t.reshape(m, cin)

        # One MXU matmul per layer (K = 9*Cin), f32 accumulation, default precision.
        y = jnp.dot(patch_ref[0:m, 0:9 * cin], w_ref[...],
                    preferred_element_type=jnp.float32)
        y = y + b_ref[...]                          # (1, cout) broadcast
        if relu:
            y = jnp.maximum(y, 0.0)
        return y.reshape(ho, wo, cout)

    def maxpool3x3(x):
        # 3x3, stride 1, pad 1 max pool (-inf padding, like F.max_pool2d).
        h, w, c = x.shape
        hp, wp = h + 2, w + 2
        pad_ref[0:hp, 0:wp, 0:c] = jnp.full((hp, wp, c), -jnp.inf, jnp.float32)
        pad_ref[1:h + 1, 1:w + 1, 0:c] = x
        out = pad_ref[0:h, 0:w, 0:c]
        for ky in range(3):
            for kx in range(3):
                if ky == 0 and kx == 0:
                    continue
                out = jnp.maximum(out, pad_ref[ky:ky + h, kx:kx + w, 0:c])
        return out

    x = x_ref[0]                                    # (H, W, 3)
    o = conv3x3(x, w1, b1, stride=2, relu=True)     # (H/2, W/2, 32)
    o = conv3x3(o, w2, b2, stride=2, relu=True)     # (H/4, W/4, 32)
    o = maxpool3x3(o)
    o = conv3x3(o, w3, b3, stride=2, relu=True)     # (H/8, W/8, 32)
    o = conv3x3(o, w4, b4, stride=1, relu=True)
    o = maxpool3x3(o)
    o = conv3x3(o, w5, b5, stride=1, relu=True)
    # Fused multibox head: loc (16 ch) | conf (84 ch) as one conv.
    head = conv3x3(o, wh, bh, stride=1, relu=False)  # (H/8, W/8, 100)
    hf, wf, hc = head.shape
    out_ref[0] = head.reshape(hf * wf, hc)


# ----------------------------------------------------------------------------
# Wrapper
# ----------------------------------------------------------------------------
def _flatten_conv(wb):
    w, b = wb
    kh, kw, cin, cout = w.shape
    return w.reshape(kh * kw * cin, cout), b.reshape(1, cout)


def _const_spec(a):
    nd = a.ndim
    return pl.BlockSpec(a.shape, lambda i: (0,) * nd)


def simssd_forward(params, x_nchw):
    x = jnp.transpose(x_nchw, (0, 2, 3, 1)).astype(jnp.float32)  # NCHW -> NHWC
    n, h, w, cin = x.shape
    assert h % 8 == 0 and w % 8 == 0, "three stride-2 stages need H, W % 8 == 0"

    w1, b1 = _flatten_conv(params["conv1"])
    w2, b2 = _flatten_conv(params["conv2"])
    w3, b3 = _flatten_conv(params["conv3"])
    w4, b4 = _flatten_conv(params["conv4"])
    w5, b5 = _flatten_conv(params["conv5"])
    # Fuse loc + conf head convs into one conv (Cout = 16 + 84 = 100).
    wl, bl = params["loc"]
    wc, bc = params["conf"]
    wh = jnp.concatenate([wl, wc], axis=-1).reshape(9 * MAX_C, HEAD_C)
    bh = jnp.concatenate([bl, bc]).reshape(1, HEAD_C)

    weights = (w1, b1, w2, b2, w3, b3, w4, b4, w5, b5, wh, bh)
    hf, wf = h // 8, w // 8                         # final feature-map size

    out = pl.pallas_call(
        _fused_simssd_kernel,
        out_shape=jax.ShapeDtypeStruct((n, hf * wf, HEAD_C), jnp.float32),
        grid=(n,),
        in_specs=[pl.BlockSpec((1, h, w, cin), lambda i: (i, 0, 0, 0))]
                 + [_const_spec(a) for a in weights],
        out_specs=pl.BlockSpec((1, hf * wf, HEAD_C), lambda i: (i, 0, 0)),
        scratch_shapes=[
            pltpu.VMEM((h + 2, w + 2, MAX_C), jnp.float32),            # padded act.
            pltpu.VMEM(((h // 2) * (w // 2), 9 * MAX_C), jnp.float32),  # im2col
        ],
        compiler_params=pltpu.CompilerParams(
            dimension_semantics=("parallel",)),
    )(x, *weights)

    loc_preds = out[:, :, :NUM_ANCHORS * 4].reshape(n, -1, 4)
    conf_preds = out[:, :, NUM_ANCHORS * 4:].reshape(n, -1, NUM_CLASSES)
    return loc_preds, conf_preds


# ----------------------------------------------------------------------------
# Parameter init (deterministic, PyTorch-style fan-in uniform bounds)
# ----------------------------------------------------------------------------
def init_conv_params(key, cin, cout):
    kw, kb = jax.random.split(key)
    fan_in = cin * 9
    bound = 1.0 / jnp.sqrt(fan_in)
    w = jax.random.uniform(kw, (3, 3, cin, cout), jnp.float32, -bound, bound)
    b = jax.random.uniform(kb, (cout,), jnp.float32, -bound, bound)
    return w, b


def init_simssd_params(seed=0):
    keys = jax.random.split(jax.random.PRNGKey(seed), 7)
    return {
        "conv1": init_conv_params(keys[0], 3, 32),
        "conv2": init_conv_params(keys[1], 32, 32),
        "conv3": init_conv_params(keys[2], 32, 32),
        "conv4": init_conv_params(keys[3], 32, 32),
        "conv5": init_conv_params(keys[4], 32, 32),
        # MultiboxLayer head (SSD-style, in_planes=[32]):
        "loc": init_conv_params(keys[5], 32, NUM_ANCHORS * 4),
        "conf": init_conv_params(keys[6], 32, NUM_ANCHORS * NUM_CLASSES),
    }


# ----------------------------------------------------------------------------
# Pure-JAX reference (default precision, for correctness check)
# ----------------------------------------------------------------------------
def _ref_conv(x, w, b, stride, relu):
    y = lax.conv_general_dilated(
        x, w, (stride, stride), ((1, 1), (1, 1)),
        dimension_numbers=("NHWC", "HWIO", "NHWC"))
    y = y + b[None, None, None, :]
    return jnp.maximum(y, 0.0) if relu else y


def _ref_maxpool(x):
    return lax.reduce_window(x, -jnp.inf, lax.max, (1, 3, 3, 1), (1, 1, 1, 1),
                             padding=((0, 0), (1, 1), (1, 1), (0, 0)))


def simssd_reference(params, x_nchw):
    x = jnp.transpose(x_nchw, (0, 2, 3, 1))
    out = _ref_conv(x, *params["conv1"], 2, True)
    out = _ref_conv(out, *params["conv2"], 2, True)
    out = _ref_maxpool(out)
    out = _ref_conv(out, *params["conv3"], 2, True)
    out = _ref_conv(out, *params["conv4"], 1, True)
    out = _ref_maxpool(out)
    out = _ref_conv(out, *params["conv5"], 1, True)
    n = out.shape[0]
    loc = _ref_conv(out, *params["loc"], 1, False).reshape(n, -1, 4)
    conf = _ref_conv(out, *params["conf"], 1, False).reshape(n, -1, NUM_CLASSES)
    return loc, conf


# ----------------------------------------------------------------------------
if __name__ == "__main__":
    params = init_simssd_params(seed=0)

    key = jax.random.PRNGKey(0)
    x = jax.random.normal(key, (2, 3, 16, 16), jnp.float32)   # NCHW, like PyTorch

    fwd = jax.jit(simssd_forward)
    loc_preds, conf_preds = fwd(params, x)
    loc_preds = jax.block_until_ready(loc_preds)
    conf_preds = jax.block_until_ready(conf_preds)

    # Expected: final feature map (2, 32, 2, 2) -> 2*2*4 = 16 anchors per image.
    assert loc_preds.shape == (2, 16, 4), loc_preds.shape
    assert conf_preds.shape == (2, 16, NUM_CLASSES), conf_preds.shape

    # Default MXU precision (bf16-mantissa passes) vs. XLA's own default conv
    # path -> allow a few 1e-3 of drift across the 7 stacked layers.
    loc_ref, conf_ref = simssd_reference(params, x)
    assert jnp.allclose(loc_preds, loc_ref, rtol=2e-2, atol=2e-2)
    assert jnp.allclose(conf_preds, conf_ref, rtol=2e-2, atol=2e-2)

    print("KERNEL_OK")
</pallas_src>

<mosaic_0001>
module attributes {stable_mosaic.version = 11 : i64} {
  func.func @_fused_simssd_kernel(%arg0: i32, %arg1: memref<1x16x16x3xf32, #tpu.memory_space<vmem>>, %arg2: memref<27x32xf32, #tpu.memory_space<vmem>>, %arg3: memref<1x32xf32, #tpu.memory_space<vmem>>, %arg4: memref<288x32xf32, #tpu.memory_space<vmem>>, %arg5: memref<1x32xf32, #tpu.memory_space<vmem>>, %arg6: memref<288x32xf32, #tpu.memory_space<vmem>>, %arg7: memref<1x32xf32, #tpu.memory_space<vmem>>, %arg8: memref<288x32xf32, #tpu.memory_space<vmem>>, %arg9: memref<1x32xf32, #tpu.memory_space<vmem>>, %arg10: memref<288x32xf32, #tpu.memory_space<vmem>>, %arg11: memref<1x32xf32, #tpu.memory_space<vmem>>, %arg12: memref<288x100xf32, #tpu.memory_space<vmem>>, %arg13: memref<1x100xf32, #tpu.memory_space<vmem>>, %arg14: memref<1x4x100xf32, #tpu.memory_space<vmem>>, %arg15: memref<18x18x32xf32, #tpu.memory_space<vmem>>, %arg16: memref<64x288xf32, #tpu.memory_space<vmem>>) attributes {dimension_semantics = [#tpu.dimension_semantics<parallel>], iteration_bounds = array<i64: 2>, scalar_prefetch = 0 : i64, scratch_operands = 2 : i64, tpu.core_type = #tpu.core_type<tc>, window_params = [{transform_indices = @transform_0, window_bounds = array<i64: 1, 16, 16, 3>}, {pipeline_mode = #tpu.pipeline_mode<synchronous>, transform_indices = @transform_1, window_bounds = array<i64: 27, 32>}, {pipeline_mode = #tpu.pipeline_mode<synchronous>, transform_indices = @transform_2, window_bounds = array<i64: 1, 32>}, {pipeline_mode = #tpu.pipeline_mode<synchronous>, transform_indices = @transform_3, window_bounds = array<i64: 288, 32>}, {pipeline_mode = #tpu.pipeline_mode<synchronous>, transform_indices = @transform_4, window_bounds = array<i64: 1, 32>}, {pipeline_mode = #tpu.pipeline_mode<synchronous>, transform_indices = @transform_5, window_bounds = array<i64: 288, 32>}, {pipeline_mode = #tpu.pipeline_mode<synchronous>, transform_indices = @transform_6, window_bounds = array<i64: 1, 32>}, {pipeline_mode = #tpu.pipeline_mode<synchronous>, transform_indices = @transform_7, window_bounds = array<i64: 288, 32>}, {pipeline_mode = #tpu.pipeline_mode<synchronous>, transform_indices = @transform_8, window_bounds = array<i64: 1, 32>}, {pipeline_mode = #tpu.pipeline_mode<synchronous>, transform_indices = @transform_9, window_bounds = array<i64: 288, 32>}, {pipeline_mode = #tpu.pipeline_mode<synchronous>, transform_indices = @transform_10, window_bounds = array<i64: 1, 32>}, {pipeline_mode = #tpu.pipeline_mode<synchronous>, transform_indices = @transform_11, window_bounds = array<i64: 288, 100>}, {pipeline_mode = #tpu.pipeline_mode<synchronous>, transform_indices = @transform_12, window_bounds = array<i64: 1, 100>}, {transform_indices = @transform_13, window_bounds = array<i64: 1, 4, 100>}]} {
    %c0 = arith.constant 0 : index
    %c0_0 = arith.constant 0 : index
    %c0_1 = arith.constant 0 : index
    %c0_2 = arith.constant 0 : index
    %0 = vector.load %arg1[%c0, %c0_0, %c0_1, %c0_2] : memref<1x16x16x3xf32, #tpu.memory_space<vmem>>, vector<1x16x16x3xf32>
    %1 = vector.shape_cast %0 : vector<1x16x16x3xf32> to vector<16x16x3xf32>
    %cst = arith.constant 0.000000e+00 : f32
    %2 = vector.broadcast %cst : f32 to vector<18x18x3xf32>
    %c0_3 = arith.constant 0 : index
    %c0_4 = arith.constant 0 : index
    %c0_5 = arith.constant 0 : index
    %3 = vector.load %arg15[%c0_3, %c0_4, %c0_5] : memref<18x18x32xf32, #tpu.memory_space<vmem>>, vector<18x18x3xf32>
    tpu.vector_store %arg15[%c0_3, %c0_4, %c0_5], %2 {strides = array<i32>} : memref<18x18x32xf32, #tpu.memory_space<vmem>>, vector<18x18x3xf32>,
    %c1 = arith.constant 1 : index
    %c1_6 = arith.constant 1 : index
    %c0_7 = arith.constant 0 : index
    %4 = vector.load %arg15[%c1, %c1_6, %c0_7] : memref<18x18x32xf32, #tpu.memory_space<vmem>>, vector<16x16x3xf32>
    tpu.vector_store %arg15[%c1, %c1_6, %c0_7], %1 {strides = array<i32>} : memref<18x18x32xf32, #tpu.memory_space<vmem>>, vector<16x16x3xf32>,
    %c0_8 = arith.constant 0 : index
    %c0_9 = arith.constant 0 : index
    %c0_10 = arith.constant 0 : index
    %5 = tpu.strided_load %arg15[%c0_8, %c0_9, %c0_10] {strides = array<i32: 1, 2, 1>} : memref<18x18x32xf32, #tpu.memory_space<vmem>>, vector<16x8x3xf32>
    %6 = vector.shape_cast %5 : vector<16x8x3xf32> to vector<8x2x8x3xf32>
    %7 = vector.extract_strided_slice %6 {offsets = [0, 0, 0, 0], sizes = [8, 1, 8, 3], strides = [1, 1, 1, 1]} : vector<8x2x8x3xf32> to vector<8x1x8x3xf32>
    %8 = vector.shape_cast %7 : vector<8x1x8x3xf32> to vector<8x8x3xf32>
    %9 = vector.shape_cast %8 : vector<8x8x3xf32> to vector<64x3xf32>
    %c0_11 = arith.constant 0 : index
    %c0_12 = arith.constant 0 : index
    %10 = vector.load %arg16[%c0_11, %c0_12] : memref<64x288xf32, #tpu.memory_space<vmem>>, vector<64x3xf32>
    tpu.vector_store %arg16[%c0_11, %c0_12], %9 {strides = array<i32>} : memref<64x288xf32, #tpu.memory_space<vmem>>, vector<64x3xf32>,
    %c0_13 = arith.constant 0 : index
    %c1_14 = arith.constant 1 : index
    %c0_15 = arith.constant 0 : index
    %11 = tpu.strided_load %arg15[%c0_13, %c1_14, %c0_15] {strides = array<i32: 1, 2, 1>} : memref<18x18x32xf32, #tpu.memory_space<vmem>>, vector<16x8x3xf32>
    %12 = vector.shape_cast %11 : vector<16x8x3xf32> to vector<8x2x8x3xf32>
    %13 = vector.extract_strided_slice %12 {offsets = [0, 0, 0, 0], sizes = [8, 1, 8, 3], strides = [1, 1, 1, 1]} : vector<8x2x8x3xf32> to vector<8x1x8x3xf32>
    %14 = vector.shape_cast %13 : vector<8x1x8x3xf32> to vector<8x8x3xf32>
    %15 = vector.shape_cast %14 : vector<8x8x3xf32> to vector<64x3xf32>
    %c0_16 = arith.constant 0 : index
    %c3 = arith.constant 3 : index
    %16 = vector.load %arg16[%c0_16, %c3] : memref<64x288xf32, #tpu.memory_space<vmem>>, vector<64x3xf32>
    tpu.vector_store %arg16[%c0_16, %c3], %15 {strides = array<i32>} : memref<64x288xf32, #tpu.memory_space<vmem>>, vector<64x3xf32>,
    %c0_17 = arith.constant 0 : index
    %c2 = arith.constant 2 : index
    %c0_18 = arith.constant 0 : index
    %17 = tpu.strided_load %arg15[%c0_17, %c2, %c0_18] {strides = array<i32: 1, 2, 1>} : memref<18x18x32xf32, #tpu.memory_space<vmem>>, vector<16x8x3xf32>
    %18 = vector.shape_cast %17 : vector<16x8x3xf32> to vector<8x2x8x3xf32>
    %19 = vector.extract_strided_slice %18 {offsets = [0, 0, 0, 0], sizes = [8, 1, 8, 3], strides = [1, 1, 1, 1]} : vector<8x2x8x3xf32> to vector<8x1x8x3xf32>
    %20 = vector.shape_cast %19 : vector<8x1x8x3xf32> to vector<8x8x3xf32>
    %21 = vector.shape_cast %20 : vector<8x8x3xf32> to vector<64x3xf32>
    %c0_19 = arith.constant 0 : index
    %c6 = arith.constant 6 : index
    %22 = vector.load %arg16[%c0_19, %c6] : memref<64x288xf32, #tpu.memory_space<vmem>>, vector<64x3xf32>
    tpu.vector_store %arg16[%c0_19, %c6], %21 {strides = array<i32>} : memref<64x288xf32, #tpu.memory_space<vmem>>, vector<64x3xf32>,
    %c1_20 = arith.constant 1 : index
    %c0_21 = arith.constant 0 : index
    %c0_22 = arith.constant 0 : index
    %23 = tpu.strided_load %arg15[%c1_20, %c0_21, %c0_22] {strides = array<i32: 1, 2, 1>} : memref<18x18x32xf32, #tpu.memory_space<vmem>>, vector<16x8x3xf32>
    %24 = vector.shape_cast %23 : vector<16x8x3xf32> to vector<8x2x8x3xf32>
    %25 = vector.extract_strided_slice %24 {offsets = [0, 0, 0, 0], sizes = [8, 1, 8, 3], strides = [1, 1, 1, 1]} : vector<8x2x8x3xf32> to vector<8x1x8x3xf32>
    %26 = vector.shape_cast %25 : vector<8x1x8x3xf32> to vector<8x8x3xf32>
    %27 = vector.shape_cast %26 : vector<8x8x3xf32> to vector<64x3xf32>
    %c0_23 = arith.constant 0 : index
    %c9 = arith.constant 9 : index
    %28 = vector.load %arg16[%c0_23, %c9] : memref<64x288xf32, #tpu.memory_space<vmem>>, vector<64x3xf32>
    tpu.vector_store %arg16[%c0_23, %c9], %27 {strides = array<i32>} : memref<64x288xf32, #tpu.memory_space<vmem>>, vector<64x3xf32>,
    %c1_24 = arith.constant 1 : index
    %c1_25 = arith.constant 1 : index
    %c0_26 = arith.constant 0 : index
    %29 = tpu.strided_load %arg15[%c1_24, %c1_25, %c0_26] {strides = array<i32: 1, 2, 1>} : memref<18x18x32xf32, #tpu.memory_space<vmem>>, vector<16x8x3xf32>
    %30 = vector.shape_cast %29 : vector<16x8x3xf32> to vector<8x2x8x3xf32>
    %31 = vector.extract_strided_slice %30 {offsets = [0, 0, 0, 0], sizes = [8, 1, 8, 3], strides = [1, 1, 1, 1]} : vector<8x2x8x3xf32> to vector<8x1x8x3xf32>
    %32 = vector.shape_cast %31 : vector<8x1x8x3xf32> to vector<8x8x3xf32>
    %33 = vector.shape_cast %32 : vector<8x8x3xf32> to vector<64x3xf32>
    %c0_27 = arith.constant 0 : index
    %c12 = arith.constant 12 : index
    %34 = vector.load %arg16[%c0_27, %c12] : memref<64x288xf32, #tpu.memory_space<vmem>>, vector<64x3xf32>
    tpu.vector_store %arg16[%c0_27, %c12], %33 {strides = array<i32>} : memref<64x288xf32, #tpu.memory_space<vmem>>, vector<64x3xf32>,
    %c1_28 = arith.constant 1 : index
    %c2_29 = arith.constant 2 : index
    %c0_30 = arith.constant 0 : index
    %35 = tpu.strided_load %arg15[%c1_28, %c2_29, %c0_30] {strides = array<i32: 1, 2, 1>} : memref<18x18x32xf32, #tpu.memory_space<vmem>>, vector<16x8x3xf32>
    %36 = vector.shape_cast %35 : vector<16x8x3xf32> to vector<8x2x8x3xf32>
    %37 = vector.extract_strided_slice %36 {offsets = [0, 0, 0, 0], sizes = [8, 1, 8, 3], strides = [1, 1, 1, 1]} : vector<8x2x8x3xf32> to vector<8x1x8x3xf32>
    %38 = vector.shape_cast %37 : vector<8x1x8x3xf32> to vector<8x8x3xf32>
    %39 = vector.shape_cast %38 : vector<8x8x3xf32> to vector<64x3xf32>
    %c0_31 = arith.constant 0 : index
    %c15 = arith.constant 15 : index
    %40 = vector.load %arg16[%c0_31, %c15] : memref<64x288xf32, #tpu.memory_space<vmem>>, vector<64x3xf32>
    tpu.vector_store %arg16[%c0_31, %c15], %39 {strides = array<i32>} : memref<64x288xf32, #tpu.memory_space<vmem>>, vector<64x3xf32>,
    %c2_32 = arith.constant 2 : index
    %c0_33 = arith.constant 0 : index
    %c0_34 = arith.constant 0 : index
    %41 = tpu.strided_load %arg15[%c2_32, %c0_33, %c0_34] {strides = array<i32: 1, 2, 1>} : memref<18x18x32xf32, #tpu.memory_space<vmem>>, vector<16x8x3xf32>
    %42 = vector.shape_cast %41 : vector<16x8x3xf32> to vector<8x2x8x3xf32>
    %43 = vector.extract_strided_slice %42 {offsets = [0, 0, 0, 0], sizes = [8, 1, 8, 3], strides = [1, 1, 1, 1]} : vector<8x2x8x3xf32> to vector<8x1x8x3xf32>
    %44 = vector.shape_cast %43 : vector<8x1x8x3xf32> to vector<8x8x3xf32>
    %45 = vector.shape_cast %44 : vector<8x8x3xf32> to vector<64x3xf32>
    %c0_35 = arith.constant 0 : index
    %c18 = arith.constant 18 : index
    %46 = vector.load %arg16[%c0_35, %c18] : memref<64x288xf32, #tpu.memory_space<vmem>>, vector<64x3xf32>
    tpu.vector_store %arg16[%c0_35, %c18], %45 {strides = array<i32>} : memref<64x288xf32, #tpu.memory_space<vmem>>, vector<64x3xf32>,
    %c2_36 = arith.constant 2 : index
    %c1_37 = arith.constant 1 : index
    %c0_38 = arith.constant 0 : index
    %47 = tpu.strided_load %arg15[%c2_36, %c1_37, %c0_38] {strides = array<i32: 1, 2, 1>} : memref<18x18x32xf32, #tpu.memory_space<vmem>>, vector<16x8x3xf32>
    %48 = vector.shape_cast %47 : vector<16x8x3xf32> to vector<8x2x8x3xf32>
    %49 = vector.extract_strided_slice %48 {offsets = [0, 0, 0, 0], sizes = [8, 1, 8, 3], strides = [1, 1, 1, 1]} : vector<8x2x8x3xf32> to vector<8x1x8x3xf32>
    %50 = vector.shape_cast %49 : vector<8x1x8x3xf32> to vector<8x8x3xf32>
    %51 = vector.shape_cast %50 : vector<8x8x3xf32> to vector<64x3xf32>
    %c0_39 = arith.constant 0 : index
    %c21 = arith.constant 21 : index
    %52 = vector.load %arg16[%c0_39, %c21] : memref<64x288xf32, #tpu.memory_space<vmem>>, vector<64x3xf32>
    tpu.vector_store %arg16[%c0_39, %c21], %51 {strides = array<i32>} : memref<64x288xf32, #tpu.memory_space<vmem>>, vector<64x3xf32>,
    %c2_40 = arith.constant 2 : index
    %c2_41 = arith.constant 2 : index
    %c0_42 = arith.constant 0 : index
    %53 = tpu.strided_load %arg15[%c2_40, %c2_41, %c0_42] {strides = array<i32: 1, 2, 1>} : memref<18x18x32xf32, #tpu.memory_space<vmem>>, vector<16x8x3xf32>
    %54 = vector.shape_cast %53 : vector<16x8x3xf32> to vector<8x2x8x3xf32>
    %55 = vector.extract_strided_slice %54 {offsets = [0, 0, 0, 0], sizes = [8, 1, 8, 3], strides = [1, 1, 1, 1]} : vector<8x2x8x3xf32> to vector<8x1x8x3xf32>
    %56 = vector.shape_cast %55 : vector<8x1x8x3xf32> to vector<8x8x3xf32>
    %57 = vector.shape_cast %56 : vector<8x8x3xf32> to vector<64x3xf32>
    %c0_43 = arith.constant 0 : index
    %c24 = arith.constant 24 : index
    %58 = vector.load %arg16[%c0_43, %c24] : memref<64x288xf32, #tpu.memory_space<vmem>>, vector<64x3xf32>
    tpu.vector_store %arg16[%c0_43, %c24], %57 {strides = array<i32>} : memref<64x288xf32, #tpu.memory_space<vmem>>, vector<64x3xf32>,
    %c0_44 = arith.constant 0 : index
    %c0_45 = arith.constant 0 : index
    %59 = vector.load %arg16[%c0_44, %c0_45] : memref<64x288xf32, #tpu.memory_space<vmem>>, vector<64x27xf32>
    %c0_46 = arith.constant 0 : index
    %c0_47 = arith.constant 0 : index
    %60 = vector.load %arg2[%c0_46, %c0_47] : memref<27x32xf32, #tpu.memory_space<vmem>>, vector<27x32xf32>
    %cst_48 = arith.constant dense<0.000000e+00> : vector<64x32xf32>
    %61 = tpu.matmul %59, %60, %cst_48 {dimension_numbers = #tpu.dot_dimension_numbers<[1], [0], [0], [1], [0, 0, 1, 1], [], []>} : vector<64x27xf32>, vector<27x32xf32>, vector<64x32xf32> -> vector<64x32xf32>
    %c0_49 = arith.constant 0 : index
    %c0_50 = arith.constant 0 : index
    %62 = vector.load %arg3[%c0_49, %c0_50] : memref<1x32xf32, #tpu.memory_space<vmem>>, vector<1x32xf32>
    %63 = vector.broadcast %62 : vector<1x32xf32> to vector<64x32xf32>
    %64 = arith.addf %61, %63 : vector<64x32xf32>
    %cst_51 = arith.constant 0.000000e+00 : f32
    %65 = vector.broadcast %cst_51 : f32 to vector<64x32xf32>
    %66 = arith.maximumf %64, %65 : vector<64x32xf32>
    %67 = vector.shape_cast %66 : vector<64x32xf32> to vector<8x8x32xf32>
    %cst_52 = arith.constant 0.000000e+00 : f32
    %68 = vector.broadcast %cst_52 : f32 to vector<10x10x32xf32>
    %c0_53 = arith.constant 0 : index
    %c0_54 = arith.constant 0 : index
    %c0_55 = arith.constant 0 : index
    %69 = vector.load %arg15[%c0_53, %c0_54, %c0_55] : memref<18x18x32xf32, #tpu.memory_space<vmem>>, vector<10x10x32xf32>
    tpu.vector_store %arg15[%c0_53, %c0_54, %c0_55], %68 {strides = array<i32>} : memref<18x18x32xf32, #tpu.memory_space<vmem>>, vector<10x10x32xf32>,
    %c1_56 = arith.constant 1 : index
    %c1_57 = arith.constant 1 : index
    %c0_58 = arith.constant 0 : index
    %70 = vector.load %arg15[%c1_56, %c1_57, %c0_58] : memref<18x18x32xf32, #tpu.memory_space<vmem>>, vector<8x8x32xf32>
    tpu.vector_store %arg15[%c1_56, %c1_57, %c0_58], %67 {strides = array<i32>} : memref<18x18x32xf32, #tpu.memory_space<vmem>>, vector<8x8x32xf32>,
    %c0_59 = arith.constant 0 : index
    %c0_60 = arith.constant 0 : index
    %c0_61 = arith.constant 0 : index
    %71 = tpu.strided_load %arg15[%c0_59, %c0_60, %c0_61] {strides = array<i32: 1, 2, 1>} : memref<18x18x32xf32, #tpu.memory_space<vmem>>, vector<8x4x32xf32>
    %72 = vector.shape_cast %71 : vector<8x4x32xf32> to vector<4x2x4x32xf32>
    %73 = vector.extract_strided_slice %72 {offsets = [0, 0, 0, 0], sizes = [4, 1, 4, 32], strides = [1, 1, 1, 1]} : vector<4x2x4x32xf32> to vector<4x1x4x32xf32>
    %74 = vector.shape_cast %73 : vector<4x1x4x32xf32> to vector<4x4x32xf32>
    %75 = vector.shape_cast %74 : vector<4x4x32xf32> to vector<16x32xf32>
    %c0_62 = arith.constant 0 : index
    %c0_63 = arith.constant 0 : index
    %76 = vector.load %arg16[%c0_62, %c0_63] : memref<64x288xf32, #tpu.memory_space<vmem>>, vector<16x32xf32>
    tpu.vector_store %arg16[%c0_62, %c0_63], %75 {strides = array<i32>} : memref<64x288xf32, #tpu.memory_space<vmem>>, vector<16x32xf32>,
    %c0_64 = arith.constant 0 : index
    %c1_65 = arith.constant 1 : index
    %c0_66 = arith.constant 0 : index
    %77 = tpu.strided_load %arg15[%c0_64, %c1_65, %c0_66] {strides = array<i32: 1, 2, 1>} : memref<18x18x32xf32, #tpu.memory_space<vmem>>, vector<8x4x32xf32>
    %78 = vector.shape_cast %77 : vector<8x4x32xf32> to vector<4x2x4x32xf32>
    %79 = vector.extract_strided_slice %78 {offsets = [0, 0, 0, 0], sizes = [4, 1, 4, 32], strides = [1, 1, 1, 1]} : vector<4x2x4x32xf32> to vector<4x1x4x32xf32>
    %80 = vector.shape_cast %79 : vector<4x1x4x32xf32> to vector<4x4x32xf32>
    %81 = vector.shape_cast %80 : vector<4x4x32xf32> to vector<16x32xf32>
    %c0_67 = arith.constant 0 : index
    %c32 = arith.constant 32 : index
    %82 = vector.load %arg16[%c0_67, %c32] : memref<64x288xf32, #tpu.memory_space<vmem>>, vector<16x32xf32>
    tpu.vector_store %arg16[%c0_67, %c32], %81 {strides = array<i32>} : memref<64x288xf32, #tpu.memory_space<vmem>>, vector<16x32xf32>,
    %c0_68 = arith.constant 0 : index
    %c2_69 = arith.constant 2 : index
    %c0_70 = arith.constant 0 : index
    %83 = tpu.strided_load %arg15[%c0_68, %c2_69, %c0_70] {strides = array<i32: 1, 2, 1>} : memref<18x18x32xf32, #tpu.memory_space<vmem>>, vector<8x4x32xf32>
    %84 = vector.shape_cast %83 : vector<8x4x32xf32> to vector<4x2x4x32xf32>
    %85 = vector.extract_strided_slice %84 {offsets = [0, 0, 0, 0], sizes = [4, 1, 4, 32], strides = [1, 1, 1, 1]} : vector<4x2x4x32xf32> to vector<4x1x4x32xf32>
    %86 = vector.shape_cast %85 : vector<4x1x4x32xf32> to vector<4x4x32xf32>
    %87 = vector.shape_cast %86 : vector<4x4x32xf32> to vector<16x32xf32>
    %c0_71 = arith.constant 0 : index
    %c64 = arith.constant 64 : index
    %88 = vector.load %arg16[%c0_71, %c64] : memref<64x288xf32, #tpu.memory_space<vmem>>, vector<16x32xf32>
    tpu.vector_store %arg16[%c0_71, %c64], %87 {strides = array<i32>} : memref<64x288xf32, #tpu.memory_space<vmem>>, vector<16x32xf32>,
    %c1_72 = arith.constant 1 : index
    %c0_73 = arith.constant 0 : index
    %c0_74 = arith.constant 0 : index
    %89 = tpu.strided_load %arg15[%c1_72, %c0_73, %c0_74] {strides = array<i32: 1, 2, 1>} : memref<18x18x32xf32, #tpu.memory_space<vmem>>, vector<8x4x32xf32>
    %90 = vector.shape_cast %89 : vector<8x4x32xf32> to vector<4x2x4x32xf32>
    %91 = vector.extract_strided_slice %90 {offsets = [0, 0, 0, 0], sizes = [4, 1, 4, 32], strides = [1, 1, 1, 1]} : vector<4x2x4x32xf32> to vector<4x1x4x32xf32>
    %92 = vector.shape_cast %91 : vector<4x1x4x32xf32> to vector<4x4x32xf32>
    %93 = vector.shape_cast %92 : vector<4x4x32xf32> to vector<16x32xf32>
    %c0_75 = arith.constant 0 : index
    %c96 = arith.constant 96 : index
    %94 = vector.load %arg16[%c0_75, %c96] : memref<64x288xf32, #tpu.memory_space<vmem>>, vector<16x32xf32>
    tpu.vector_store %arg16[%c0_75, %c96], %93 {strides = array<i32>} : memref<64x288xf32, #tpu.memory_space<vmem>>, vector<16x32xf32>,
    %c1_76 = arith.constant 1 : index
    %c1_77 = arith.constant 1 : index
    %c0_78 = arith.constant 0 : index
    %95 = tpu.strided_load %arg15[%c1_76, %c1_77, %c0_78] {strides = array<i32: 1, 2, 1>} : memref<18x18x32xf32, #tpu.memory_space<vmem>>, vector<8x4x32xf32>
    %96 = vector.shape_cast %95 : vector<8x4x32xf32> to vector<4x2x4x32xf32>
    %97 = vector.extract_strided_slice %96 {offsets = [0, 0, 0, 0], sizes = [4, 1, 4, 32], strides = [1, 1, 1, 1]} : vector<4x2x4x32xf32> to vector<4x1x4x32xf32>
    %98 = vector.shape_cast %97 : vector<4x1x4x32xf32> to vector<4x4x32xf32>
    %99 = vector.shape_cast %98 : vector<4x4x32xf32> to vector<16x32xf32>
    %c0_79 = arith.constant 0 : index
    %c128 = arith.constant 128 : index
    %100 = vector.load %arg16[%c0_79, %c128] : memref<64x288xf32, #tpu.memory_space<vmem>>, vector<16x32xf32>
    tpu.vector_store %arg16[%c0_79, %c128], %99 {strides = array<i32>} : memref<64x288xf32, #tpu.memory_space<vmem>>, vector<16x32xf32>,
    %c1_80 = arith.constant 1 : index
    %c2_81 = arith.constant 2 : index
    %c0_82 = arith.constant 0 : index
    %101 = tpu.strided_load %arg15[%c1_80, %c2_81, %c0_82] {strides = array<i32: 1, 2, 1>} : memref<18x18x32xf32, #tpu.memory_space<vmem>>, vector<8x4x32xf32>
    %102 = vector.shape_cast %101 : vector<8x4x32xf32> to vector<4x2x4x32xf32>
    %103 = vector.extract_strided_slice %102 {offsets = [0, 0, 0, 0], sizes = [4, 1, 4, 32], strides = [1, 1, 1, 1]} : vector<4x2x4x32xf32> to vector<4x1x4x32xf32>
    %104 = vector.shape_cast %103 : vector<4x1x4x32xf32> to vector<4x4x32xf32>
    %105 = vector.shape_cast %104 : vector<4x4x32xf32> to vector<16x32xf32>
    %c0_83 = arith.constant 0 : index
    %c160 = arith.constant 160 : index
    %106 = vector.load %arg16[%c0_83, %c160] : memref<64x288xf32, #tpu.memory_space<vmem>>, vector<16x32xf32>
    tpu.vector_store %arg16[%c0_83, %c160], %105 {strides = array<i32>} : memref<64x288xf32, #tpu.memory_space<vmem>>, vector<16x32xf32>,
    %c2_84 = arith.constant 2 : index
    %c0_85 = arith.constant 0 : index
    %c0_86 = arith.constant 0 : index
    %107 = tpu.strided_load %arg15[%c2_84, %c0_85, %c0_86] {strides = array<i32: 1, 2, 1>} : memref<18x18x32xf32, #tpu.memory_space<vmem>>, vector<8x4x32xf32>
    %108 = vector.shape_cast %107 : vector<8x4x32xf32> to vector<4x2x4x32xf32>
    %109 = vector.extract_strided_slice %108 {offsets = [0, 0, 0, 0], sizes = [4, 1, 4, 32], strides = [1, 1, 1, 1]} : vector<4x2x4x32xf32> to vector<4x1x4x32xf32>
    %110 = vector.shape_cast %109 : vector<4x1x4x32xf32> to vector<4x4x32xf32>
    %111 = vector.shape_cast %110 : vector<4x4x32xf32> to vector<16x32xf32>
    %c0_87 = arith.constant 0 : index
    %c192 = arith.constant 192 : index
    %112 = vector.load %arg16[%c0_87, %c192] : memref<64x288xf32, #tpu.memory_space<vmem>>, vector<16x32xf32>
    tpu.vector_store %arg16[%c0_87, %c192], %111 {strides = array<i32>} : memref<64x288xf32, #tpu.memory_space<vmem>>, vector<16x32xf32>,
    %c2_88 = arith.constant 2 : index
    %c1_89 = arith.constant 1 : index
    %c0_90 = arith.constant 0 : index
    %113 = tpu.strided_load %arg15[%c2_88, %c1_89, %c0_90] {strides = array<i32: 1, 2, 1>} : memref<18x18x32xf32, #tpu.memory_space<vmem>>, vector<8x4x32xf32>
    %114 = vector.shape_cast %113 : vector<8x4x32xf32> to vector<4x2x4x32xf32>
    %115 = vector.extract_strided_slice %114 {offsets = [0, 0, 0, 0], sizes = [4, 1, 4, 32], strides = [1, 1, 1, 1]} : vector<4x2x4x32xf32> to vector<4x1x4x32xf32>
    %116 = vector.shape_cast %115 : vector<4x1x4x32xf32> to vector<4x4x32xf32>
    %117 = vector.shape_cast %116 : vector<4x4x32xf32> to vector<16x32xf32>
    %c0_91 = arith.constant 0 : index
    %c224 = arith.constant 224 : index
    %118 = vector.load %arg16[%c0_91, %c224] : memref<64x288xf32, #tpu.memory_space<vmem>>, vector<16x32xf32>
    tpu.vector_store %arg16[%c0_91, %c224], %117 {strides = array<i32>} : memref<64x288xf32, #tpu.memory_space<vmem>>, vector<16x32xf32>,
    %c2_92 = arith.constant 2 : index
    %c2_93 = arith.constant 2 : index
    %c0_94 = arith.constant 0 : index
    %119 = tpu.strided_load %arg15[%c2_92, %c2_93, %c0_94] {strides = array<i32: 1, 2, 1>} : memref<18x18x32xf32, #tpu.memory_space<vmem>>, vector<8x4x32xf32>
    %120 = vector.shape_cast %119 : vector<8x4x32xf32> to vector<4x2x4x32xf32>
    %121 = vector.extract_strided_slice %120 {offsets = [0, 0, 0, 0], sizes = [4, 1, 4, 32], strides = [1, 1, 1, 1]} : vector<4x2x4x32xf32> to vector<4x1x4x32xf32>
    %122 = vector.shape_cast %121 : vector<4x1x4x32xf32> to vector<4x4x32xf32>
    %123 = vector.shape_cast %122 : vector<4x4x32xf32> to vector<16x32xf32>
    %c0_95 = arith.constant 0 : index
    %c256 = arith.constant 256 : index
    %124 = vector.load %arg16[%c0_95, %c256] : memref<64x288xf32, #tpu.memory_space<vmem>>, vector<16x32xf32>
    tpu.vector_store %arg16[%c0_95, %c256], %123 {strides = array<i32>} : memref<64x288xf32, #tpu.memory_space<vmem>>, vector<16x32xf32>,
    %c0_96 = arith.constant 0 : index
    %c0_97 = arith.constant 0 : index
    %125 = vector.load %arg16[%c0_96, %c0_97] : memref<64x288xf32, #tpu.memory_space<vmem>>, vector<16x288xf32>
    %c0_98 = arith.constant 0 : index
    %c0_99 = arith.constant 0 : index
    %126 = vector.load %arg4[%c0_98, %c0_99] : memref<288x32xf32, #tpu.memory_space<vmem>>, vector<288x32xf32>
    %cst_100 = arith.constant dense<0.000000e+00> : vector<16x32xf32>
    %127 = tpu.matmul %125, %126, %cst_100 {dimension_numbers = #tpu.dot_dimension_numbers<[1], [0], [0], [1], [0, 0, 1, 1], [], []>} : vector<16x288xf32>, vector<288x32xf32>, vector<16x32xf32> -> vector<16x32xf32>
    %c0_101 = arith.constant 0 : index
    %c0_102 = arith.constant 0 : index
    %128 = vector.load %arg5[%c0_101, %c0_102] : memref<1x32xf32, #tpu.memory_space<vmem>>, vector<1x32xf32>
    %129 = vector.broadcast %128 : vector<1x32xf32> to vector<16x32xf32>
    %130 = arith.addf %127, %129 : vector<16x32xf32>
    %cst_103 = arith.constant 0.000000e+00 : f32
    %131 = vector.broadcast %cst_103 : f32 to vector<16x32xf32>
    %132 = arith.maximumf %130, %131 : vector<16x32xf32>
    %133 = vector.shape_cast %132 : vector<16x32xf32> to vector<4x4x32xf32>
    %cst_104 = arith.constant 0xFF800000 : f32
    %134 = vector.broadcast %cst_104 : f32 to vector<6x6x32xf32>
    %c0_105 = arith.constant 0 : index
    %c0_106 = arith.constant 0 : index
    %c0_107 = arith.constant 0 : index
    %135 = vector.load %arg15[%c0_105, %c0_106, %c0_107] : memref<18x18x32xf32, #tpu.memory_space<vmem>>, vector<6x6x32xf32>
    tpu.vector_store %arg15[%c0_105, %c0_106, %c0_107], %134 {strides = array<i32>} : memref<18x18x32xf32, #tpu.memory_space<vmem>>, vector<6x6x32xf32>,
    %c1_108 = arith.constant 1 : index
    %c1_109 = arith.constant 1 : index
    %c0_110 = arith.constant 0 : index
    %136 = vector.load %arg15[%c1_108, %c1_109, %c0_110] : memref<18x18x32xf32, #tpu.memory_space<vmem>>, vector<4x4x32xf32>
    tpu.vector_store %arg15[%c1_108, %c1_109, %c0_110], %133 {strides = array<i32>} : memref<18x18x32xf32, #tpu.memory_space<vmem>>, vector<4x4x32xf32>,
    %c0_111 = arith.constant 0 : index
    %c0_112 = arith.constant 0 : index
    %c0_113 = arith.constant 0 : index
    %137 = vector.load %arg15[%c0_111, %c0_112, %c0_113] : memref<18x18x32xf32, #tpu.memory_space<vmem>>, vector<4x4x32xf32>
    %c0_114 = arith.constant 0 : index
    %c1_115 = arith.constant 1 : index
    %c0_116 = arith.constant 0 : index
    %138 = vector.load %arg15[%c0_114, %c1_115, %c0_116] : memref<18x18x32xf32, #tpu.memory_space<vmem>>, vector<4x4x32xf32>
    %139 = arith.maximumf %137, %138 : vector<4x4x32xf32>
    %c0_117 = arith.constant 0 : index
    %c2_118 = arith.constant 2 : index
    %c0_119 = arith.constant 0 : index
    %140 = vector.load %arg15[%c0_117, %c2_118, %c0_119] : memref<18x18x32xf32, #tpu.memory_space<vmem>>, vector<4x4x32xf32>
    %141 = arith.maximumf %139, %140 : vector<4x4x32xf32>
    %c1_120 = arith.constant 1 : index
    %c0_121 = arith.constant 0 : index
    %c0_122 = arith.constant 0 : index
    %142 = vector.load %arg15[%c1_120, %c0_121, %c0_122] : memref<18x18x32xf32, #tpu.memory_space<vmem>>, vector<4x4x32xf32>
    %143 = arith.maximumf %141, %142 : vector<4x4x32xf32>
    %c1_123 = arith.constant 1 : index
    %c1_124 = arith.constant 1 : index
    %c0_125 = arith.constant 0 : index
    %144 = vector.load %arg15[%c1_123, %c1_124, %c0_125] : memref<18x18x32xf32, #tpu.memory_space<vmem>>, vector<4x4x32xf32>
    %145 = arith.maximumf %143, %144 : vector<4x4x32xf32>
    %c1_126 = arith.constant 1 : index
    %c2_127 = arith.constant 2 : index
    %c0_128 = arith.constant 0 : index
    %146 = vector.load %arg15[%c1_126, %c2_127, %c0_128] : memref<18x18x32xf32, #tpu.memory_space<vmem>>, vector<4x4x32xf32>
    %147 = arith.maximumf %145, %146 : vector<4x4x32xf32>
    %c2_129 = arith.constant 2 : index
    %c0_130 = arith.constant 0 : index
    %c0_131 = arith.constant 0 : index
    %148 = vector.load %arg15[%c2_129, %c0_130, %c0_131] : memref<18x18x32xf32, #tpu.memory_space<vmem>>, vector<4x4x32xf32>
    %149 = arith.maximumf %147, %148 : vector<4x4x32xf32>
    %c2_132 = arith.constant 2 : index
    %c1_133 = arith.constant 1 : index
    %c0_134 = arith.constant 0 : index
    %150 = vector.load %arg15[%c2_132, %c1_133, %c0_134] : memref<18x18x32xf32, #tpu.memory_space<vmem>>, vector<4x4x32xf32>
    %151 = arith.maximumf %149, %150 : vector<4x4x32xf32>
    %c2_135 = arith.constant 2 : index
    %c2_136 = arith.constant 2 : index
    %c0_137 = arith.constant 0 : index
    %152 = vector.load %arg15[%c2_135, %c2_136, %c0_137] : memref<18x18x32xf32, #tpu.memory_space<vmem>>, vector<4x4x32xf32>
    %153 = arith.maximumf %151, %152 : vector<4x4x32xf32>
    %cst_138 = arith.constant 0.000000e+00 : f32
    %154 = vector.broadcast %cst_138 : f32 to vector<6x6x32xf32>
    %c0_139 = arith.constant 0 : index
    %c0_140 = arith.constant 0 : index
    %c0_141 = arith.constant 0 : index
    %155 = vector.load %arg15[%c0_139, %c0_140, %c0_141] : memref<18x18x32xf32, #tpu.memory_space<vmem>>, vector<6x6x32xf32>
    tpu.vector_store %arg15[%c0_139, %c0_140, %c0_141], %154 {strides = array<i32>} : memref<18x18x32xf32, #tpu.memory_space<vmem>>, vector<6x6x32xf32>,
    %c1_142 = arith.constant 1 : index
    %c1_143 = arith.constant 1 : index
    %c0_144 = arith.constant 0 : index
    %156 = vector.load %arg15[%c1_142, %c1_143, %c0_144] : memref<18x18x32xf32, #tpu.memory_space<vmem>>, vector<4x4x32xf32>
    tpu.vector_store %arg15[%c1_142, %c1_143, %c0_144], %153 {strides = array<i32>} : memref<18x18x32xf32, #tpu.memory_space<vmem>>, vector<4x4x32xf32>,
    %c0_145 = arith.constant 0 : index
    %c0_146 = arith.constant 0 : index
    %c0_147 = arith.constant 0 : index
    %157 = tpu.strided_load %arg15[%c0_145, %c0_146, %c0_147] {strides = array<i32: 1, 2, 1>} : memref<18x18x32xf32, #tpu.memory_space<vmem>>, vector<4x2x32xf32>
    %158 = vector.shape_cast %157 : vector<4x2x32xf32> to vector<2x2x2x32xf32>
    %159 = vector.extract_strided_slice %158 {offsets = [0, 0, 0, 0], sizes = [2, 1, 2, 32], strides = [1, 1, 1, 1]} : vector<2x2x2x32xf32> to vector<2x1x2x32xf32>
    %160 = vector.shape_cast %159 : vector<2x1x2x32xf32> to vector<2x2x32xf32>
    %161 = vector.shape_cast %160 : vector<2x2x32xf32> to vector<4x32xf32>
    %c0_148 = arith.constant 0 : index
    %c0_149 = arith.constant 0 : index
    %162 = vector.load %arg16[%c0_148, %c0_149] : memref<64x288xf32, #tpu.memory_space<vmem>>, vector<4x32xf32>
    tpu.vector_store %arg16[%c0_148, %c0_149], %161 {strides = array<i32>} : memref<64x288xf32, #tpu.memory_space<vmem>>, vector<4x32xf32>,
    %c0_150 = arith.constant 0 : index
    %c1_151 = arith.constant 1 : index
    %c0_152 = arith.constant 0 : index
    %163 = tpu.strided_load %arg15[%c0_150, %c1_151, %c0_152] {strides = array<i32: 1, 2, 1>} : memref<18x18x32xf32, #tpu.memory_space<vmem>>, vector<4x2x32xf32>
    %164 = vector.shape_cast %163 : vector<4x2x32xf32> to vector<2x2x2x32xf32>
    %165 = vector.extract_strided_slice %164 {offsets = [0, 0, 0, 0], sizes = [2, 1, 2, 32], strides = [1, 1, 1, 1]} : vector<2x2x2x32xf32> to vector<2x1x2x32xf32>
    %166 = vector.shape_cast %165 : vector<2x1x2x32xf32> to vector<2x2x32xf32>
    %167 = vector.shape_cast %166 : vector<2x2x32xf32> to vector<4x32xf32>
    %c0_153 = arith.constant 0 : index
    %c32_154 = arith.constant 32 : index
    %168 = vector.load %arg16[%c0_153, %c32_154] : memref<64x288xf32, #tpu.memory_space<vmem>>, vector<4x32xf32>
    tpu.vector_store %arg16[%c0_153, %c32_154], %167 {strides = array<i32>} : memref<64x288xf32, #tpu.memory_space<vmem>>, vector<4x32xf32>,
    %c0_155 = arith.constant 0 : index
    %c2_156 = arith.constant 2 : index
    %c0_157 = arith.constant 0 : index
    %169 = tpu.strided_load %arg15[%c0_155, %c2_156, %c0_157] {strides = array<i32: 1, 2, 1>} : memref<18x18x32xf32, #tpu.memory_space<vmem>>, vector<4x2x32xf32>
    %170 = vector.shape_cast %169 : vector<4x2x32xf32> to vector<2x2x2x32xf32>
    %171 = vector.extract_strided_slice %170 {offsets = [0, 0, 0, 0], sizes = [2, 1, 2, 32], strides = [1, 1, 1, 1]} : vector<2x2x2x32xf32> to vector<2x1x2x32xf32>
    %172 = vector.shape_cast %171 : vector<2x1x2x32xf32> to vector<2x2x32xf32>
    %173 = vector.shape_cast %172 : vector<2x2x32xf32> to vector<4x32xf32>
    %c0_158 = arith.constant 0 : index
    %c64_159 = arith.constant 64 : index
    %174 = vector.load %arg16[%c0_158, %c64_159] : memref<64x288xf32, #tpu.memory_space<vmem>>, vector<4x32xf32>
    tpu.vector_store %arg16[%c0_158, %c64_159], %173 {strides = array<i32>} : memref<64x288xf32, #tpu.memory_space<vmem>>, vector<4x32xf32>,
    %c1_160 = arith.constant 1 : index
    %c0_161 = arith.constant 0 : index
    %c0_162 = arith.constant 0 : index
    %175 = tpu.strided_load %arg15[%c1_160, %c0_161, %c0_162] {strides = array<i32: 1, 2, 1>} : memref<18x18x32xf32, #tpu.memory_space<vmem>>, vector<4x2x32xf32>
    %176 = vector.shape_cast %175 : vector<4x2x32xf32> to vector<2x2x2x32xf32>
    %177 = vector.extract_strided_slice %176 {offsets = [0, 0, 0, 0], sizes = [2, 1, 2, 32], strides = [1, 1, 1, 1]} : vector<2x2x2x32xf32> to vector<2x1x2x32xf32>
    %178 = vector.shape_cast %177 : vector<2x1x2x32xf32> to vector<2x2x32xf32>
    %179 = vector.shape_cast %178 : vector<2x2x32xf32> to vector<4x32xf32>
    %c0_163 = arith.constant 0 : index
    %c96_164 = arith.constant 96 : index
    %180 = vector.load %arg16[%c0_163, %c96_164] : memref<64x288xf32, #tpu.memory_space<vmem>>, vector<4x32xf32>
    tpu.vector_store %arg16[%c0_163, %c96_164], %179 {strides = array<i32>} : memref<64x288xf32, #tpu.memory_space<vmem>>, vector<4x32xf32>,
    %c1_165 = arith.constant 1 : index
    %c1_166 = arith.constant 1 : index
    %c0_167 = arith.constant 0 : index
    %181 = tpu.strided_load %arg15[%c1_165, %c1_166, %c0_167] {strides = array<i32: 1, 2, 1>} : memref<18x18x32xf32, #tpu.memory_space<vmem>>, vector<4x2x32xf32>
    %182 = vector.shape_cast %181 : vector<4x2x32xf32> to vector<2x2x2x32xf32>
    %183 = vector.extract_strided_slice %182 {offsets = [0, 0, 0, 0], sizes = [2, 1, 2, 32], strides = [1, 1, 1, 1]} : vector<2x2x2x32xf32> to vector<2x1x2x32xf32>
    %184 = vector.shape_cast %183 : vector<2x1x2x32xf32> to vector<2x2x32xf32>
    %185 = vector.shape_cast %184 : vector<2x2x32xf32> to vector<4x32xf32>
    %c0_168 = arith.constant 0 : index
    %c128_169 = arith.constant 128 : index
    %186 = vector.load %arg16[%c0_168, %c128_169] : memref<64x288xf32, #tpu.memory_space<vmem>>, vector<4x32xf32>
    tpu.vector_store %arg16[%c0_168, %c128_169], %185 {strides = array<i32>} : memref<64x288xf32, #tpu.memory_space<vmem>>, vector<4x32xf32>,
    %c1_170 = arith.constant 1 : index
    %c2_171 = arith.constant 2 : index
    %c0_172 = arith.constant 0 : index
    %187 = tpu.strided_load %arg15[%c1_170, %c2_171, %c0_172] {strides = array<i32: 1, 2, 1>} : memref<18x18x32xf32, #tpu.memory_space<vmem>>, vector<4x2x32xf32>
    %188 = vector.shape_cast %187 : vector<4x2x32xf32> to vector<2x2x2x32xf32>
    %189 = vector.extract_strided_slice %188 {offsets = [0, 0, 0, 0], sizes = [2, 1, 2, 32], strides = [1, 1, 1, 1]} : vector<2x2x2x32xf32> to vector<2x1x2x32xf32>
    %190 = vector.shape_cast %189 : vector<2x1x2x32xf32> to vector<2x2x32xf32>
    %191 = vector.shape_cast %190 : vector<2x2x32xf32> to vector<4x32xf32>
    %c0_173 = arith.constant 0 : index
    %c160_174 = arith.constant 160 : index
    %192 = vector.load %arg16[%c0_173, %c160_174] : memref<64x288xf32, #tpu.memory_space<vmem>>, vector<4x32xf32>
    tpu.vector_store %arg16[%c0_173, %c160_174], %191 {strides = array<i32>} : memref<64x288xf32, #tpu.memory_space<vmem>>, vector<4x32xf32>,
    %c2_175 = arith.constant 2 : index
    %c0_176 = arith.constant 0 : index
    %c0_177 = arith.constant 0 : index
    %193 = tpu.strided_load %arg15[%c2_175, %c0_176, %c0_177] {strides = array<i32: 1, 2, 1>} : memref<18x18x32xf32, #tpu.memory_space<vmem>>, vector<4x2x32xf32>
    %194 = vector.shape_cast %193 : vector<4x2x32xf32> to vector<2x2x2x32xf32>
    %195 = vector.extract_strided_slice %194 {offsets = [0, 0, 0, 0], sizes = [2, 1, 2, 32], strides = [1, 1, 1, 1]} : vector<2x2x2x32xf32> to vector<2x1x2x32xf32>
    %196 = vector.shape_cast %195 : vector<2x1x2x32xf32> to vector<2x2x32xf32>
    %197 = vector.shape_cast %196 : vector<2x2x32xf32> to vector<4x32xf32>
    %c0_178 = arith.constant 0 : index
    %c192_179 = arith.constant 192 : index
    %198 = vector.load %arg16[%c0_178, %c192_179] : memref<64x288xf32, #tpu.memory_space<vmem>>, vector<4x32xf32>
    tpu.vector_store %arg16[%c0_178, %c192_179], %197 {strides = array<i32>} : memref<64x288xf32, #tpu.memory_space<vmem>>, vector<4x32xf32>,
    %c2_180 = arith.constant 2 : index
    %c1_181 = arith.constant 1 : index
    %c0_182 = arith.constant 0 : index
    %199 = tpu.strided_load %arg15[%c2_180, %c1_181, %c0_182] {strides = array<i32: 1, 2, 1>} : memref<18x18x32xf32, #tpu.memory_space<vmem>>, vector<4x2x32xf32>
    %200 = vector.shape_cast %199 : vector<4x2x32xf32> to vector<2x2x2x32xf32>
    %201 = vector.extract_strided_slice %200 {offsets = [0, 0, 0, 0], sizes = [2, 1, 2, 32], strides = [1, 1, 1, 1]} : vector<2x2x2x32xf32> to vector<2x1x2x32xf32>
    %202 = vector.shape_cast %201 : vector<2x1x2x32xf32> to vector<2x2x32xf32>
    %203 = vector.shape_cast %202 : vector<2x2x32xf32> to vector<4x32xf32>
    %c0_183 = arith.constant 0 : index
    %c224_184 = arith.constant 224 : index
    %204 = vector.load %arg16[%c0_183, %c224_184] : memref<64x288xf32, #tpu.memory_space<vmem>>, vector<4x32xf32>
    tpu.vector_store %arg16[%c0_183, %c224_184], %203 {strides = array<i32>} : memref<64x288xf32, #tpu.memory_space<vmem>>, vector<4x32xf32>,
    %c2_185 = arith.constant 2 : index
    %c2_186 = arith.constant 2 : index
    %c0_187 = arith.constant 0 : index
    %205 = tpu.strided_load %arg15[%c2_185, %c2_186, %c0_187] {strides = array<i32: 1, 2, 1>} : memref<18x18x32xf32, #tpu.memory_space<vmem>>, vector<4x2x32xf32>
    %206 = vector.shape_cast %205 : vector<4x2x32xf32> to vector<2x2x2x32xf32>
    %207 = vector.extract_strided_slice %206 {offsets = [0, 0, 0, 0], sizes = [2, 1, 2, 32], strides = [1, 1, 1, 1]} : vector<2x2x2x32xf32> to vector<2x1x2x32xf32>
    %208 = vector.shape_cast %207 : vector<2x1x2x32xf32> to vector<2x2x32xf32>
    %209 = vector.shape_cast %208 : vector<2x2x32xf32> to vector<4x32xf32>
    %c0_188 = arith.constant 0 : index
    %c256_189 = arith.constant 256 : index
    %210 = vector.load %arg16[%c0_188, %c256_189] : memref<64x288xf32, #tpu.memory_space<vmem>>, vector<4x32xf32>
    tpu.vector_store %arg16[%c0_188, %c256_189], %209 {strides = array<i32>} : memref<64x288xf32, #tpu.memory_space<vmem>>, vector<4x32xf32>,
    %c0_190 = arith.constant 0 : index
    %c0_191 = arith.constant 0 : index
    %211 = vector.load %arg16[%c0_190, %c0_191] : memref<64x288xf32, #tpu.memory_space<vmem>>, vector<4x288xf32>
    %c0_192 = arith.constant 0 : index
    %c0_193 = arith.constant 0 : index
    %212 = vector.load %arg6[%c0_192, %c0_193] : memref<288x32xf32, #tpu.memory_space<vmem>>, vector<288x32xf32>
    %cst_194 = arith.constant dense<0.000000e+00> : vector<4x32xf32>
    %213 = tpu.matmul %211, %212, %cst_194 {dimension_numbers = #tpu.dot_dimension_numbers<[1], [0], [0], [1], [0, 0, 1, 1], [], []>} : vector<4x288xf32>, vector<288x32xf32>, vector<4x32xf32> -> vector<4x32xf32>
    %c0_195 = arith.constant 0 : index
    %c0_196 = arith.constant 0 : index
    %214 = vector.load %arg7[%c0_195, %c0_196] : memref<1x32xf32, #tpu.memory_space<vmem>>, vector<1x32xf32>
    %215 = vector.broadcast %214 : vector<1x32xf32> to vector<4x32xf32>
    %216 = arith.addf %213, %215 : vector<4x32xf32>
    %cst_197 = arith.constant 0.000000e+00 : f32
    %217 = vector.broadcast %cst_197 : f32 to vector<4x32xf32>
    %218 = arith.maximumf %216, %217 : vector<4x32xf32>
    %219 = vector.shape_cast %218 : vector<4x32xf32> to vector<2x2x32xf32>
    %cst_198 = arith.constant 0.000000e+00 : f32
    %220 = vector.broadcast %cst_198 : f32 to vector<4x4x32xf32>
    %c0_199 = arith.constant 0 : index
    %c0_200 = arith.constant 0 : index
    %c0_201 = arith.constant 0 : index
    %221 = vector.load %arg15[%c0_199, %c0_200, %c0_201] : memref<18x18x32xf32, #tpu.memory_space<vmem>>, vector<4x4x32xf32>
    tpu.vector_store %arg15[%c0_199, %c0_200, %c0_201], %220 {strides = array<i32>} : memref<18x18x32xf32, #tpu.memory_space<vmem>>, vector<4x4x32xf32>,
    %c1_202 = arith.constant 1 : index
    %c1_203 = arith.constant 1 : index
    %c0_204 = arith.constant 0 : index
    %222 = vector.load %arg15[%c1_202, %c1_203, %c0_204] : memref<18x18x32xf32, #tpu.memory_space<vmem>>, vector<2x2x32xf32>
    tpu.vector_store %arg15[%c1_202, %c1_203, %c0_204], %219 {strides = array<i32>} : memref<18x18x32xf32, #tpu.memory_space<vmem>>, vector<2x2x32xf32>,
    %c0_205 = arith.constant 0 : index
    %c0_206 = arith.constant 0 : index
    %c0_207 = arith.constant 0 : index
    %223 = vector.load %arg15[%c0_205, %c0_206, %c0_207] : memref<18x18x32xf32, #tpu.memory_space<vmem>>, vector<2x2x32xf32>
    %224 = vector.shape_cast %223 : vector<2x2x32xf32> to vector<4x32xf32>
    %c0_208 = arith.constant 0 : index
    %c0_209 = arith.constant 0 : index
    %225 = vector.load %arg16[%c0_208, %c0_209] : memref<64x288xf32, #tpu.memory_space<vmem>>, vector<4x32xf32>
    tpu.vector_store %arg16[%c0_208, %c0_209], %224 {strides = array<i32>} : memref<64x288xf32, #tpu.memory_space<vmem>>, vector<4x32xf32>,
    %c0_210 = arith.constant 0 : index
    %c1_211 = arith.constant 1 : index
    %c0_212 = arith.constant 0 : index
    %226 = vector.load %arg15[%c0_210, %c1_211, %c0_212] : memref<18x18x32xf32, #tpu.memory_space<vmem>>, vector<2x2x32xf32>
    %227 = vector.shape_cast %226 : vector<2x2x32xf32> to vector<4x32xf32>
    %c0_213 = arith.constant 0 : index
    %c32_214 = arith.constant 32 : index
    %228 = vector.load %arg16[%c0_213, %c32_214] : memref<64x288xf32, #tpu.memory_space<vmem>>, vector<4x32xf32>
    tpu.vector_store %arg16[%c0_213, %c32_214], %227 {strides = array<i32>} : memref<64x288xf32, #tpu.memory_space<vmem>>, vector<4x32xf32>,
    %c0_215 = arith.constant 0 : index
    %c2_216 = arith.constant 2 : index
    %c0_217 = arith.constant 0 : index
    %229 = vector.load %arg15[%c0_215, %c2_216, %c0_217] : memref<18x18x32xf32, #tpu.memory_space<vmem>>, vector<2x2x32xf32>
    %230 = vector.shape_cast %229 : vector<2x2x32xf32> to vector<4x32xf32>
    %c0_218 = arith.constant 0 : index
    %c64_219 = arith.constant 64 : index
    %231 = vector.load %arg16[%c0_218, %c64_219] : memref<64x288xf32, #tpu.memory_space<vmem>>, vector<4x32xf32>
    tpu.vector_store %arg16[%c0_218, %c64_219], %230 {strides = array<i32>} : memref<64x288xf32, #tpu.memory_space<vmem>>, vector<4x32xf32>,
    %c1_220 = arith.constant 1 : index
    %c0_221 = arith.constant 0 : index
    %c0_222 = arith.constant 0 : index
    %232 = vector.load %arg15[%c1_220, %c0_221, %c0_222] : memref<18x18x32xf32, #tpu.memory_space<vmem>>, vector<2x2x32xf32>
    %233 = vector.shape_cast %232 : vector<2x2x32xf32> to vector<4x32xf32>
    %c0_223 = arith.constant 0 : index
    %c96_224 = arith.constant 96 : index
    %234 = vector.load %arg16[%c0_223, %c96_224] : memref<64x288xf32, #tpu.memory_space<vmem>>, vector<4x32xf32>
    tpu.vector_store %arg16[%c0_223, %c96_224], %233 {strides = array<i32>} : memref<64x288xf32, #tpu.memory_space<vmem>>, vector<4x32xf32>,
    %c1_225 = arith.constant 1 : index
    %c1_226 = arith.constant 1 : index
    %c0_227 = arith.constant 0 : index
    %235 = vector.load %arg15[%c1_225, %c1_226, %c0_227] : memref<18x18x32xf32, #tpu.memory_space<vmem>>, vector<2x2x32xf32>
    %236 = vector.shape_cast %235 : vector<2x2x32xf32> to vector<4x32xf32>
    %c0_228 = arith.constant 0 : index
    %c128_229 = arith.constant 128 : index
    %237 = vector.load %arg16[%c0_228, %c128_229] : memref<64x288xf32, #tpu.memory_space<vmem>>, vector<4x32xf32>
    tpu.vector_store %arg16[%c0_228, %c128_229], %236 {strides = array<i32>} : memref<64x288xf32, #tpu.memory_space<vmem>>, vector<4x32xf32>,
    %c1_230 = arith.constant 1 : index
    %c2_231 = arith.constant 2 : index
    %c0_232 = arith.constant 0 : index
    %238 = vector.load %arg15[%c1_230, %c2_231, %c0_232] : memref<18x18x32xf32, #tpu.memory_space<vmem>>, vector<2x2x32xf32>
    %239 = vector.shape_cast %238 : vector<2x2x32xf32> to vector<4x32xf32>
    %c0_233 = arith.constant 0 : index
    %c160_234 = arith.constant 160 : index
    %240 = vector.load %arg16[%c0_233, %c160_234] : memref<64x288xf32, #tpu.memory_space<vmem>>, vector<4x32xf32>
    tpu.vector_store %arg16[%c0_233, %c160_234], %239 {strides = array<i32>} : memref<64x288xf32, #tpu.memory_space<vmem>>, vector<4x32xf32>,
    %c2_235 = arith.constant 2 : index
    %c0_236 = arith.constant 0 : index
    %c0_237 = arith.constant 0 : index
    %241 = vector.load %arg15[%c2_235, %c0_236, %c0_237] : memref<18x18x32xf32, #tpu.memory_space<vmem>>, vector<2x2x32xf32>
    %242 = vector.shape_cast %241 : vector<2x2x32xf32> to vector<4x32xf32>
    %c0_238 = arith.constant 0 : index
    %c192_239 = arith.constant 192 : index
    %243 = vector.load %arg16[%c0_238, %c192_239] : memref<64x288xf32, #tpu.memory_space<vmem>>, vector<4x32xf32>
    tpu.vector_store %arg16[%c0_238, %c192_239], %242 {strides = array<i32>} : memref<64x288xf32, #tpu.memory_space<vmem>>, vector<4x32xf32>,
    %c2_240 = arith.constant 2 : index
    %c1_241 = arith.constant 1 : index
    %c0_242 = arith.constant 0 : index
    %244 = vector.load %arg15[%c2_240, %c1_241, %c0_242] : memref<18x18x32xf32, #tpu.memory_space<vmem>>, vector<2x2x32xf32>
    %245 = vector.shape_cast %244 : vector<2x2x32xf32> to vector<4x32xf32>
    %c0_243 = arith.constant 0 : index
    %c224_244 = arith.constant 224 : index
    %246 = vector.load %arg16[%c0_243, %c224_244] : memref<64x288xf32, #tpu.memory_space<vmem>>, vector<4x32xf32>
    tpu.vector_store %arg16[%c0_243, %c224_244], %245 {strides = array<i32>} : memref<64x288xf32, #tpu.memory_space<vmem>>, vector<4x32xf32>,
    %c2_245 = arith.constant 2 : index
    %c2_246 = arith.constant 2 : index
    %c0_247 = arith.constant 0 : index
    %247 = vector.load %arg15[%c2_245, %c2_246, %c0_247] : memref<18x18x32xf32, #tpu.memory_space<vmem>>, vector<2x2x32xf32>
    %248 = vector.shape_cast %247 : vector<2x2x32xf32> to vector<4x32xf32>
    %c0_248 = arith.constant 0 : index
    %c256_249 = arith.constant 256 : index
    %249 = vector.load %arg16[%c0_248, %c256_249] : memref<64x288xf32, #tpu.memory_space<vmem>>, vector<4x32xf32>
    tpu.vector_store %arg16[%c0_248, %c256_249], %248 {strides = array<i32>} : memref<64x288xf32, #tpu.memory_space<vmem>>, vector<4x32xf32>,
    %c0_250 = arith.constant 0 : index
    %c0_251 = arith.constant 0 : index
    %250 = vector.load %arg16[%c0_250, %c0_251] : memref<64x288xf32, #tpu.memory_space<vmem>>, vector<4x288xf32>
    %c0_252 = arith.constant 0 : index
    %c0_253 = arith.constant 0 : index
    %251 = vector.load %arg8[%c0_252, %c0_253] : memref<288x32xf32, #tpu.memory_space<vmem>>, vector<288x32xf32>
    %cst_254 = arith.constant dense<0.000000e+00> : vector<4x32xf32>
    %252 = tpu.matmul %250, %251, %cst_254 {dimension_numbers = #tpu.dot_dimension_numbers<[1], [0], [0], [1], [0, 0, 1, 1], [], []>} : vector<4x288xf32>, vector<288x32xf32>, vector<4x32xf32> -> vector<4x32xf32>
    %c0_255 = arith.constant 0 : index
    %c0_256 = arith.constant 0 : index
    %253 = vector.load %arg9[%c0_255, %c0_256] : memref<1x32xf32, #tpu.memory_space<vmem>>, vector<1x32xf32>
    %254 = vector.broadcast %253 : vector<1x32xf32> to vector<4x32xf32>
    %255 = arith.addf %252, %254 : vector<4x32xf32>
    %cst_257 = arith.constant 0.000000e+00 : f32
    %256 = vector.broadcast %cst_257 : f32 to vector<4x32xf32>
    %257 = arith.maximumf %255, %256 : vector<4x32xf32>
    %258 = vector.shape_cast %257 : vector<4x32xf32> to vector<2x2x32xf32>
    %cst_258 = arith.constant 0xFF800000 : f32
    %259 = vector.broadcast %cst_258 : f32 to vector<4x4x32xf32>
    %c0_259 = arith.constant 0 : index
    %c0_260 = arith.constant 0 : index
    %c0_261 = arith.constant 0 : index
    %260 = vector.load %arg15[%c0_259, %c0_260, %c0_261] : memref<18x18x32xf32, #tpu.memory_space<vmem>>, vector<4x4x32xf32>
    tpu.vector_store %arg15[%c0_259, %c0_260, %c0_261], %259 {strides = array<i32>} : memref<18x18x32xf32, #tpu.memory_space<vmem>>, vector<4x4x32xf32>,
    %c1_262 = arith.constant 1 : index
    %c1_263 = arith.constant 1 : index
    %c0_264 = arith.constant 0 : index
    %261 = vector.load %arg15[%c1_262, %c1_263, %c0_264] : memref<18x18x32xf32, #tpu.memory_space<vmem>>, vector<2x2x32xf32>
    tpu.vector_store %arg15[%c1_262, %c1_263, %c0_264], %258 {strides = array<i32>} : memref<18x18x32xf32, #tpu.memory_space<vmem>>, vector<2x2x32xf32>,
    %c0_265 = arith.constant 0 : index
    %c0_266 = arith.constant 0 : index
    %c0_267 = arith.constant 0 : index
    %262 = vector.load %arg15[%c0_265, %c0_266, %c0_267] : memref<18x18x32xf32, #tpu.memory_space<vmem>>, vector<2x2x32xf32>
    %c0_268 = arith.constant 0 : index
    %c1_269 = arith.constant 1 : index
    %c0_270 = arith.constant 0 : index
    %263 = vector.load %arg15[%c0_268, %c1_269, %c0_270] : memref<18x18x32xf32, #tpu.memory_space<vmem>>, vector<2x2x32xf32>
    %264 = arith.maximumf %262, %263 : vector<2x2x32xf32>
    %c0_271 = arith.constant 0 : index
    %c2_272 = arith.constant 2 : index
    %c0_273 = arith.constant 0 : index
    %265 = vector.load %arg15[%c0_271, %c2_272, %c0_273] : memref<18x18x32xf32, #tpu.memory_space<vmem>>, vector<2x2x32xf32>
    %266 = arith.maximumf %264, %265 : vector<2x2x32xf32>
    %c1_274 = arith.constant 1 : index
    %c0_275 = arith.constant 0 : index
    %c0_276 = arith.constant 0 : index
    %267 = vector.load %arg15[%c1_274, %c0_275, %c0_276] : memref<18x18x32xf32, #tpu.memory_space<vmem>>, vector<2x2x32xf32>
    %268 = arith.maximumf %266, %267 : vector<2x2x32xf32>
    %c1_277 = arith.constant 1 : index
    %c1_278 = arith.constant 1 : index
    %c0_279 = arith.constant 0 : index
    %269 = vector.load %arg15[%c1_277, %c1_278, %c0_279] : memref<18x18x32xf32, #tpu.memory_space<vmem>>, vector<2x2x32xf32>
    %270 = arith.maximumf %268, %269 : vector<2x2x32xf32>
    %c1_280 = arith.constant 1 : index
    %c2_281 = arith.constant 2 : index
    %c0_282 = arith.constant 0 : index
    %271 = vector.load %arg15[%c1_280, %c2_281, %c0_282] : memref<18x18x32xf32, #tpu.memory_space<vmem>>, vector<2x2x32xf32>
    %272 = arith.maximumf %270, %271 : vector<2x2x32xf32>
    %c2_283 = arith.constant 2 : index
    %c0_284 = arith.constant 0 : index
    %c0_285 = arith.constant 0 : index
    %273 = vector.load %arg15[%c2_283, %c0_284, %c0_285] : memref<18x18x32xf32, #tpu.memory_space<vmem>>, vector<2x2x32xf32>
    %274 = arith.maximumf %272, %273 : vector<2x2x32xf32>
    %c2_286 = arith.constant 2 : index
    %c1_287 = arith.constant 1 : index
    %c0_288 = arith.constant 0 : index
    %275 = vector.load %arg15[%c2_286, %c1_287, %c0_288] : memref<18x18x32xf32, #tpu.memory_space<vmem>>, vector<2x2x32xf32>
    %276 = arith.maximumf %274, %275 : vector<2x2x32xf32>
    %c2_289 = arith.constant 2 : index
    %c2_290 = arith.constant 2 : index
    %c0_291 = arith.constant 0 : index
    %277 = vector.load %arg15[%c2_289, %c2_290, %c0_291] : memref<18x18x32xf32, #tpu.memory_space<vmem>>, vector<2x2x32xf32>
    %278 = arith.maximumf %276, %277 : vector<2x2x32xf32>
    %cst_292 = arith.constant 0.000000e+00 : f32
    %279 = vector.broadcast %cst_292 : f32 to vector<4x4x32xf32>
    %c0_293 = arith.constant 0 : index
    %c0_294 = arith.constant 0 : index
    %c0_295 = arith.constant 0 : index
    %280 = vector.load %arg15[%c0_293, %c0_294, %c0_295] : memref<18x18x32xf32, #tpu.memory_space<vmem>>, vector<4x4x32xf32>
    tpu.vector_store %arg15[%c0_293, %c0_294, %c0_295], %279 {strides = array<i32>} : memref<18x18x32xf32, #tpu.memory_space<vmem>>, vector<4x4x32xf32>,
    %c1_296 = arith.constant 1 : index
    %c1_297 = arith.constant 1 : index
    %c0_298 = arith.constant 0 : index
    %281 = vector.load %arg15[%c1_296, %c1_297, %c0_298] : memref<18x18x32xf32, #tpu.memory_space<vmem>>, vector<2x2x32xf32>
    tpu.vector_store %arg15[%c1_296, %c1_297, %c0_298], %278 {strides = array<i32>} : memref<18x18x32xf32, #tpu.memory_space<vmem>>, vector<2x2x32xf32>,
    %c0_299 = arith.constant 0 : index
    %c0_300 = arith.constant 0 : index
    %c0_301 = arith.constant 0 : index
    %282 = vector.load %arg15[%c0_299, %c0_300, %c0_301] : memref<18x18x32xf32, #tpu.memory_space<vmem>>, vector<2x2x32xf32>
    %283 = vector.shape_cast %282 : vector<2x2x32xf32> to vector<4x32xf32>
    %c0_302 = arith.constant 0 : index
    %c0_303 = arith.constant 0 : index
    %284 = vector.load %arg16[%c0_302, %c0_303] : memref<64x288xf32, #tpu.memory_space<vmem>>, vector<4x32xf32>
    tpu.vector_store %arg16[%c0_302, %c0_303], %283 {strides = array<i32>} : memref<64x288xf32, #tpu.memory_space<vmem>>, vector<4x32xf32>,
    %c0_304 = arith.constant 0 : index
    %c1_305 = arith.constant 1 : index
    %c0_306 = arith.constant 0 : index
    %285 = vector.load %arg15[%c0_304, %c1_305, %c0_306] : memref<18x18x32xf32, #tpu.memory_space<vmem>>, vector<2x2x32xf32>
    %286 = vector.shape_cast %285 : vector<2x2x32xf32> to vector<4x32xf32>
    %c0_307 = arith.constant 0 : index
    %c32_308 = arith.constant 32 : index
    %287 = vector.load %arg16[%c0_307, %c32_308] : memref<64x288xf32, #tpu.memory_space<vmem>>, vector<4x32xf32>
    tpu.vector_store %arg16[%c0_307, %c32_308], %286 {strides = array<i32>} : memref<64x288xf32, #tpu.memory_space<vmem>>, vector<4x32xf32>,
    %c0_309 = arith.constant 0 : index
    %c2_310 = arith.constant 2 : index
    %c0_311 = arith.constant 0 : index
    %288 = vector.load %arg15[%c0_309, %c2_310, %c0_311] : memref<18x18x32xf32, #tpu.memory_space<vmem>>, vector<2x2x32xf32>
    %289 = vector.shape_cast %288 : vector<2x2x32xf32> to vector<4x32xf32>
    %c0_312 = arith.constant 0 : index
    %c64_313 = arith.constant 64 : index
    %290 = vector.load %arg16[%c0_312, %c64_313] : memref<64x288xf32, #tpu.memory_space<vmem>>, vector<4x32xf32>
    tpu.vector_store %arg16[%c0_312, %c64_313], %289 {strides = array<i32>} : memref<64x288xf32, #tpu.memory_space<vmem>>, vector<4x32xf32>,
    %c1_314 = arith.constant 1 : index
    %c0_315 = arith.constant 0 : index
    %c0_316 = arith.constant 0 : index
    %291 = vector.load %arg15[%c1_314, %c0_315, %c0_316] : memref<18x18x32xf32, #tpu.memory_space<vmem>>, vector<2x2x32xf32>
    %292 = vector.shape_cast %291 : vector<2x2x32xf32> to vector<4x32xf32>
    %c0_317 = arith.constant 0 : index
    %c96_318 = arith.constant 96 : index
    %293 = vector.load %arg16[%c0_317, %c96_318] : memref<64x288xf32, #tpu.memory_space<vmem>>, vector<4x32xf32>
    tpu.vector_store %arg16[%c0_317, %c96_318], %292 {strides = array<i32>} : memref<64x288xf32, #tpu.memory_space<vmem>>, vector<4x32xf32>,
    %c1_319 = arith.constant 1 : index
    %c1_320 = arith.constant 1 : index
    %c0_321 = arith.constant 0 : index
    %294 = vector.load %arg15[%c1_319, %c1_320, %c0_321] : memref<18x18x32xf32, #tpu.memory_space<vmem>>, vector<2x2x32xf32>
    %295 = vector.shape_cast %294 : vector<2x2x32xf32> to vector<4x32xf32>
    %c0_322 = arith.constant 0 : index
    %c128_323 = arith.constant 128 : index
    %296 = vector.load %arg16[%c0_322, %c128_323] : memref<64x288xf32, #tpu.memory_space<vmem>>, vector<4x32xf32>
    tpu.vector_store %arg16[%c0_322, %c128_323], %295 {strides = array<i32>} : memref<64x288xf32, #tpu.memory_space<vmem>>, vector<4x32xf32>,
    %c1_324 = arith.constant 1 : index
    %c2_325 = arith.constant 2 : index
    %c0_326 = arith.constant 0 : index
    %297 = vector.load %arg15[%c1_324, %c2_325, %c0_326] : memref<18x18x32xf32, #tpu.memory_space<vmem>>, vector<2x2x32xf32>
    %298 = vector.shape_cast %297 : vector<2x2x32xf32> to vector<4x32xf32>
    %c0_327 = arith.constant 0 : index
    %c160_328 = arith.constant 160 : index
    %299 = vector.load %arg16[%c0_327, %c160_328] : memref<64x288xf32, #tpu.memory_space<vmem>>, vector<4x32xf32>
    tpu.vector_store %arg16[%c0_327, %c160_328], %298 {strides = array<i32>} : memref<64x288xf32, #tpu.memory_space<vmem>>, vector<4x32xf32>,
    %c2_329 = arith.constant 2 : index
    %c0_330 = arith.constant 0 : index
    %c0_331 = arith.constant 0 : index
    %300 = vector.load %arg15[%c2_329, %c0_330, %c0_331] : memref<18x18x32xf32, #tpu.memory_space<vmem>>, vector<2x2x32xf32>
    %301 = vector.shape_cast %300 : vector<2x2x32xf32> to vector<4x32xf32>
    %c0_332 = arith.constant 0 : index
    %c192_333 = arith.constant 192 : index
    %302 = vector.load %arg16[%c0_332, %c192_333] : memref<64x288xf32, #tpu.memory_space<vmem>>, vector<4x32xf32>
    tpu.vector_store %arg16[%c0_332, %c192_333], %301 {strides = array<i32>} : memref<64x288xf32, #tpu.memory_space<vmem>>, vector<4x32xf32>,
    %c2_334 = arith.constant 2 : index
    %c1_335 = arith.constant 1 : index
    %c0_336 = arith.constant 0 : index
    %303 = vector.load %arg15[%c2_334, %c1_335, %c0_336] : memref<18x18x32xf32, #tpu.memory_space<vmem>>, vector<2x2x32xf32>
    %304 = vector.shape_cast %303 : vector<2x2x32xf32> to vector<4x32xf32>
    %c0_337 = arith.constant 0 : index
    %c224_338 = arith.constant 224 : index
    %305 = vector.load %arg16[%c0_337, %c224_338] : memref<64x288xf32, #tpu.memory_space<vmem>>, vector<4x32xf32>
    tpu.vector_store %arg16[%c0_337, %c224_338], %304 {strides = array<i32>} : memref<64x288xf32, #tpu.memory_space<vmem>>, vector<4x32xf32>,
    %c2_339 = arith.constant 2 : index
    %c2_340 = arith.constant 2 : index
    %c0_341 = arith.constant 0 : index
    %306 = vector.load %arg15[%c2_339, %c2_340, %c0_341] : memref<18x18x32xf32, #tpu.memory_space<vmem>>, vector<2x2x32xf32>
    %307 = vector.shape_cast %306 : vector<2x2x32xf32> to vector<4x32xf32>
    %c0_342 = arith.constant 0 : index
    %c256_343 = arith.constant 256 : index
    %308 = vector.load %arg16[%c0_342, %c256_343] : memref<64x288xf32, #tpu.memory_space<vmem>>, vector<4x32xf32>
    tpu.vector_store %arg16[%c0_342, %c256_343], %307 {strides = array<i32>} : memref<64x288xf32, #tpu.memory_space<vmem>>, vector<4x32xf32>,
    %c0_344 = arith.constant 0 : index
    %c0_345 = arith.constant 0 : index
    %309 = vector.load %arg16[%c0_344, %c0_345] : memref<64x288xf32, #tpu.memory_space<vmem>>, vector<4x288xf32>
    %c0_346 = arith.constant 0 : index
    %c0_347 = arith.constant 0 : index
    %310 = vector.load %arg10[%c0_346, %c0_347] : memref<288x32xf32, #tpu.memory_space<vmem>>, vector<288x32xf32>
    %cst_348 = arith.constant dense<0.000000e+00> : vector<4x32xf32>
    %311 = tpu.matmul %309, %310, %cst_348 {dimension_numbers = #tpu.dot_dimension_numbers<[1], [0], [0], [1], [0, 0, 1, 1], [], []>} : vector<4x288xf32>, vector<288x32xf32>, vector<4x32xf32> -> vector<4x32xf32>
    %c0_349 = arith.constant 0 : index
    %c0_350 = arith.constant 0 : index
    %312 = vector.load %arg11[%c0_349, %c0_350] : memref<1x32xf32, #tpu.memory_space<vmem>>, vector<1x32xf32>
    %313 = vector.broadcast %312 : vector<1x32xf32> to vector<4x32xf32>
    %314 = arith.addf %311, %313 : vector<4x32xf32>
    %cst_351 = arith.constant 0.000000e+00 : f32
    %315 = vector.broadcast %cst_351 : f32 to vector<4x32xf32>
    %316 = arith.maximumf %314, %315 : vector<4x32xf32>
    %317 = vector.shape_cast %316 : vector<4x32xf32> to vector<2x2x32xf32>
    %cst_352 = arith.constant 0.000000e+00 : f32
    %318 = vector.broadcast %cst_352 : f32 to vector<4x4x32xf32>
    %c0_353 = arith.constant 0 : index
    %c0_354 = arith.constant 0 : index
    %c0_355 = arith.constant 0 : index
    %319 = vector.load %arg15[%c0_353, %c0_354, %c0_355] : memref<18x18x32xf32, #tpu.memory_space<vmem>>, vector<4x4x32xf32>
    tpu.vector_store %arg15[%c0_353, %c0_354, %c0_355], %318 {strides = array<i32>} : memref<18x18x32xf32, #tpu.memory_space<vmem>>, vector<4x4x32xf32>,
    %c1_356 = arith.constant 1 : index
    %c1_357 = arith.constant 1 : index
    %c0_358 = arith.constant 0 : index
    %320 = vector.load %arg15[%c1_356, %c1_357, %c0_358] : memref<18x18x32xf32, #tpu.memory_space<vmem>>, vector<2x2x32xf32>
    tpu.vector_store %arg15[%c1_356, %c1_357, %c0_358], %317 {strides = array<i32>} : memref<18x18x32xf32, #tpu.memory_space<vmem>>, vector<2x2x32xf32>,
    %c0_359 = arith.constant 0 : index
    %c0_360 = arith.constant 0 : index
    %c0_361 = arith.constant 0 : index
    %321 = vector.load %arg15[%c0_359, %c0_360, %c0_361] : memref<18x18x32xf32, #tpu.memory_space<vmem>>, vector<2x2x32xf32>
    %322 = vector.shape_cast %321 : vector<2x2x32xf32> to vector<4x32xf32>
    %c0_362 = arith.constant 0 : index
    %c0_363 = arith.constant 0 : index
    %323 = vector.load %arg16[%c0_362, %c0_363] : memref<64x288xf32, #tpu.memory_space<vmem>>, vector<4x32xf32>
    tpu.vector_store %arg16[%c0_362, %c0_363], %322 {strides = array<i32>} : memref<64x288xf32, #tpu.memory_space<vmem>>, vector<4x32xf32>,
    %c0_364 = arith.constant 0 : index
    %c1_365 = arith.constant 1 : index
    %c0_366 = arith.constant 0 : index
    %324 = vector.load %arg15[%c0_364, %c1_365, %c0_366] : memref<18x18x32xf32, #tpu.memory_space<vmem>>, vector<2x2x32xf32>
    %325 = vector.shape_cast %324 : vector<2x2x32xf32> to vector<4x32xf32>
    %c0_367 = arith.constant 0 : index
    %c32_368 = arith.constant 32 : index
    %326 = vector.load %arg16[%c0_367, %c32_368] : memref<64x288xf32, #tpu.memory_space<vmem>>, vector<4x32xf32>
    tpu.vector_store %arg16[%c0_367, %c32_368], %325 {strides = array<i32>} : memref<64x288xf32, #tpu.memory_space<vmem>>, vector<4x32xf32>,
    %c0_369 = arith.constant 0 : index
    %c2_370 = arith.constant 2 : index
    %c0_371 = arith.constant 0 : index
    %327 = vector.load %arg15[%c0_369, %c2_370, %c0_371] : memref<18x18x32xf32, #tpu.memory_space<vmem>>, vector<2x2x32xf32>
    %328 = vector.shape_cast %327 : vector<2x2x32xf32> to vector<4x32xf32>
    %c0_372 = arith.constant 0 : index
    %c64_373 = arith.constant 64 : index
    %329 = vector.load %arg16[%c0_372, %c64_373] : memref<64x288xf32, #tpu.memory_space<vmem>>, vector<4x32xf32>
    tpu.vector_store %arg16[%c0_372, %c64_373], %328 {strides = array<i32>} : memref<64x288xf32, #tpu.memory_space<vmem>>, vector<4x32xf32>,
    %c1_374 = arith.constant 1 : index
    %c0_375 = arith.constant 0 : index
    %c0_376 = arith.constant 0 : index
    %330 = vector.load %arg15[%c1_374, %c0_375, %c0_376] : memref<18x18x32xf32, #tpu.memory_space<vmem>>, vector<2x2x32xf32>
    %331 = vector.shape_cast %330 : vector<2x2x32xf32> to vector<4x32xf32>
    %c0_377 = arith.constant 0 : index
    %c96_378 = arith.constant 96 : index
    %332 = vector.load %arg16[%c0_377, %c96_378] : memref<64x288xf32, #tpu.memory_space<vmem>>, vector<4x32xf32>
    tpu.vector_store %arg16[%c0_377, %c96_378], %331 {strides = array<i32>} : memref<64x288xf32, #tpu.memory_space<vmem>>, vector<4x32xf32>,
    %c1_379 = arith.constant 1 : index
    %c1_380 = arith.constant 1 : index
    %c0_381 = arith.constant 0 : index
    %333 = vector.load %arg15[%c1_379, %c1_380, %c0_381] : memref<18x18x32xf32, #tpu.memory_space<vmem>>, vector<2x2x32xf32>
    %334 = vector.shape_cast %333 : vector<2x2x32xf32> to vector<4x32xf32>
    %c0_382 = arith.constant 0 : index
    %c128_383 = arith.constant 128 : index
    %335 = vector.load %arg16[%c0_382, %c128_383] : memref<64x288xf32, #tpu.memory_space<vmem>>, vector<4x32xf32>
    tpu.vector_store %arg16[%c0_382, %c128_383], %334 {strides = array<i32>} : memref<64x288xf32, #tpu.memory_space<vmem>>, vector<4x32xf32>,
    %c1_384 = arith.constant 1 : index
    %c2_385 = arith.constant 2 : index
    %c0_386 = arith.constant 0 : index
    %336 = vector.load %arg15[%c1_384, %c2_385, %c0_386] : memref<18x18x32xf32, #tpu.memory_space<vmem>>, vector<2x2x32xf32>
    %337 = vector.shape_cast %336 : vector<2x2x32xf32> to vector<4x32xf32>
    %c0_387 = arith.constant 0 : index
    %c160_388 = arith.constant 160 : index
    %338 = vector.load %arg16[%c0_387, %c160_388] : memref<64x288xf32, #tpu.memory_space<vmem>>, vector<4x32xf32>
    tpu.vector_store %arg16[%c0_387, %c160_388], %337 {strides = array<i32>} : memref<64x288xf32, #tpu.memory_space<vmem>>, vector<4x32xf32>,
    %c2_389 = arith.constant 2 : index
    %c0_390 = arith.constant 0 : index
    %c0_391 = arith.constant 0 : index
    %339 = vector.load %arg15[%c2_389, %c0_390, %c0_391] : memref<18x18x32xf32, #tpu.memory_space<vmem>>, vector<2x2x32xf32>
    %340 = vector.shape_cast %339 : vector<2x2x32xf32> to vector<4x32xf32>
    %c0_392 = arith.constant 0 : index
    %c192_393 = arith.constant 192 : index
    %341 = vector.load %arg16[%c0_392, %c192_393] : memref<64x288xf32, #tpu.memory_space<vmem>>, vector<4x32xf32>
    tpu.vector_store %arg16[%c0_392, %c192_393], %340 {strides = array<i32>} : memref<64x288xf32, #tpu.memory_space<vmem>>, vector<4x32xf32>,
    %c2_394 = arith.constant 2 : index
    %c1_395 = arith.constant 1 : index
    %c0_396 = arith.constant 0 : index
    %342 = vector.load %arg15[%c2_394, %c1_395, %c0_396] : memref<18x18x32xf32, #tpu.memory_space<vmem>>, vector<2x2x32xf32>
    %343 = vector.shape_cast %342 : vector<2x2x32xf32> to vector<4x32xf32>
    %c0_397 = arith.constant 0 : index
    %c224_398 = arith.constant 224 : index
    %344 = vector.load %arg16[%c0_397, %c224_398] : memref<64x288xf32, #tpu.memory_space<vmem>>, vector<4x32xf32>
    tpu.vector_store %arg16[%c0_397, %c224_398], %343 {strides = array<i32>} : memref<64x288xf32, #tpu.memory_space<vmem>>, vector<4x32xf32>,
    %c2_399 = arith.constant 2 : index
    %c2_400 = arith.constant 2 : index
    %c0_401 = arith.constant 0 : index
    %345 = vector.load %arg15[%c2_399, %c2_400, %c0_401] : memref<18x18x32xf32, #tpu.memory_space<vmem>>, vector<2x2x32xf32>
    %346 = vector.shape_cast %345 : vector<2x2x32xf32> to vector<4x32xf32>
    %c0_402 = arith.constant 0 : index
    %c256_403 = arith.constant 256 : index
    %347 = vector.load %arg16[%c0_402, %c256_403] : memref<64x288xf32, #tpu.memory_space<vmem>>, vector<4x32xf32>
    tpu.vector_store %arg16[%c0_402, %c256_403], %346 {strides = array<i32>} : memref<64x288xf32, #tpu.memory_space<vmem>>, vector<4x32xf32>,
    %c0_404 = arith.constant 0 : index
    %c0_405 = arith.constant 0 : index
    %348 = vector.load %arg16[%c0_404, %c0_405] : memref<64x288xf32, #tpu.memory_space<vmem>>, vector<4x288xf32>
    %c0_406 = arith.constant 0 : index
    %c0_407 = arith.constant 0 : index
    %349 = vector.load %arg12[%c0_406, %c0_407] : memref<288x100xf32, #tpu.memory_space<vmem>>, vector<288x100xf32>
    %cst_408 = arith.constant dense<0.000000e+00> : vector<4x100xf32>
    %350 = tpu.matmul %348, %349, %cst_408 {dimension_numbers = #tpu.dot_dimension_numbers<[1], [0], [0], [1], [0, 0, 1, 1], [], []>} : vector<4x288xf32>, vector<288x100xf32>, vector<4x100xf32> -> vector<4x100xf32>
    %c0_409 = arith.constant 0 : index
    %c0_410 = arith.constant 0 : index
    %351 = vector.load %arg13[%c0_409, %c0_410] : memref<1x100xf32, #tpu.memory_space<vmem>>, vector<1x100xf32>
    %352 = vector.broadcast %351 : vector<1x100xf32> to vector<4x100xf32>
    %353 = arith.addf %350, %352 : vector<4x100xf32>
    %354 = vector.shape_cast %353 : vector<4x100xf32> to vector<2x2x100xf32>
    %355 = vector.shape_cast %354 : vector<2x2x100xf32> to vector<4x100xf32>
    %c0_411 = arith.constant 0 : index
    %c0_412 = arith.constant 0 : index
    %c0_413 = arith.constant 0 : index
    %356 = vector.load %arg14[%c0_411, %c0_412, %c0_413] : memref<1x4x100xf32, #tpu.memory_space<vmem>>, vector<1x4x100xf32>
    %357 = vector.shape_cast %356 : vector<1x4x100xf32> to vector<4x100xf32>
    %358 = vector.shape_cast %355 : vector<4x100xf32> to vector<1x4x100xf32>
    tpu.vector_store %arg14[%c0_411, %c0_412, %c0_413], %358 {strides = array<i32>} : memref<1x4x100xf32, #tpu.memory_space<vmem>>, vector<1x4x100xf32>,
    return
  }
  func.func @transform_0(%arg0: i32) -> (i32, i32, i32, i32) {
    %c0_i32 = arith.constant 0 : i32
    %c0_i32_0 = arith.constant 0 : i32
    %c0_i32_1 = arith.constant 0 : i32
    %c0_i32_2 = arith.constant 0 : i32
    return %arg0, %c0_i32, %c0_i32_0, %c0_i32_1 : i32, i32, i32, i32
  }
  func.func @transform_1(%arg0: i32) -> (i32, i32) {
    %c0_i32 = arith.constant 0 : i32
    %c0_i32_0 = arith.constant 0 : i32
    %c0_i32_1 = arith.constant 0 : i32
    return %c0_i32, %c0_i32_0 : i32, i32
  }
  func.func @transform_2(%arg0: i32) -> (i32, i32) {
    %c0_i32 = arith.constant 0 : i32
    %c0_i32_0 = arith.constant 0 : i32
    %c0_i32_1 = arith.constant 0 : i32
    return %c0_i32, %c0_i32_0 : i32, i32
  }
  func.func @transform_3(%arg0: i32) -> (i32, i32) {
    %c0_i32 = arith.constant 0 : i32
    %c0_i32_0 = arith.constant 0 : i32
    %c0_i32_1 = arith.constant 0 : i32
    return %c0_i32, %c0_i32_0 : i32, i32
  }
  func.func @transform_4(%arg0: i32) -> (i32, i32) {
    %c0_i32 = arith.constant 0 : i32
    %c0_i32_0 = arith.constant 0 : i32
    %c0_i32_1 = arith.constant 0 : i32
    return %c0_i32, %c0_i32_0 : i32, i32
  }
  func.func @transform_5(%arg0: i32) -> (i32, i32) {
    %c0_i32 = arith.constant 0 : i32
    %c0_i32_0 = arith.constant 0 : i32
    %c0_i32_1 = arith.constant 0 : i32
    return %c0_i32, %c0_i32_0 : i32, i32
  }
  func.func @transform_6(%arg0: i32) -> (i32, i32) {
    %c0_i32 = arith.constant 0 : i32
    %c0_i32_0 = arith.constant 0 : i32
    %c0_i32_1 = arith.constant 0 : i32
    return %c0_i32, %c0_i32_0 : i32, i32
  }
  func.func @transform_7(%arg0: i32) -> (i32, i32) {
    %c0_i32 = arith.constant 0 : i32
    %c0_i32_0 = arith.constant 0 : i32
    %c0_i32_1 = arith.constant 0 : i32
    return %c0_i32, %c0_i32_0 : i32, i32
  }
  func.func @transform_8(%arg0: i32) -> (i32, i32) {
    %c0_i32 = arith.constant 0 : i32
    %c0_i32_0 = arith.constant 0 : i32
    %c0_i32_1 = arith.constant 0 : i32
    return %c0_i32, %c0_i32_0 : i32, i32
  }
  func.func @transform_9(%arg0: i32) -> (i32, i32) {
    %c0_i32 = arith.constant 0 : i32
    %c0_i32_0 = arith.constant 0 : i32
    %c0_i32_1 = arith.constant 0 : i32
    return %c0_i32, %c0_i32_0 : i32, i32
  }
  func.func @transform_10(%arg0: i32) -> (i32, i32) {
    %c0_i32 = arith.constant 0 : i32
    %c0_i32_0 = arith.constant 0 : i32
    %c0_i32_1 = arith.constant 0 : i32
    return %c0_i32, %c0_i32_0 : i32, i32
  }
  func.func @transform_11(%arg0: i32) -> (i32, i32) {
    %c0_i32 = arith.constant 0 : i32
    %c0_i32_0 = arith.constant 0 : i32
    %c0_i32_1 = arith.constant 0 : i32
    return %c0_i32, %c0_i32_0 : i32, i32
  }
  func.func @transform_12(%arg0: i32) -> (i32, i32) {
    %c0_i32 = arith.constant 0 : i32
    %c0_i32_0 = arith.constant 0 : i32
    %c0_i32_1 = arith.constant 0 : i32
    return %c0_i32, %c0_i32_0 : i32, i32
  }
  func.func @transform_13(%arg0: i32) -> (i32, i32, i32) {
    %c0_i32 = arith.constant 0 : i32
    %c0_i32_0 = arith.constant 0 : i32
    %c0_i32_1 = arith.constant 0 : i32
    return %arg0, %c0_i32, %c0_i32_0 : i32, i32, i32
  }
}

</mosaic_0001>

<llo_original>
// kernel: simssd_forward.1
$region0: #{simssd_forward.1}
  #allocation0 [shape = 'u32[]', space=smem, size = 0x4, offset = 0x4, fixed_abs, tag = 'smem constant byte address 0x4 - core index']
  #allocation1 [shape = 'u32[144,128]{1,0:T(1,128)}', space=vmem, size = 0x12000, scoped, tag = 'internal scratch']
  #allocation2 [shape = 'f32[18,18,32]{2,1,0:T(8,128)}', space=vmem, size = 0x36000, scoped, tag = 'scratch operand']
  #allocation3 [shape = 'f32[64,288]{1,0:T(8,128)}', space=vmem, size = 0x18000, scoped, tag = 'scratch operand']
  %s0 = inlined_call_operand.vmem [shape: f32[2,16,16,3], index: 0, kind: input, shape index: {}]
  %s1 = inlined_call_operand.vmem [shape: f32[27,32], index: 1, kind: input, shape index: {}]
  %s2 = inlined_call_operand.vmem [shape: f32[1,32], index: 2, kind: input, shape index: {}]
  %s3 = inlined_call_operand.vmem [shape: f32[288,32], index: 3, kind: input, shape index: {}]
  %s4 = inlined_call_operand.vmem [shape: f32[1,32], index: 4, kind: input, shape index: {}]
  %s5 = inlined_call_operand.vmem [shape: f32[288,32], index: 5, kind: input, shape index: {}]
  %s6 = inlined_call_operand.vmem [shape: f32[1,32], index: 6, kind: input, shape index: {}]
  %s7 = inlined_call_operand.vmem [shape: f32[288,32], index: 7, kind: input, shape index: {}]
  %s8 = inlined_call_operand.vmem [shape: f32[1,32], index: 8, kind: input, shape index: {}]
  %s9 = inlined_call_operand.vmem [shape: f32[288,32], index: 9, kind: input, shape index: {}]
  %s10 = inlined_call_operand.vmem [shape: f32[1,32], index: 10, kind: input, shape index: {}]
  %s11 = inlined_call_operand.vmem [shape: f32[288,100], index: 11, kind: input, shape index: {}]
  %s12 = inlined_call_operand.vmem [shape: f32[1,100], index: 12, kind: input, shape index: {}]
  %s13 = inlined_call_operand.vmem [shape: f32[2,4,100], index: 13, kind: output, shape index: {}]
  %s14 = sld [smem:[#allocation0]]
  $region85: #{simssd_forward.1} parent=0
    _
  %s16 = ssub.s32 1, %s14
  %s17 = scalar_select 0, %s16, %s14
  loop: start=0, step=1, limit=4
  $region2: #{simssd_forward.1} parent=0 // loop_pre_header
    _
  $region3: #{simssd_forward.1} parent=0 // loop_header
    %s19 = sphi 0, %s23
    %p20 = scmp.ge.s32.totalorder %s19, 4
    %s29 = sphi 0, %s31
    %s32 = sphi 0, %s29
    %s33 = sphi 0, %s32
    %s49 = sphi 0, %s33
    %s53 = sphi 0, %s53
    %s55 = sphi 0, %s53
    %s56 = sphi 0, %s55
    %s70 = sphi 0, %s56
    %s74 = sphi 0, %s74
    %s76 = sphi 0, %s74
    %s77 = sphi 0, %s76
    %s91 = sphi 0, %s77
    %s95 = sphi 0, %s95
    %s97 = sphi 0, %s95
    %s98 = sphi 0, %s97
    %s112 = sphi 0, %s98
    %s116 = sphi 0, %s116
    %s118 = sphi 0, %s116
    %s119 = sphi 0, %s118
    %s133 = sphi 0, %s119
    %s137 = sphi 0, %s137
    %s139 = sphi 0, %s137
    %s140 = sphi 0, %s139
    %s154 = sphi 0, %s140
    %s158 = sphi 0, %s158
    %s160 = sphi 0, %s158
    %s161 = sphi 0, %s160
    %s175 = sphi 0, %s161
    %s179 = sphi 0, %s179
    %s181 = sphi 0, %s179
    %s182 = sphi 0, %s181
    %s196 = sphi 0, %s182
    %s200 = sphi 0, %s200
    %s202 = sphi 0, %s200
    %s203 = sphi 0, %s202
    %s217 = sphi 0, %s203
    %s221 = sphi 0, %s221
    %s223 = sphi 0, %s221
    %s224 = sphi 0, %s223
    %s238 = sphi 0, %s224
    %s242 = sphi 0, %s242
    %s244 = sphi 0, %s242
    %s245 = sphi 0, %s244
    %s259 = sphi 0, %s245
    %s263 = sphi 0, %s263
    %s265 = sphi 0, %s263
    %s266 = sphi 0, %s265
    %s280 = sphi 0, %s266
    %s284 = sphi 0, %s284
    %s286 = sphi 0, %s284
    %s287 = sphi 0, %s286
    %s301 = sphi 0, %s287
    %s307 = sphi 0, %s309
    %s310 = sphi 0, %s307
    %s311 = sphi 0, %s310
    %s327 = sphi 0, %s311
  $region4: #{simssd_forward.1} parent=0 // loop_header_branch
    %22 = sbr.rel (%p20) target = $region8
  $region5: #{simssd_forward.1} parent=0 // loop_body
    %s24 = ssub.s32 %s19, 1
    %s25 = ssub.s32 %s19, 2
    %s26 = sadd.s32 %s19, 1
    %s27 = ssub.s32 %s19, %s26
    %p28 = scmp.eq.s32.totalorder %s27, 0
    %s30 = sadd.s32 %s29, 1
    %s31 = scalar_select %p28, %s29, %s30
    %p34 = pneg %p28
    %p35 = scmp.eq.s32.totalorder %s19, 1
    %p36 = por %p34, %p35
    %p37 = scmp.ne.s32.totalorder %s29, %s32
    %p38 = scmp.eq.s32.totalorder %s19, 0
    %p39 = por %p37, %p38
    %p40 = scmp.ne.s32.totalorder %s29, %s32
    %p41 = scmp.eq.s32.totalorder %s24, 1
    %p42 = por %p40, %p41
    %p43 = scmp.ne.s32.totalorder %s32, %s33
    %p44 = scmp.eq.s32.totalorder %s24, 0
    %p45 = por %p43, %p44
    %p46 = scmp.ne.s32.totalorder %s32, %s33
    %p47 = scmp.eq.s32.totalorder %s25, 1
    %p48 = por %p46, %p47
    %p50 = scmp.ne.s32.totalorder %s33, %s49
    %p51 = scmp.eq.s32.totalorder %s25, 0
    %p52 = por %p50, %p51
    %s54 = sadd.s32 %s53, 1
    %p57 = scmp.eq.s32.totalorder %s19, 1
    %p58 = scmp.ne.s32.totalorder %s53, %s55
    %p59 = scmp.eq.s32.totalorder %s19, 0
    %p60 = por %p58, %p59
    %p61 = scmp.ne.s32.totalorder %s53, %s55
    %p62 = scmp.eq.s32.totalorder %s24, 1
    %p63 = por %p61, %p62
    %p64 = scmp.ne.s32.totalorder %s55, %s56
    %p65 = scmp.eq.s32.totalorder %s24, 0
    %p66 = por %p64, %p65
    %p67 = scmp.ne.s32.totalorder %s55, %s56
    %p68 = scmp.eq.s32.totalorder %s25, 1
    %p69 = por %p67, %p68
    %p71 = scmp.ne.s32.totalorder %s56, %s70
    %p72 = scmp.eq.s32.totalorder %s25, 0
    %p73 = por %p71, %p72
    %s75 = sadd.s32 %s74, 1
    %p78 = scmp.eq.s32.totalorder %s19, 1
    %p79 = scmp.ne.s32.totalorder %s74, %s76
    %p80 = scmp.eq.s32.totalorder %s19, 0
    %p81 = por %p79, %p80
    %p82 = scmp.ne.s32.totalorder %s74, %s76
    %p83 = scmp.eq.s32.totalorder %s24, 1
    %p84 = por %p82, %p83
    %p85 = scmp.ne.s32.totalorder %s76, %s77
    %p86 = scmp.eq.s32.totalorder %s24, 0
    %p87 = por %p85, %p86
    %p88 = scmp.ne.s32.totalorder %s76, %s77
    %p89 = scmp.eq.s32.totalorder %s25, 1
    %p90 = por %p88, %p89
    %p92 = scmp.ne.s32.totalorder %s77, %s91
    %p93 = scmp.eq.s32.totalorder %s25, 0
    %p94 = por %p92, %p93
    %s96 = sadd.s32 %s95, 1
    %p99 = scmp.eq.s32.totalorder %s19, 1
    %p100 = scmp.ne.s32.totalorder %s95, %s97
    %p101 = scmp.eq.s32.totalorder %s19, 0
    %p102 = por %p100, %p101
    %p103 = scmp.ne.s32.totalorder %s95, %s97
    %p104 = scmp.eq.s32.totalorder %s24, 1
    %p105 = por %p103, %p104
    %p106 = scmp.ne.s32.totalorder %s97, %s98
    %p107 = scmp.eq.s32.totalorder %s24, 0
    %p108 = por %p106, %p107
    %p109 = scmp.ne.s32.totalorder %s97, %s98
    %p110 = scmp.eq.s32.totalorder %s25, 1
    %p111 = por %p109, %p110
    %p113 = scmp.ne.s32.totalorder %s98, %s112
    %p114 = scmp.eq.s32.totalorder %s25, 0
    %p115 = por %p113, %p114
    %s117 = sadd.s32 %s116, 1
    %p120 = scmp.eq.s32.totalorder %s19, 1
    %p121 = scmp.ne.s32.totalorder %s116, %s118
    %p122 = scmp.eq.s32.totalorder %s19, 0
    %p123 = por %p121, %p122
    %p124 = scmp.ne.s32.totalorder %s116, %s118
    %p125 = scmp.eq.s32.totalorder %s24, 1
    %p126 = por %p124, %p125
    %p127 = scmp.ne.s32.totalorder %s118, %s119
    %p128 = scmp.eq.s32.totalorder %s24, 0
    %p129 = por %p127, %p128
    %p130 = scmp.ne.s32.totalorder %s118, %s119
    %p131 = scmp.eq.s32.totalorder %s25, 1
    %p132 = por %p130, %p131
    %p134 = scmp.ne.s32.totalorder %s119, %s133
    %p135 = scmp.eq.s32.totalorder %s25, 0
    %p136 = por %p134, %p135
    %s138 = sadd.s32 %s137, 1
    %p141 = scmp.eq.s32.totalorder %s19, 1
    %p142 = scmp.ne.s32.totalorder %s137, %s139
    %p143 = scmp.eq.s32.totalorder %s19, 0
    %p144 = por %p142, %p143
    %p145 = scmp.ne.s32.totalorder %s137, %s139
    %p146 = scmp.eq.s32.totalorder %s24, 1
    %p147 = por %p145, %p146
    %p148 = scmp.ne.s32.totalorder %s139, %s140
    %p149 = scmp.eq.s32.totalorder %s24, 0
    %p150 = por %p148, %p149
    %p151 = scmp.ne.s32.totalorder %s139, %s140
    %p152 = scmp.eq.s32.totalorder %s25, 1
    %p153 = por %p151, %p152
    %p155 = scmp.ne.s32.totalorder %s140, %s154
    %p156 = scmp.eq.s32.totalorder %s25, 0
    %p157 = por %p155, %p156
    %s159 = sadd.s32 %s158, 1
    %p162 = scmp.eq.s32.totalorder %s19, 1
    %p163 = scmp.ne.s32.totalorder %s158, %s160
    %p164 = scmp.eq.s32.totalorder %s19, 0
    %p165 = por %p163, %p164
    %p166 = scmp.ne.s32.totalorder %s158, %s160
    %p167 = scmp.eq.s32.totalorder %s24, 1
    %p168 = por %p166, %p167
    %p169 = scmp.ne.s32.totalorder %s160, %s161
    %p170 = scmp.eq.s32.totalorder %s24, 0
    %p171 = por %p169, %p170
    %p172 = scmp.ne.s32.totalorder %s160, %s161
    %p173 = scmp.eq.s32.totalorder %s25, 1
    %p174 = por %p172, %p173
    %p176 = scmp.ne.s32.totalorder %s161, %s175
    %p177 = scmp.eq.s32.totalorder %s25, 0
    %p178 = por %p176, %p177
    %s180 = sadd.s32 %s179, 1
    %p183 = scmp.eq.s32.totalorder %s19, 1
    %p184 = scmp.ne.s32.totalorder %s179, %s181
    %p185 = scmp.eq.s32.totalorder %s19, 0
    %p186 = por %p184, %p185
    %p187 = scmp.ne.s32.totalorder %s179, %s181
    %p188 = scmp.eq.s32.totalorder %s24, 1
    %p189 = por %p187, %p188
    %p190 = scmp.ne.s32.totalorder %s181, %s182
    %p191 = scmp.eq.s32.totalorder %s24, 0
    %p192 = por %p190, %p191
    %p193 = scmp.ne.s32.totalorder %s181, %s182
    %p194 = scmp.eq.s32.totalorder %s25, 1
    %p195 = por %p193, %p194
    %p197 = scmp.ne.s32.totalorder %s182, %s196
    %p198 = scmp.eq.s32.totalorder %s25, 0
    %p199 = por %p197, %p198
    %s201 = sadd.s32 %s200, 1
    %p204 = scmp.eq.s32.totalorder %s19, 1
    %p205 = scmp.ne.s32.totalorder %s200, %s202
    %p206 = scmp.eq.s32.totalorder %s19, 0
    %p207 = por %p205, %p206
    %p208 = scmp.ne.s32.totalorder %s200, %s202
    %p209 = scmp.eq.s32.totalorder %s24, 1
    %p210 = por %p208, %p209
    %p211 = scmp.ne.s32.totalorder %s202, %s203
    %p212 = scmp.eq.s32.totalorder %s24, 0
    %p213 = por %p211, %p212
    %p214 = scmp.ne.s32.totalorder %s202, %s203
    %p215 = scmp.eq.s32.totalorder %s25, 1
    %p216 = por %p214, %p215
    %p218 = scmp.ne.s32.totalorder %s203, %s217
    %p219 = scmp.eq.s32.totalorder %s25, 0
    %p220 = por %p218, %p219
    %s222 = sadd.s32 %s221, 1
    %p225 = scmp.eq.s32.totalorder %s19, 1
    %p226 = scmp.ne.s32.totalorder %s221, %s223
    %p227 = scmp.eq.s32.totalorder %s19, 0
    %p228 = por %p226, %p227
    %p229 = scmp.ne.s32.totalorder %s221, %s223
    %p230 = scmp.eq.s32.totalorder %s24, 1
    %p231 = por %p229, %p230
    %p232 = scmp.ne.s32.totalorder %s223, %s224
    %p233 = scmp.eq.s32.totalorder %s24, 0
    %p234 = por %p232, %p233
    %p235 = scmp.ne.s32.totalorder %s223, %s224
    %p236 = scmp.eq.s32.totalorder %s25, 1
    %p237 = por %p235, %p236
    %p239 = scmp.ne.s32.totalorder %s224, %s238
    %p240 = scmp.eq.s32.totalorder %s25, 0
    %p241 = por %p239, %p240
    %s243 = sadd.s32 %s242, 1
    %p246 = scmp.eq.s32.totalorder %s19, 1
    %p247 = scmp.ne.s32.totalorder %s242, %s244
    %p248 = scmp.eq.s32.totalorder %s19, 0
    %p249 = por %p247, %p248
    %p250 = scmp.ne.s32.totalorder %s242, %s244
    %p251 = scmp.eq.s32.totalorder %s24, 1
    %p252 = por %p250, %p251
    %p253 = scmp.ne.s32.totalorder %s244, %s245
    %p254 = scmp.eq.s32.totalorder %s24, 0
    %p255 = por %p253, %p254
    %p256 = scmp.ne.s32.totalorder %s244, %s245
    %p257 = scmp.eq.s32.totalorder %s25, 1
    %p258 = por %p256, %p257
    %p260 = scmp.ne.s32.totalorder %s245, %s259
    %p261 = scmp.eq.s32.totalorder %s25, 0
    %p262 = por %p260, %p261
    %s264 = sadd.s32 %s263, 1
    %p267 = scmp.eq.s32.totalorder %s19, 1
    %p268 = scmp.ne.s32.totalorder %s263, %s265
    %p269 = scmp.eq.s32.totalorder %s19, 0
    %p270 = por %p268, %p269
    %p271 = scmp.ne.s32.totalorder %s263, %s265
    %p272 = scmp.eq.s32.totalorder %s24, 1
    %p273 = por %p271, %p272
    %p274 = scmp.ne.s32.totalorder %s265, %s266
    %p275 = scmp.eq.s32.totalorder %s24, 0
    %p276 = por %p274, %p275
    %p277 = scmp.ne.s32.totalorder %s265, %s266
    %p278 = scmp.eq.s32.totalorder %s25, 1
    %p279 = por %p277, %p278
    %p281 = scmp.ne.s32.totalorder %s266, %s280
    %p282 = scmp.eq.s32.totalorder %s25, 0
    %p283 = por %p281, %p282
    %s285 = sadd.s32 %s284, 1
    %p288 = scmp.eq.s32.totalorder %s19, 1
    %p289 = scmp.ne.s32.totalorder %s284, %s286
    %p290 = scmp.eq.s32.totalorder %s19, 0
    %p291 = por %p289, %p290
    %p292 = scmp.ne.s32.totalorder %s284, %s286
    %p293 = scmp.eq.s32.totalorder %s24, 1
    %p294 = por %p292, %p293
    %p295 = scmp.ne.s32.totalorder %s286, %s287
    %p296 = scmp.eq.s32.totalorder %s24, 0
    %p297 = por %p295, %p296
    %p298 = scmp.ne.s32.totalorder %s286, %s287
    %p299 = scmp.eq.s32.totalorder %s25, 1
    %p300 = por %p298, %p299
    %p302 = scmp.ne.s32.totalorder %s287, %s301
    %p303 = scmp.eq.s32.totalorder %s25, 0
    %p304 = por %p302, %p303
    %s305 = ssub.s32 %s19, %s26
    %p306 = scmp.eq.s32.totalorder %s305, 0
    %s308 = sadd.s32 %s307, 1
    %s309 = scalar_select %p306, %s307, %s308
    %p312 = pneg %p306
    %p313 = scmp.eq.s32.totalorder %s19, 1
    %p314 = por %p312, %p313
    %p315 = scmp.ne.s32.totalorder %s307, %s310
    %p316 = scmp.eq.s32.totalorder %s19, 0
    %p317 = por %p315, %p316
    %p318 = scmp.ne.s32.totalorder %s307, %s310
    %p319 = scmp.eq.s32.totalorder %s24, 1
    %p320 = por %p318, %p319
    %p321 = scmp.ne.s32.totalorder %s310, %s311
    %p322 = scmp.eq.s32.totalorder %s24, 0
    %p323 = por %p321, %p322
    %p324 = scmp.ne.s32.totalorder %s310, %s311
    %p325 = scmp.eq.s32.totalorder %s25, 1
    %p326 = por %p324, %p325
    %p328 = scmp.ne.s32.totalorder %s311, %s327
    %p329 = scmp.eq.s32.totalorder %s25, 0
    %p330 = por %p328, %p329
    %p331 = scmp.le.s32.totalorder 1, %s19
    %p332 = scmp.lt.s32.totalorder %s19, 3
    %p333 = pnand %p331, %p332
    %p334 = pneg %p333
    // Predicated region
    $region9: #{simssd_forward.1} parent=5 // pred_check
      _
    $region10: #{simssd_forward.1} parent=5 // pred_check_branch
      %336 = sbr.rel (%p333) target = $region12
    $region11: #{simssd_forward.1} parent=5 // pred_region
      %s337 = ssub.s32 %s19, 1
      // Predicated region
      $region13: #{simssd_forward.1} parent=11 // pred_check
        %p338 = pneg %p66
      $region14: #{simssd_forward.1} parent=11 // pred_check_branch
        %340 = sbr.rel (%p338) target = $region16
      $region15: #{simssd_forward.1} parent=11 // pred_region
        _
      $region16: #{simssd_forward.1} parent=11 // pred_fallthru
        _
      // Predicated region
      $region17: #{simssd_forward.1} parent=11 // pred_check
        %p341 = pneg %p87
      $region18: #{simssd_forward.1} parent=11 // pred_check_branch
        %343 = sbr.rel (%p341) target = $region20
      $region19: #{simssd_forward.1} parent=11 // pred_region
        _
      $region20: #{simssd_forward.1} parent=11 // pred_fallthru
        _
      // Predicated region
      $region21: #{simssd_forward.1} parent=11 // pred_check
        %p344 = pneg %p108
      $region22: #{simssd_forward.1} parent=11 // pred_check_branch
        %346 = sbr.rel (%p344) target = $region24
      $region23: #{simssd_forward.1} parent=11 // pred_region
        _
      $region24: #{simssd_forward.1} parent=11 // pred_fallthru
        _
      // Predicated region
      $region25: #{simssd_forward.1} parent=11 // pred_check
        %p347 = pneg %p129
      $region26: #{simssd_forward.1} parent=11 // pred_check_branch
        %349 = sbr.rel (%p347) target = $region28
      $region27: #{simssd_forward.1} parent=11 // pred_region
        _
      $region28: #{simssd_forward.1} parent=11 // pred_fallthru
        _
      // Predicated region
      $region29: #{simssd_forward.1} parent=11 // pred_check
        %p350 = pneg %p150
      $region30: #{simssd_forward.1} parent=11 // pred_check_branch
        %352 = sbr.rel (%p350) target = $region32
      $region31: #{simssd_forward.1} parent=11 // pred_region
        _
      $region32: #{simssd_forward.1} parent=11 // pred_fallthru
        _
      // Predicated region
      $region33: #{simssd_forward.1} parent=11 // pred_check
        %p353 = pneg %p171
      $region34: #{simssd_forward.1} parent=11 // pred_check_branch
        %355 = sbr.rel (%p353) target = $region36
      $region35: #{simssd_forward.1} parent=11 // pred_region
        _
      $region36: #{simssd_forward.1} parent=11 // pred_fallthru
        _
      // Predicated region
      $region37: #{simssd_forward.1} parent=11 // pred_check
        %p356 = pneg %p192
      $region38: #{simssd_forward.1} parent=11 // pred_check_branch
        %358 = sbr.rel (%p356) target = $region40
      $region39: #{simssd_forward.1} parent=11 // pred_region
        _
      $region40: #{simssd_forward.1} parent=11 // pred_fallthru
        _
      // Predicated region
      $region41: #{simssd_forward.1} parent=11 // pred_check
        %p359 = pneg %p213
      $region42: #{simssd_forward.1} parent=11 // pred_check_branch
        %361 = sbr.rel (%p359) target = $region44
      $region43: #{simssd_forward.1} parent=11 // pred_region
        _
      $region44: #{simssd_forward.1} parent=11 // pred_fallthru
        _
      // Predicated region
      $region45: #{simssd_forward.1} parent=11 // pred_check
        %p362 = pneg %p234
      $region46: #{simssd_forward.1} parent=11 // pred_check_branch
        %364 = sbr.rel (%p362) target = $region48
      $region47: #{simssd_forward.1} parent=11 // pred_region
        _
      $region48: #{simssd_forward.1} parent=11 // pred_fallthru
        _
      // Predicated region
      $region49: #{simssd_forward.1} parent=11 // pred_check
        %p365 = pneg %p255
      $region50: #{simssd_forward.1} parent=11 // pred_check_branch
        %367 = sbr.rel (%p365) target = $region52
      $region51: #{simssd_forward.1} parent=11 // pred_region
        _
      $region52: #{simssd_forward.1} parent=11 // pred_fallthru
        _
      // Predicated region
      $region53: #{simssd_forward.1} parent=11 // pred_check
        %p368 = pneg %p276
      $region54: #{simssd_forward.1} parent=11 // pred_check_branch
        %370 = sbr.rel (%p368) target = $region56
      $region55: #{simssd_forward.1} parent=11 // pred_region
        _
      $region56: #{simssd_forward.1} parent=11 // pred_fallthru
        _
      // Predicated region
      $region57: #{simssd_forward.1} parent=11 // pred_check
        %p371 = pneg %p297
      $region58: #{simssd_forward.1} parent=11 // pred_check_branch
        %373 = sbr.rel (%p371) target = $region60
      $region59: #{simssd_forward.1} parent=11 // pred_region
        _
      $region60: #{simssd_forward.1} parent=11 // pred_fallthru
        _
    $region12: #{simssd_forward.1} parent=5 // pred_fallthru
      _
    %p374 = scmp.lt.s32.totalorder %s19, 2
    // Predicated region
    $region61: #{simssd_forward.1} parent=5 // pred_check
      %p375 = pneg %p374
    $region62: #{simssd_forward.1} parent=5 // pred_check_branch
      %377 = sbr.rel (%p375) target = $region64
    $region63: #{simssd_forward.1} parent=5 // pred_region
      // Predicated region
      $region65: #{simssd_forward.1} parent=63 // pred_check
        %p378 = pneg %p39
      $region66: #{simssd_forward.1} parent=63 // pred_check_branch
        %380 = sbr.rel (%p378) target = $region68
      $region67: #{simssd_forward.1} parent=63 // pred_region
        %p381 = scmp.lt.s32.totalorder %s19, 1
        %s382 = scalar_select %p381, %s19, 1
        %s383 = smul.addr %s382, 32
        %s384 = smul.addr %s383, 8
        %s385 = scalar_lea.vmem %s0, %s384
      $region68: #{simssd_forward.1} parent=63 // pred_fallthru
        _
    $region64: #{simssd_forward.1} parent=5 // pred_fallthru
      _
    %p386 = scmp.le.s32.totalorder 1, %s19
    %p387 = scmp.lt.s32.totalorder %s19, 3
    %p388 = pnand %p386, %p387
    %p389 = pneg %p388
    // Predicated region
    $region69: #{simssd_forward.1} parent=5 // pred_check
      _
    $region70: #{simssd_forward.1} parent=5 // pred_check_branch
      %391 = sbr.rel (%p388) target = $region72
    $region71: #{simssd_forward.1} parent=5 // pred_region
      %s392 = ssub.s32 %s19, 1
      %p393 = scmp.lt.s32.totalorder %s24, 1
      %s394 = scalar_select %p393, %s24, 1
      %s395 = smul.addr %s394, 32
      %s396 = smul.addr %s395, 8
      %s397 = scalar_lea.vmem %s0, %s396
      %p398 = pneg %p45
      %p399 = pneg %p42
      %p400 = pneg %p66
      %p401 = pneg %p63
      %p402 = pneg %p87
      %p403 = pneg %p84
      %p404 = pneg %p108
      %p405 = pneg %p105
      %p406 = pneg %p129
      %p407 = pneg %p126
      %p408 = pneg %p150
      %p409 = pneg %p147
      %p410 = pneg %p171
      %p411 = pneg %p168
      %p412 = pneg %p192
      %p413 = pneg %p189
      %p414 = pneg %p213
      %p415 = pneg %p210
      %p416 = pneg %p234
      %p417 = pneg %p231
      %p418 = pneg %p255
      %p419 = pneg %p252
      %p420 = pneg %p276
      %p421 = pneg %p273
      %p422 = pneg %p297
      %p423 = pneg %p294
      %p424 = pneg %p323
      %p425 = pneg %p320
      %p426 = scmp.lt.s32.totalorder %s24, 1
      %s427 = scalar_select %p426, %s24, 1
      %s428 = smul.addr %s427, 4
      %s429 = scalar_lea.vmem %s13, %s428
      %p430 = scmp.lt.s32.totalorder %s24, 1
      %s431 = scalar_select %p430, %s24, 1
      %s432 = smul.addr %s431, 32
      %s433 = smul.addr %s432, 8
      %s434 = scalar_lea.vmem %s0, %s433
      %p435 = scmp.lt.s32.totalorder %s24, 1
      %s436 = scalar_select %p435, %s24, 1
      %s437 = smul.addr %s436, 4
      %s438 = scalar_lea.vmem %s13, %s437
      %v439 = vld [vmem:[%s434] sm:$0xff]
      %v440 = vld [vmem:[%s434 + $0x8] sm:$0xff]
      %v441 = vld [vmem:[%s434 + $0x10] sm:$0xff]
      %v442 = vld [vmem:[%s434 + $0x18] sm:$0xff]
      %v443 = vld [vmem:[%s434 + $0x20] sm:$0xff]
      %v444 = vld [vmem:[%s434 + $0x28] sm:$0xff]
      %v445 = vld [vmem:[%s434 + $0x30] sm:$0xff]
      %v446 = vld [vmem:[%s434 + $0x38] sm:$0xff]
      %v447 = vld [vmem:[%s434 + $0x40] sm:$0xff]
      %v448 = vld [vmem:[%s434 + $0x48] sm:$0xff]
      %v449 = vld [vmem:[%s434 + $0x50] sm:$0xff]
      %v450 = vld [vmem:[%s434 + $0x58] sm:$0xff]
      %v451 = vld [vmem:[%s434 + $0x60] sm:$0xff]
      %v452 = vld [vmem:[%s434 + $0x68] sm:$0xff]
      %v453 = vld [vmem:[%s434 + $0x70] sm:$0xff]
      %v454 = vld [vmem:[%s434 + $0x78] sm:$0xff]
      %v455 = vld [vmem:[%s434 + $0x80] sm:$0xff]
      %v456 = vld [vmem:[%s434 + $0x88] sm:$0xff]
      %v457 = vld [vmem:[%s434 + $0x90] sm:$0xff]
      %v458 = vld [vmem:[%s434 + $0x98] sm:$0xff]
      %v459 = vld [vmem:[%s434 + $0xa0] sm:$0xff]
      %v460 = vld [vmem:[%s434 + $0xa8] sm:$0xff]
      %v461 = vld [vmem:[%s434 + $0xb0] sm:$0xff]
      %v462 = vld [vmem:[%s434 + $0xb8] sm:$0xff]
      %v463 = vld [vmem:[%s434 + $0xc0] sm:$0xff]
      %v464 = vld [vmem:[%s434 + $0xc8] sm:$0xff]
      %v465 = vld [vmem:[%s434 + $0xd0] sm:$0xff]
      %v466 = vld [vmem:[%s434 + $0xd8] sm:$0xff]
      %v467 = vld [vmem:[%s434 + $0xe0] sm:$0xff]
      %v468 = vld [vmem:[%s434 + $0xe8] sm:$0xff]
      %v469 = vld [vmem:[%s434 + $0xf0] sm:$0xff]
      %v470 = vld [vmem:[%s434 + $0xf8] sm:$0xff]
      %vm471 = vcmask 23552
      %472 = vst.msk [vmem:[#allocation2] sm:$0xff] %vm471, 0.0
      %473 = vst.msk [vmem:[#allocation2 + $0x8] sm:$0xff] %vm471, 0.0
      %vm474 = vcmask 17408
      %475 = vst.msk [vmem:[#allocation2 + $0x10] sm:$0x3] %vm474, 0.0
      %476 = vst.msk [vmem:[#allocation2 + $0x18] sm:$0xff] %vm471, 0.0
      %477 = vst.msk [vmem:[#allocation2 + $0x20] sm:$0xff] %vm471, 0.0
      %478 = vst.msk [vmem:[#allocation2 + $0x28] sm:$0x3] %vm474, 0.0
      %479 = vst.msk [vmem:[#allocation2 + $0x30] sm:$0xff] %vm471, 0.0
      %480 = vst.msk [vmem:[#allocation2 + $0x38] sm:$0xff] %vm471, 0.0
      %481 = vst.msk [vmem:[#allocation2 + $0x40] sm:$0x3] %vm474, 0.0
      %482 = vst.msk [vmem:[#allocation2 + $0x48] sm:$0xff] %vm471, 0.0
      %483 = vst.msk [vmem:[#allocation2 + $0x50] sm:$0xff] %vm471, 0.0
      %484 = vst.msk [vmem:[#allocation2 + $0x58] sm:$0x3] %vm474, 0.0
      %485 = vst.msk [vmem:[#allocation2 + $0x60] sm:$0xff] %vm471, 0.0
      %486 = vst.msk [vmem:[#allocation2 + $0x68] sm:$0xff] %vm471, 0.0
      %487 = vst.msk [vmem:[#allocation2 + $0x70] sm:$0x3] %vm474, 0.0
      %488 = vst.msk [vmem:[#allocation2 + $0x78] sm:$0xff] %vm471, 0.0
      %489 = vst.msk [vmem:[#allocation2 + $0x80] sm:$0xff] %vm471, 0.0
      %490 = vst.msk [vmem:[#allocation2 + $0x88] sm:$0x3] %vm474, 0.0
      %491 = vst.msk [vmem:[#allocation2 + $0x90] sm:$0xff] %vm471, 0.0
      %492 = vst.msk [vmem:[#allocation2 + $0x98] sm:$0xff] %vm471, 0.0
      %493 = vst.msk [vmem:[#allocation2 + $0xa0] sm:$0x3] %vm474, 0.0
      %494 = vst.msk [vmem:[#allocation2 + $0xa8] sm:$0xff] %vm471, 0.0
      %495 = vst.msk [vmem:[#allocation2 + $0xb0] sm:$0xff] %vm471, 0.0
      %496 = vst.msk [vmem:[#allocation2 + $0xb8] sm:$0x3] %vm474, 0.0
      %497 = vst.msk [vmem:[#allocation2 + $0xc0] sm:$0xff] %vm471, 0.0
      %498 = vst.msk [vmem:[#allocation2 + $0xc8] sm:$0xff] %vm471, 0.0
      %499 = vst.msk [vmem:[#allocation2 + $0xd0] sm:$0x3] %vm474, 0.0
      %500 = vst.msk [vmem:[#allocation2 + $0xd8] sm:$0xff] %vm471, 0.0
      %501 = vst.msk [vmem:[#allocation2 + $0xe0] sm:$0xff] %vm471, 0.0
      %502 = vst.msk [vmem:[#allocation2 + $0xe8] sm:$0x3] %vm474, 0.0
      %503 = vst.msk [vmem:[#allocation2 + $0xf0] sm:$0xff] %vm471, 0.0
      %504 = vst.msk [vmem:[#allocation2 + $0xf8] sm:$0xff] %vm471, 0.0
      %505 = vst.msk [vmem:[#allocation2 + $0x100] sm:$0x3] %vm474, 0.0
      %506 = vst.msk [vmem:[#allocation2 + $0x108] sm:$0xff] %vm471, 0.0
      %507 = vst.msk [vmem:[#allocation2 + $0x110] sm:$0xff] %vm471, 0.0
      %508 = vst.msk [vmem:[#allocation2 + $0x118] sm:$0x3] %vm474, 0.0
      %509 = vst.msk [vmem:[#allocation2 + $0x120] sm:$0xff] %vm471, 0.0
      %510 = vst.msk [vmem:[#allocation2 + $0x128] sm:$0xff] %vm471, 0.0
      %511 = vst.msk [vmem:[#allocation2 + $0x130] sm:$0x3] %vm474, 0.0
      %512 = vst.msk [vmem:[#allocation2 + $0x138] sm:$0xff] %vm471, 0.0
      %513 = vst.msk [vmem:[#allocation2 + $0x140] sm:$0xff] %vm471, 0.0
      %514 = vst.msk [vmem:[#allocation2 + $0x148] sm:$0x3] %vm474, 0.0
      %515 = vst.msk [vmem:[#allocation2 + $0x150] sm:$0xff] %vm471, 0.0
      %516 = vst.msk [vmem:[#allocation2 + $0x158] sm:$0xff] %vm471, 0.0
      %517 = vst.msk [vmem:[#allocation2 + $0x160] sm:$0x3] %vm474, 0.0
      %518 = vst.msk [vmem:[#allocation2 + $0x168] sm:$0xff] %vm471, 0.0
      %519 = vst.msk [vmem:[#allocation2 + $0x170] sm:$0xff] %vm471, 0.0
      %520 = vst.msk [vmem:[#allocation2 + $0x178] sm:$0x3] %vm474, 0.0
      %521 = vst.msk [vmem:[#allocation2 + $0x180] sm:$0xff] %vm471, 0.0
      %522 = vst.msk [vmem:[#allocation2 + $0x188] sm:$0xff] %vm471, 0.0
      %523 = vst.msk [vmem:[#allocation2 + $0x190] sm:$0x3] %vm474, 0.0
      %524 = vst.msk [vmem:[#allocation2 + $0x198] sm:$0xff] %vm471, 0.0
      %525 = vst.msk [vmem:[#allocation2 + $0x1a0] sm:$0xff] %vm471, 0.0
      %526 = vst.msk [vmem:[#allocation2 + $0x1a8] sm:$0x3] %vm474, 0.0
      %s527 = scalar_lea.vmem [#allocation2], 24
      %528 = vst.msk [vmem:[%s527 + $0x1] sm:$0xff] %vm471, %v439
      %529 = vst.msk [vmem:[%s527 + $0x9] sm:$0xff] %vm471, %v440
      %530 = vst.msk [vmem:[%s527 + $0x19] sm:$0xff] %vm471, %v441
      %531 = vst.msk [vmem:[%s527 + $0x21] sm:$0xff] %vm471, %v442
      %532 = vst.msk [vmem:[%s527 + $0x31] sm:$0xff] %vm471, %v443
      %533 = vst.msk [vmem:[%s527 + $0x39] sm:$0xff] %vm471, %v444
      %534 = vst.msk [vmem:[%s527 + $0x49] sm:$0xff] %vm471, %v445
      %535 = vst.msk [vmem:[%s527 + $0x51] sm:$0xff] %vm471, %v446
      %536 = vst.msk [vmem:[%s527 + $0x61] sm:$0xff] %vm471, %v447
      %537 = vst.msk [vmem:[%s527 + $0x69] sm:$0xff] %vm471, %v448
      %538 = vst.msk [vmem:[%s527 + $0x79] sm:$0xff] %vm471, %v449
      %539 = vst.msk [vmem:[%s527 + $0x81] sm:$0xff] %vm471, %v450
      %540 = vst.msk [vmem:[%s527 + $0x91] sm:$0xff] %vm471, %v451
      %541 = vst.msk [vmem:[%s527 + $0x99] sm:$0xff] %vm471, %v452
      %542 = vst.msk [vmem:[%s527 + $0xa9] sm:$0xff] %vm471, %v453
      %543 = vst.msk [vmem:[%s527 + $0xb1] sm:$0xff] %vm471, %v454
      %544 = vst.msk [vmem:[%s527 + $0xc1] sm:$0xff] %vm471, %v455
      %545 = vst.msk [vmem:[%s527 + $0xc9] sm:$0xff] %vm471, %v456
      %546 = vst.msk [vmem:[%s527 + $0xd9] sm:$0xff] %vm471, %v457
      %547 = vst.msk [vmem:[%s527 + $0xe1] sm:$0xff] %vm471, %v458
      %548 = vst.msk [vmem:[%s527 + $0xf1] sm:$0xff] %vm471, %v459
      %549 = vst.msk [vmem:[%s527 + $0xf9] sm:$0xff] %vm471, %v460
      %550 = vst.msk [vmem:[%s527 + $0x109] sm:$0xff] %vm471, %v461
      %551 = vst.msk [vmem:[%s527 + $0x111] sm:$0xff] %vm471, %v462
      %552 = vst.msk [vmem:[%s527 + $0x121] sm:$0xff] %vm471, %v463
      %553 = vst.msk [vmem:[%s527 + $0x129] sm:$0xff] %vm471, %v464
      %554 = vst.msk [vmem:[%s527 + $0x139] sm:$0xff] %vm471, %v465
      %555 = vst.msk [vmem:[%s527 + $0x141] sm:$0xff] %vm471, %v466
      %556 = vst.msk [vmem:[%s527 + $0x151] sm:$0xff] %vm471, %v467
      %557 = vst.msk [vmem:[%s527 + $0x159] sm:$0xff] %vm471, %v468
      %558 = vst.msk [vmem:[%s527 + $0x169] sm:$0xff] %vm471, %v469
      %559 = vst.msk [vmem:[%s527 + $0x171] sm:$0xff] %vm471, %v470
      %v560 = vld [vmem:[#allocation2] ss:$2 sm:$0xff]
      %s561 = scalar_lea.vmem [#allocation2], 48
      %v562 = vld [vmem:[%s561] ss:$2 sm:$0xff]
      %s563 = scalar_lea.vmem [#allocation2], 96
      %v564 = vld [vmem:[%s563] ss:$2 sm:$0xff]
      %s565 = scalar_lea.vmem [#allocation2], 144
      %v566 = vld [vmem:[%s565] ss:$2 sm:$0xff]
      %s567 = scalar_lea.vmem [#allocation2], 192
      %v568 = vld [vmem:[%s567] ss:$2 sm:$0xff]
      %s569 = scalar_lea.vmem [#allocation2], 240
      %v570 = vld [vmem:[%s569] ss:$2 sm:$0xff]
      %s571 = scalar_lea.vmem [#allocation2], 288
      %v572 = vld [vmem:[%s571] ss:$2 sm:$0xff]
      %s573 = scalar_lea.vmem [#allocation2], 336
      %v574 = vld [vmem:[%s573] ss:$2 sm:$0xff]
      %575 = vst.msk [vmem:[#allocation3] sm:$0xff] %vm471, %v560
      %576 = vst.msk [vmem:[#allocation3 + $0x18] sm:$0xff] %vm471, %v562
      %577 = vst.msk [vmem:[#allocation3 + $0x30] sm:$0xff] %vm471, %v564
      %578 = vst.msk [vmem:[#allocation3 + $0x48] sm:$0xff] %vm471, %v566
      %579 = vst.msk [vmem:[#allocation3 + $0x60] sm:$0xff] %vm471, %v568
      %580 = vst.msk [vmem:[#allocation3 + $0x78] sm:$0xff] %vm471, %v570
      %581 = vst.msk [vmem:[#allocation3 + $0x90] sm:$0xff] %vm471, %v572
      %582 = vst.msk [vmem:[#allocation3 + $0xa8] sm:$0xff] %vm471, %v574
      %s583 = scalar_lea.vmem [#allocation2], 1
      %v584 = vld [vmem:[%s583] ss:$2 sm:$0xff]
      %s585 = scalar_lea.vmem [#allocation2], 49
      %v586 = vld [vmem:[%s585] ss:$2 sm:$0xff]
      %s587 = scalar_lea.vmem [#allocation2], 97
      %v588 = vld [vmem:[%s587] ss:$2 sm:$0xff]
      %s589 = scalar_lea.vmem [#allocation2], 145
      %v590 = vld [vmem:[%s589] ss:$2 sm:$0xff]
      %s591 = scalar_lea.vmem [#allocation2], 193
      %v592 = vld [vmem:[%s591] ss:$2 sm:$0xff]
      %s593 = scalar_lea.vmem [#allocation2], 241
      %v594 = vld [vmem:[%s593] ss:$2 sm:$0xff]
      %s595 = scalar_lea.vmem [#allocation2], 289
      %v596 = vld [vmem:[%s595] ss:$2 sm:$0xff]
      %s597 = scalar_lea.vmem [#allocation2], 337
      %v598 = vld [vmem:[%s597] ss:$2 sm:$0xff]
      %607 = vrot.lane.b32.xlu0 %v584, 3
      %v608 = vpop.permute.xlu0 %607
      %609 = vrot.lane.b32.xlu0 %v586, 3
      %v610 = vpop.permute.xlu0 %609
      %611 = vrot.lane.b32.xlu0 %v588, 3
      %v612 = vpop.permute.xlu0 %611
      %613 = vrot.lane.b32.xlu0 %v590, 3
      %v614 = vpop.permute.xlu0 %613
      %615 = vrot.lane.b32.xlu0 %v592, 3
      %v616 = vpop.permute.xlu0 %615
      %617 = vrot.lane.b32.xlu0 %v594, 3
      %v618 = vpop.permute.xlu0 %617
      %619 = vrot.lane.b32.xlu0 %v596, 3
      %v620 = vpop.permute.xlu0 %619
      %621 = vrot.lane.b32.xlu0 %v598, 3
      %v622 = vpop.permute.xlu0 %621
      %vm631 = vcmask 48152
      %632 = vst.msk [vmem:[#allocation3] sm:$0xff] %vm631, %v608
      %633 = vst.msk [vmem:[#allocation3 + $0x18] sm:$0xff] %vm631, %v610
      %634 = vst.msk [vmem:[#allocation3 + $0x30] sm:$0xff] %vm631, %v612
      %635 = vst.msk [vmem:[#allocation3 + $0x48] sm:$0xff] %vm631, %v614
      %636 = vst.msk [vmem:[#allocation3 + $0x60] sm:$0xff] %vm631, %v616
      %637 = vst.msk [vmem:[#allocation3 + $0x78] sm:$0xff] %vm631, %v618
      %638 = vst.msk [vmem:[#allocation3 + $0x90] sm:$0xff] %vm631, %v620
      %639 = vst.msk [vmem:[#allocation3 + $0xa8] sm:$0xff] %vm631, %v622
      %s640 = scalar_lea.vmem [#allocation2], 2
      %v641 = vld [vmem:[%s640] ss:$2 sm:$0xff]
      %s642 = scalar_lea.vmem [#allocation2], 50
      %v643 = vld [vmem:[%s642] ss:$2 sm:$0xff]
      %s644 = scalar_lea.vmem [#allocation2], 98
      %v645 = vld [vmem:[%s644] ss:$2 sm:$0xff]
      %s646 = scalar_lea.vmem [#allocation2], 146
      %v647 = vld [vmem:[%s646] ss:$2 sm:$0xff]
      %s648 = scalar_lea.vmem [#allocation2], 194
      %v649 = vld [vmem:[%s648] ss:$2 sm:$0xff]
      %s650 = scalar_lea.vmem [#allocation2], 242
      %v651 = vld [vmem:[%s650] ss:$2 sm:$0xff]
      %s652 = scalar_lea.vmem [#allocation2], 290
      %v653 = vld [vmem:[%s652] ss:$2 sm:$0xff]
      %s654 = scalar_lea.vmem [#allocation2], 338
      %v655 = vld [vmem:[%s654] ss:$2 sm:$0xff]
      %664 = vrot.lane.b32.xlu0 %v641, 6
      %v665 = vpop.permute.xlu0 %664
      %666 = vrot.lane.b32.xlu0 %v643, 6
      %v667 = vpop.permute.xlu0 %666
      %668 = vrot.lane.b32.xlu0 %v645, 6
      %v669 = vpop.permute.xlu0 %668
      %670 = vrot.lane.b32.xlu0 %v647, 6
      %v671 = vpop.permute.xlu0 %670
      %672 = vrot.lane.b32.xlu0 %v649, 6
      %v673 = vpop.permute.xlu0 %672
      %674 = vrot.lane.b32.xlu0 %v651, 6
      %v675 = vpop.permute.xlu0 %674
      %676 = vrot.lane.b32.xlu0 %v653, 6
      %v677 = vpop.permute.xlu0 %676
      %678 = vrot.lane.b32.xlu0 %v655, 6
      %v679 = vpop.permute.xlu0 %678
      %vm688 = vcmask 72752
      %689 = vst.msk [vmem:[#allocation3] sm:$0xff] %vm688, %v665
      %690 = vst.msk [vmem:[#allocation3 + $0x18] sm:$0xff] %vm688, %v667
      %691 = vst.msk [vmem:[#allocation3 + $0x30] sm:$0xff] %vm688, %v669
      %692 = vst.msk [vmem:[#allocation3 + $0x48] sm:$0xff] %vm688, %v671
      %693 = vst.msk [vmem:[#allocation3 + $0x60] sm:$0xff] %vm688, %v673
      %694 = vst.msk [vmem:[#allocation3 + $0x78] sm:$0xff] %vm688, %v675
      %695 = vst.msk [vmem:[#allocation3 + $0x90] sm:$0xff] %vm688, %v677
      %696 = vst.msk [vmem:[#allocation3 + $0xa8] sm:$0xff] %vm688, %v679
      %v697 = vld [vmem:[%s527] ss:$2 sm:$0xff]
      %s698 = scalar_lea.vmem %s527, 48 [#allocation2]
      %v699 = vld [vmem:[%s698] ss:$2 sm:$0xff]
      %s700 = scalar_lea.vmem %s527, 96 [#allocation2]
      %v701 = vld [vmem:[%s700] ss:$2 sm:$0xff]
      %s702 = scalar_lea.vmem %s527, 144 [#allocation2]
      %v703 = vld [vmem:[%s702] ss:$2 sm:$0xff]
      %s704 = scalar_lea.vmem %s527, 192 [#allocation2]
      %v705 = vld [vmem:[%s704] ss:$2 sm:$0xff]
      %s706 = scalar_lea.vmem %s527, 240 [#allocation2]
      %v707 = vld [vmem:[%s706] ss:$2 sm:$0xff]
      %s708 = scalar_lea.vmem %s527, 288 [#allocation2]
      %v709 = vld [vmem:[%s708] ss:$2 sm:$0xff]
      %s710 = scalar_lea.vmem %s527, 336 [#allocation2]
      %v711 = vld [vmem:[%s710] ss:$2 sm:$0xff]
      %720 = vrot.lane.b32.xlu0 %v697, 9
      %v721 = vpop.permute.xlu0 %720
      %722 = vrot.lane.b32.xlu0 %v699, 9
      %v723 = vpop.permute.xlu0 %722
      %724 = vrot.lane.b32.xlu0 %v701, 9
      %v725 = vpop.permute.xlu0 %724
      %726 = vrot.lane.b32.xlu0 %v703, 9
      %v727 = vpop.permute.xlu0 %726
      %728 = vrot.lane.b32.xlu0 %v705, 9
      %v729 = vpop.permute.xlu0 %728
      %730 = vrot.lane.b32.xlu0 %v707, 9
      %v731 = vpop.permute.xlu0 %730
      %732 = vrot.lane.b32.xlu0 %v709, 9
      %v733 = vpop.permute.xlu0 %732
      %734 = vrot.lane.b32.xlu0 %v711, 9
      %v735 = vpop.permute.xlu0 %734
      %vm744 = vcmask 97352
      %745 = vst.msk [vmem:[#allocation3] sm:$0xff] %vm744, %v721
      %746 = vst.msk [vmem:[#allocation3 + $0x18] sm:$0xff] %vm744, %v723
      %747 = vst.msk [vmem:[#allocation3 + $0x30] sm:$0xff] %vm744, %v725
      %748 = vst.msk [vmem:[#allocation3 + $0x48] sm:$0xff] %vm744, %v727
      %749 = vst.msk [vmem:[#allocation3 + $0x60] sm:$0xff] %vm744, %v729
      %750 = vst.msk [vmem:[#allocation3 + $0x78] sm:$0xff] %vm744, %v731
      %751 = vst.msk [vmem:[#allocation3 + $0x90] sm:$0xff] %vm744, %v733
      %752 = vst.msk [vmem:[#allocation3 + $0xa8] sm:$0xff] %vm744, %v735
      %s753 = scalar_lea.vmem %s527, 1 [#allocation2]
      %v754 = vld [vmem:[%s753] ss:$2 sm:$0xff]
      %s755 = scalar_lea.vmem %s527, 49 [#allocation2]
      %v756 = vld [vmem:[%s755] ss:$2 sm:$0xff]
      %s757 = scalar_lea.vmem %s527, 97 [#allocation2]
      %v758 = vld [vmem:[%s757] ss:$2 sm:$0xff]
      %s759 = scalar_lea.vmem %s527, 145 [#allocation2]
      %v760 = vld [vmem:[%s759] ss:$2 sm:$0xff]
      %s761 = scalar_lea.vmem %s527, 193 [#allocation2]
      %v762 = vld [vmem:[%s761] ss:$2 sm:$0xff]
      %s763 = scalar_lea.vmem %s527, 241 [#allocation2]
      %v764 = vld [vmem:[%s763] ss:$2 sm:$0xff]
      %s765 = scalar_lea.vmem %s527, 289 [#allocation2]
      %v766 = vld [vmem:[%s765] ss:$2 sm:$0xff]
      %s767 = scalar_lea.vmem %s527, 337 [#allocation2]
      %v768 = vld [vmem:[%s767] ss:$2 sm:$0xff]
      %777 = vrot.lane.b32.xlu0 %v754, 12
      %v778 = vpop.permute.xlu0 %777
      %779 = vrot.lane.b32.xlu0 %v756, 12
      %v780 = vpop.permute.xlu0 %779
      %781 = vrot.lane.b32.xlu0 %v758, 12
      %v782 = vpop.permute.xlu0 %781
      %783 = vrot.lane.b32.xlu0 %v760, 12
      %v784 = vpop.permute.xlu0 %783
      %785 = vrot.lane.b32.xlu0 %v762, 12
      %v786 = vpop.permute.xlu0 %785
      %787 = vrot.lane.b32.xlu0 %v764, 12
      %v788 = vpop.permute.xlu0 %787
      %789 = vrot.lane.b32.xlu0 %v766, 12
      %v790 = vpop.permute.xlu0 %789
      %791 = vrot.lane.b32.xlu0 %v768, 12
      %v792 = vpop.permute.xlu0 %791
      %vm801 = vcmask 121952
      %802 = vst.msk [vmem:[#allocation3] sm:$0xff] %vm801, %v778
      %803 = vst.msk [vmem:[#allocation3 + $0x18] sm:$0xff] %vm801, %v780
      %804 = vst.msk [vmem:[#allocation3 + $0x30] sm:$0xff] %vm801, %v782
      %805 = vst.msk [vmem:[#allocation3 + $0x48] sm:$0xff] %vm801, %v784
      %806 = vst.msk [vmem:[#allocation3 + $0x60] sm:$0xff] %vm801, %v786
      %807 = vst.msk [vmem:[#allocation3 + $0x78] sm:$0xff] %vm801, %v788
      %808 = vst.msk [vmem:[#allocation3 + $0x90] sm:$0xff] %vm801, %v790
      %809 = vst.msk [vmem:[#allocation3 + $0xa8] sm:$0xff] %vm801, %v792
      %s810 = scalar_lea.vmem %s527, 2 [#allocation2]
      %v811 = vld [vmem:[%s810] ss:$2 sm:$0xff]
      %s812 = scalar_lea.vmem %s527, 50 [#allocation2]
      %v813 = vld [vmem:[%s812] ss:$2 sm:$0xff]
      %s814 = scalar_lea.vmem %s527, 98 [#allocation2]
      %v815 = vld [vmem:[%s814] ss:$2 sm:$0xff]
      %s816 = scalar_lea.vmem %s527, 146 [#allocation2]
      %v817 = vld [vmem:[%s816] ss:$2 sm:$0xff]
      %s818 = scalar_lea.vmem %s527, 194 [#allocation2]
      %v819 = vld [vmem:[%s818] ss:$2 sm:$0xff]
      %s820 = scalar_lea.vmem %s527, 242 [#allocation2]
      %v821 = vld [vmem:[%s820] ss:$2 sm:$0xff]
      %s822 = scalar_lea.vmem %s527, 290 [#allocation2]
      %v823 = vld [vmem:[%s822] ss:$2 sm:$0xff]
      %s824 = scalar_lea.vmem %s527, 338 [#allocation2]
      %v825 = vld [vmem:[%s824] ss:$2 sm:$0xff]
      %834 = vrot.lane.b32.xlu0 %v811, 15
      %v835 = vpop.permute.xlu0 %834
      %836 = vrot.lane.b32.xlu0 %v813, 15
      %v837 = vpop.permute.xlu0 %836
      %838 = vrot.lane.b32.xlu0 %v815, 15
      %v839 = vpop.permute.xlu0 %838
      %840 = vrot.lane.b32.xlu0 %v817, 15
      %v841 = vpop.permute.xlu0 %840
      %842 = vrot.lane.b32.xlu0 %v819, 15
      %v843 = vpop.permute.xlu0 %842
      %844 = vrot.lane.b32.xlu0 %v821, 15
      %v845 = vpop.permute.xlu0 %844
      %846 = vrot.lane.b32.xlu0 %v823, 15
      %v847 = vpop.permute.xlu0 %846
      %848 = vrot.lane.b32.xlu0 %v825, 15
      %v849 = vpop.permute.xlu0 %848
      %vm858 = vcmask 146552
      %859 = vst.msk [vmem:[#allocation3] sm:$0xff] %vm858, %v835
      %860 = vst.msk [vmem:[#allocation3 + $0x18] sm:$0xff] %vm858, %v837
      %861 = vst.msk [vmem:[#allocation3 + $0x30] sm:$0xff] %vm858, %v839
      %862 = vst.msk [vmem:[#allocation3 + $0x48] sm:$0xff] %vm858, %v841
      %863 = vst.msk [vmem:[#allocation3 + $0x60] sm:$0xff] %vm858, %v843
      %864 = vst.msk [vmem:[#allocation3 + $0x78] sm:$0xff] %vm858, %v845
      %865 = vst.msk [vmem:[#allocation3 + $0x90] sm:$0xff] %vm858, %v847
      %866 = vst.msk [vmem:[#allocation3 + $0xa8] sm:$0xff] %vm858, %v849
      %s867 = scalar_lea.vmem [#allocation2], 48
      %v868 = vld [vmem:[%s867] ss:$2 sm:$0xff]
      %s869 = scalar_lea.vmem %s867, 48 [#allocation2]
      %v870 = vld [vmem:[%s869] ss:$2 sm:$0xff]
      %s871 = scalar_lea.vmem %s867, 96 [#allocation2]
      %v872 = vld [vmem:[%s871] ss:$2 sm:$0xff]
      %s873 = scalar_lea.vmem %s867, 144 [#allocation2]
      %v874 = vld [vmem:[%s873] ss:$2 sm:$0xff]
      %s875 = scalar_lea.vmem %s867, 192 [#allocation2]
      %v876 = vld [vmem:[%s875] ss:$2 sm:$0xff]
      %s877 = scalar_lea.vmem %s867, 240 [#allocation2]
      %v878 = vld [vmem:[%s877] ss:$2 sm:$0xff]
      %s879 = scalar_lea.vmem %s867, 288 [#allocation2]
      %v880 = vld [vmem:[%s879] ss:$2 sm:$0xff]
      %s881 = scalar_lea.vmem %s867, 336 [#allocation2]
      %v882 = vld [vmem:[%s881] ss:$2 sm:$0xff]
      %891 = vrot.lane.b32.xlu0 %v868, 18
      %v892 = vpop.permute.xlu0 %891
      %893 = vrot.lane.b32.xlu0 %v870, 18
      %v894 = vpop.permute.xlu0 %893
      %895 = vrot.lane.b32.xlu0 %v872, 18
      %v896 = vpop.permute.xlu0 %895
      %897 = vrot.lane.b32.xlu0 %v874, 18
      %v898 = vpop.permute.xlu0 %897
      %899 = vrot.lane.b32.xlu0 %v876, 18
      %v900 = vpop.permute.xlu0 %899
      %901 = vrot.lane.b32.xlu0 %v878, 18
      %v902 = vpop.permute.xlu0 %901
      %903 = vrot.lane.b32.xlu0 %v880, 18
      %v904 = vpop.permute.xlu0 %903
      %905 = vrot.lane.b32.xlu0 %v882, 18
      %v906 = vpop.permute.xlu0 %905
      %vm915 = vcmask 171152
      %916 = vst.msk [vmem:[#allocation3] sm:$0xff] %vm915, %v892
      %917 = vst.msk [vmem:[#allocation3 + $0x18] sm:$0xff] %vm915, %v894
      %918 = vst.msk [vmem:[#allocation3 + $0x30] sm:$0xff] %vm915, %v896
      %919 = vst.msk [vmem:[#allocation3 + $0x48] sm:$0xff] %vm915, %v898
      %920 = vst.msk [vmem:[#allocation3 + $0x60] sm:$0xff] %vm915, %v900
      %921 = vst.msk [vmem:[#allocation3 + $0x78] sm:$0xff] %vm915, %v902
      %922 = vst.msk [vmem:[#allocation3 + $0x90] sm:$0xff] %vm915, %v904
      %923 = vst.msk [vmem:[#allocation3 + $0xa8] sm:$0xff] %vm915, %v906
      %s924 = scalar_lea.vmem %s867, 1 [#allocation2]
      %v925 = vld [vmem:[%s924] ss:$2 sm:$0xff]
      %s926 = scalar_lea.vmem %s867, 49 [#allocation2]
      %v927 = vld [vmem:[%s926] ss:$2 sm:$0xff]
      %s928 = scalar_lea.vmem %s867, 97 [#allocation2]
      %v929 = vld [vmem:[%s928] ss:$2 sm:$0xff]
      %s930 = scalar_lea.vmem %s867, 145 [#allocation2]
      %v931 = vld [vmem:[%s930] ss:$2 sm:$0xff]
      %s932 = scalar_lea.vmem %s867, 193 [#allocation2]
      %v933 = vld [vmem:[%s932] ss:$2 sm:$0xff]
      %s934 = scalar_lea.vmem %s867, 241 [#allocation2]
      %v935 = vld [vmem:[%s934] ss:$2 sm:$0xff]
      %s936 = scalar_lea.vmem %s867, 289 [#allocation2]
      %v937 = vld [vmem:[%s936] ss:$2 sm:$0xff]
      %s938 = scalar_lea.vmem %s867, 337 [#allocation2]
      %v939 = vld [vmem:[%s938] ss:$2 sm:$0xff]
      %948 = vrot.lane.b32.xlu0 %v925, 21
      %v949 = vpop.permute.xlu0 %948
      %950 = vrot.lane.b32.xlu0 %v927, 21
      %v951 = vpop.permute.xlu0 %950
      %952 = vrot.lane.b32.xlu0 %v929, 21
      %v953 = vpop.permute.xlu0 %952
      %954 = vrot.lane.b32.xlu0 %v931, 21
      %v955 = vpop.permute.xlu0 %954
      %956 = vrot.lane.b32.xlu0 %v933, 21
      %v957 = vpop.permute.xlu0 %956
      %958 = vrot.lane.b32.xlu0 %v935, 21
      %v959 = vpop.permute.xlu0 %958
      %960 = vrot.lane.b32.xlu0 %v937, 21
      %v961 = vpop.permute.xlu0 %960
      %962 = vrot.lane.b32.xlu0 %v939, 21
      %v963 = vpop.permute.xlu0 %962
      %vm972 = vcmask 195752
      %973 = vst.msk [vmem:[#allocation3] sm:$0xff] %vm972, %v949
      %974 = vst.msk [vmem:[#allocation3 + $0x18] sm:$0xff] %vm972, %v951
      %975 = vst.msk [vmem:[#allocation3 + $0x30] sm:$0xff] %vm972, %v953
      %976 = vst.msk [vmem:[#allocation3 + $0x48] sm:$0xff] %vm972, %v955
      %977 = vst.msk [vmem:[#allocation3 + $0x60] sm:$0xff] %vm972, %v957
      %978 = vst.msk [vmem:[#allocation3 + $0x78] sm:$0xff] %vm972, %v959
      %979 = vst.msk [vmem:[#allocation3 + $0x90] sm:$0xff] %vm972, %v961
      %980 = vst.msk [vmem:[#allocation3 + $0xa8] sm:$0xff] %vm972, %v963
      %s981 = scalar_lea.vmem %s867, 2 [#allocation2]
      %v982 = vld [vmem:[%s981] ss:$2 sm:$0xff]
      %s983 = scalar_lea.vmem %s867, 50 [#allocation2]
      %v984 = vld [vmem:[%s983] ss:$2 sm:$0xff]
      %s985 = scalar_lea.vmem %s867, 98 [#allocation2]
      %v986 = vld [vmem:[%s985] ss:$2 sm:$0xff]
      %s987 = scalar_lea.vmem %s867, 146 [#allocation2]
      %v988 = vld [vmem:[%s987] ss:$2 sm:$0xff]
      %s989 = scalar_lea.vmem %s867, 194 [#allocation2]
      %v990 = vld [vmem:[%s989] ss:$2 sm:$0xff]
      %s991 = scalar_lea.vmem %s867, 242 [#allocation2]
      %v992 = vld [vmem:[%s991] ss:$2 sm:$0xff]
      %s993 = scalar_lea.vmem %s867, 290 [#allocation2]
      %v994 = vld [vmem:[%s993] ss:$2 sm:$0xff]
      %s995 = scalar_lea.vmem %s867, 338 [#allocation2]
      %v996 = vld [vmem:[%s995] ss:$2 sm:$0xff]
      %1005 = vrot.lane.b32.xlu0 %v982, 24
      %v1006 = vpop.permute.xlu0 %1005
      %1007 = vrot.lane.b32.xlu0 %v984, 24
      %v1008 = vpop.permute.xlu0 %1007
      %1009 = vrot.lane.b32.xlu0 %v986, 24
      %v1010 = vpop.permute.xlu0 %1009
      %1011 = vrot.lane.b32.xlu0 %v988, 24
      %v1012 = vpop.permute.xlu0 %1011
      %1013 = vrot.lane.b32.xlu0 %v990, 24
      %v1014 = vpop.permute.xlu0 %1013
      %1015 = vrot.lane.b32.xlu0 %v992, 24
      %v1016 = vpop.permute.xlu0 %1015
      %1017 = vrot.lane.b32.xlu0 %v994, 24
      %v1018 = vpop.permute.xlu0 %1017
      %1019 = vrot.lane.b32.xlu0 %v996, 24
      %v1020 = vpop.permute.xlu0 %1019
      %vm1029 = vcmask 220352
      %1030 = vst.msk [vmem:[#allocation3] sm:$0xff] %vm1029, %v1006
      %1031 = vst.msk [vmem:[#allocation3 + $0x18] sm:$0xff] %vm1029, %v1008
      %1032 = vst.msk [vmem:[#allocation3 + $0x30] sm:$0xff] %vm1029, %v1010
      %1033 = vst.msk [vmem:[#allocation3 + $0x48] sm:$0xff] %vm1029, %v1012
      %1034 = vst.msk [vmem:[#allocation3 + $0x60] sm:$0xff] %vm1029, %v1014
      %1035 = vst.msk [vmem:[#allocation3 + $0x78] sm:$0xff] %vm1029, %v1016
      %1036 = vst.msk [vmem:[#allocation3 + $0x90] sm:$0xff] %vm1029, %v1018
      %1037 = vst.msk [vmem:[#allocation3 + $0xa8] sm:$0xff] %vm1029, %v1020
      %v1038 = vld [vmem:[#allocation3] sm:$0xff]
      %v1039 = vld [vmem:[#allocation3 + $0x18] sm:$0xff]
      %v1040 = vld [vmem:[#allocation3 + $0x30] sm:$0xff]
      %v1041 = vld [vmem:[#allocation3 + $0x48] sm:$0xff]
      %v1042 = vld [vmem:[#allocation3 + $0x60] sm:$0xff]
      %v1043 = vld [vmem:[#allocation3 + $0x78] sm:$0xff]
      %v1044 = vld [vmem:[#allocation3 + $0x90] sm:$0xff]
      %v1045 = vld [vmem:[#allocation3 + $0xa8] sm:$0xff]
      %v1046 = vld [vmem:[%s1] sm:$0xff]
      %v1047 = vld [vmem:[%s1 + $0x8] sm:$0xff]
      %v1048 = vld [vmem:[%s1 + $0x10] sm:$0xff]
      %v1049 = vld [vmem:[%s1 + $0x18] sm:$0x7]
      %v1050 = vld [vmem:[%s2] sm:$0x1]
      %v1052 = vlaneseq
      %v1053 = vshrl.u32 %v1052, 7
      %v1054 = vsub.s32 0, %v1053
      %v1055 = vrot.slane %v1050, %v1054
      %vm1057 = vcmask 220160
      %v1059 = vsel %vm1057, %v1038, 0
      %v1062 = vsel %vm1057, %v1039, 0
      %v1065 = vsel %vm1057, %v1040, 0
      %v1068 = vsel %vm1057, %v1041, 0
      %v1071 = vsel %vm1057, %v1042, 0
      %v1074 = vsel %vm1057, %v1043, 0
      %v1077 = vsel %vm1057, %v1044, 0
      %v1080 = vsel %vm1057, %v1045, 0
      %vm1082 = vcmask 1042432
      %v1084 = vsel %vm1082, %v1049, 0
      %1086 = vmatprep.subr.mxu0 0.0
      %1087 = vmatpush1.msra.mxu0 0.0
      %1088 = vmatprep.subr.mxu0 0.0
      %1089 = vmatpush1.msra.mxu0 0.0
      %1090 = vmatprep.subr.mxu0 0.0
      %1091 = vmatpush1.msra.mxu0 0.0
      %1092 = vmatprep.subr.mxu0 0.0
      %1093 = vmatpush1.msra.mxu0 0.0
      %1094 = vmatprep.subr.mxu0 0.0
      %1095 = vmatpush1.msra.mxu0 0.0
      %1096 = vmatprep.subr.mxu0 0.0
      %1097 = vmatpush1.msra.mxu0 0.0
      %1098 = vmatprep.subr.mxu0 0.0
      %1099 = vmatpush1.msra.mxu0 0.0
      %1100 = vmatprep.subr.mxu0 0.0
      %1101 = vmatpush1.msra.mxu0 0.0
      %1102 = vmatprep.subr.mxu0 0.0
      %1103 = vmatpush1.msra.mxu0 0.0
      %1104 = vmatprep.subr.mxu0 0.0
      %1105 = vmatpush1.msra.mxu0 0.0
      %1106 = vmatprep.subr.mxu0 0.0
      %1107 = vmatpush1.msra.mxu0 0.0
      %1108 = vmatprep.subr.mxu0 0.0
      %1109 = vmatpush1.msra.mxu0 0.0
      %1110 = vmatprep.subr.mxu0 0.0
      %1111 = vmatpush1.msra.mxu0 %v1084
      %1112 = vmatprep.subr.mxu0 0.0
      %1113 = vmatpush1.msra.mxu0 %v1048
      %1114 = vmatprep.subr.mxu0 0.0
      %1115 = vmatpush1.msra.mxu0 %v1047
      %1116 = vmatprep.subr.mxu0 0.0
      %1117 = vmatpush1.msra.mxu0 %v1046
      %1118 = vmatprep.subr.mxu0 0.0
      %1119 = vmatpush2.msra.mxu0 0.0
      %1120 = vmatprep.subr.mxu0 0.0
      %1121 = vmatpush2.msra.mxu0 0.0
      %1122 = vmatprep.subr.mxu0 0.0
      %1123 = vmatpush2.msra.mxu0 0.0
      %1124 = vmatprep.subr.mxu0 0.0
      %1125 = vmatpush2.msra.mxu0 0.0
      %1126 = vmatprep.subr.mxu0 0.0
      %1127 = vmatpush2.msra.mxu0 0.0
      %1128 = vmatprep.subr.mxu0 0.0
      %1129 = vmatpush2.msra.mxu0 0.0
      %1130 = vmatprep.subr.mxu0 0.0
      %1131 = vmatpush2.msra.mxu0 0.0
      %1132 = vmatprep.subr.mxu0 0.0
      %1133 = vmatpush2.msra.mxu0 0.0
      %1134 = vmatprep.subr.mxu0 0.0
      %1135 = vmatpush2.msra.mxu0 0.0
      %1136 = vmatprep.subr.mxu0 0.0
      %1137 = vmatpush2.msra.mxu0 0.0
      %1138 = vmatprep.subr.mxu0 0.0
      %1139 = vmatpush2.msra.mxu0 0.0
      %1140 = vmatprep.subr.mxu0 0.0
      %1141 = vmatpush2.msra.mxu0 0.0
      %1142 = vmatprep.subr.mxu0 0.0
      %1143 = vmatpush2.msra.mxu0 0.0
      %1144 = vmatprep.subr.mxu0 0.0
      %1145 = vmatpush2.msra.mxu0 0.0
      %1146 = vmatprep.subr.mxu0 0.0
      %1147 = vmatpush2.msra.mxu0 0.0
      %1148 = vmatprep.subr.mxu0 0.0
      %1149 = vmatpush2.msra.mxu0 0.0
      %1150 = vmatprep.mubr.f32.mxu0 0.0
      %1151 = vmatmul.mubr.f32.gmra.mxu0 %v1059
      %v1152 = vpop.f32.mrf.mxu0
      %v1153 = vadd.f32 %v1055, %v1152
      %v1154 = vpop.f32.mrf.mxu0
      %1155 = vmatprep.mubr.f32.mxu0 0.0
      %1156 = vmatmul.mubr.f32.gmra.mxu0 %v1062
      %v1157 = vpop.f32.mrf.mxu0
      %v1158 = vadd.f32 %v1055, %v1157
      %v1159 = vpop.f32.mrf.mxu0
      %1160 = vmatprep.mubr.f32.mxu0 0.0
      %1161 = vmatmul.mubr.f32.gmra.mxu0 %v1065
      %v1162 = vpop.f32.mrf.mxu0
      %v1163 = vadd.f32 %v1055, %v1162
      %v1164 = vpop.f32.mrf.mxu0
      %1165 = vmatprep.mubr.f32.mxu0 0.0
      %1166 = vmatmul.mubr.f32.gmra.mxu0 %v1068
      %v1167 = vpop.f32.mrf.mxu0
      %v1168 = vadd.f32 %v1055, %v1167
      %v1169 = vpop.f32.mrf.mxu0
      %1170 = vmatprep.mubr.f32.mxu0 0.0
      %1171 = vmatmul.mubr.f32.gmra.mxu0 %v1071
      %v1172 = vpop.f32.mrf.mxu0
      %v1173 = vadd.f32 %v1055, %v1172
      %v1174 = vpop.f32.mrf.mxu0
      %1175 = vmatprep.mubr.f32.mxu0 0.0
      %1176 = vmatmul.mubr.f32.gmra.mxu0 %v1074
      %v1177 = vpop.f32.mrf.mxu0
      %v1178 = vadd.f32 %v1055, %v1177
      %v1179 = vpop.f32.mrf.mxu0
      %1180 = vmatprep.mubr.f32.mxu0 0.0
      %1181 = vmatmul.mubr.f32.gmra.mxu0 %v1077
      %v1182 = vpop.f32.mrf.mxu0
      %v1183 = vadd.f32 %v1055, %v1182
      %v1184 = vpop.f32.mrf.mxu0
      %1185 = vmatprep.mubr.f32.mxu0 0.0
      %1186 = vmatmul.mubr.f32.gmra.mxu0 %v1080
      %v1187 = vpop.f32.mrf.mxu0
      %v1188 = vadd.f32 %v1055, %v1187
      %v1189 = vpop.f32.mrf.mxu0
      %1190 = vdwg.mxu0
      %v1191 = vmax.f32 %v1153, 0.0
      %v1192 = vmax.f32 %v1158, 0.0
      %v1193 = vmax.f32 %v1163, 0.0
      %v1194 = vmax.f32 %v1168, 0.0
      %v1195 = vmax.f32 %v1173, 0.0
      %v1196 = vmax.f32 %v1178, 0.0
      %v1197 = vmax.f32 %v1183, 0.0
      %v1198 = vmax.f32 %v1188, 0.0
      %vm1199 = vcmask 261120
      %1200 = vst.msk [vmem:[#allocation2] sm:$0xff] %vm1199, 0.0
      %vm1201 = vcmask 254976
      %1202 = vst.msk [vmem:[#allocation2 + $0x8] sm:$0x3] %vm1201, 0.0
      %1203 = vst.msk [vmem:[#allocation2 + $0x18] sm:$0xff] %vm1199, 0.0
      %1204 = vst.msk [vmem:[#allocation2 + $0x20] sm:$0x3] %vm1201, 0.0
      %1205 = vst.msk [vmem:[#allocation2 + $0x30] sm:$0xff] %vm1199, 0.0
      %1206 = vst.msk [vmem:[#allocation2 + $0x38] sm:$0x3] %vm1201, 0.0
      %1207 = vst.msk [vmem:[#allocation2 + $0x48] sm:$0xff] %vm1199, 0.0
      %1208 = vst.msk [vmem:[#allocation2 + $0x50] sm:$0x3] %vm1201, 0.0
      %1209 = vst.msk [vmem:[#allocation2 + $0x60] sm:$0xff] %vm1199, 0.0
      %1210 = vst.msk [vmem:[#allocation2 + $0x68] sm:$0x3] %vm1201, 0.0
      %1211 = vst.msk [vmem:[#allocation2 + $0x78] sm:$0xff] %vm1199, 0.0
      %1212 = vst.msk [vmem:[#allocation2 + $0x80] sm:$0x3] %vm1201, 0.0
      %1213 = vst.msk [vmem:[#allocation2 + $0x90] sm:$0xff] %vm1199, 0.0
      %1214 = vst.msk [vmem:[#allocation2 + $0x98] sm:$0x3] %vm1201, 0.0
      %1215 = vst.msk [vmem:[#allocation2 + $0xa8] sm:$0xff] %vm1199, 0.0
      %1216 = vst.msk [vmem:[#allocation2 + $0xb0] sm:$0x3] %vm1201, 0.0
      %1217 = vst.msk [vmem:[#allocation2 + $0xc0] sm:$0xff] %vm1199, 0.0
      %1218 = vst.msk [vmem:[#allocation2 + $0xc8] sm:$0x3] %vm1201, 0.0
      %1219 = vst.msk [vmem:[#allocation2 + $0xd8] sm:$0xff] %vm1199, 0.0
      %1220 = vst.msk [vmem:[#allocation2 + $0xe0] sm:$0x3] %vm1201, 0.0
      %1221 = vst.msk [vmem:[%s527 + $0x1] sm:$0xff] %vm1199, %v1191
      %1222 = vst.msk [vmem:[%s527 + $0x19] sm:$0xff] %vm1199, %v1192
      %1223 = vst.msk [vmem:[%s527 + $0x31] sm:$0xff] %vm1199, %v1193
      %1224 = vst.msk [vmem:[%s527 + $0x49] sm:$0xff] %vm1199, %v1194
      %1225 = vst.msk [vmem:[%s527 + $0x61] sm:$0xff] %vm1199, %v1195
      %1226 = vst.msk [vmem:[%s527 + $0x79] sm:$0xff] %vm1199, %v1196
      %1227 = vst.msk [vmem:[%s527 + $0x91] sm:$0xff] %vm1199, %v1197
      %1228 = vst.msk [vmem:[%s527 + $0xa9] sm:$0xff] %vm1199, %v1198
      %v1229 = vld [vmem:[#allocation2] ss:$2 sm:$0xf]
      %v1230 = vld [vmem:[%s561] ss:$2 sm:$0xf]
      %v1231 = vld [vmem:[%s563] ss:$2 sm:$0xf]
      %v1232 = vld [vmem:[%s565] ss:$2 sm:$0xf]
      %v1237 = vcombine.low %v1229, %v1230
      %v1238 = vcombine.low %v1231, %v1232
      %1241 = vst.msk [vmem:[#allocation3] sm:$0xff] %vm1199, %v1237
      %1242 = vst.msk [vmem:[#allocation3 + $0x18] sm:$0xff] %vm1199, %v1238
      %v1243 = vld [vmem:[%s583] ss:$2 sm:$0xf]
      %v1244 = vld [vmem:[%s585] ss:$2 sm:$0xf]
      %v1245 = vld [vmem:[%s587] ss:$2 sm:$0xf]
      %v1246 = vld [vmem:[%s589] ss:$2 sm:$0xf]
      %v1251 = vcombine.low %v1243, %v1244
      %v1252 = vcombine.low %v1245, %v1246
      %1253 = vrot.lane.b32.xlu0 %v1251, 32
      %v1254 = vpop.permute.xlu0 %1253
      %1255 = vrot.lane.b32.xlu0 %v1252, 32
      %v1256 = vpop.permute.xlu0 %1255
      %vm1259 = vcmask 523520
      %1260 = vst.msk [vmem:[#allocation3] sm:$0xff] %vm1259, %v1254
      %1261 = vst.msk [vmem:[#allocation3 + $0x18] sm:$0xff] %vm1259, %v1256
      %v1262 = vld [vmem:[%s640] ss:$2 sm:$0xf]
      %v1263 = vld [vmem:[%s642] ss:$2 sm:$0xf]
      %v1264 = vld [vmem:[%s644] ss:$2 sm:$0xf]
      %v1265 = vld [vmem:[%s646] ss:$2 sm:$0xf]
      %v1270 = vcombine.low %v1262, %v1263
      %v1271 = vcombine.low %v1264, %v1265
      %1272 = vrot.lane.b32.xlu0 %v1270, 64
      %v1273 = vpop.permute.xlu0 %1272
      %1274 = vrot.lane.b32.xlu0 %v1271, 64
      %v1275 = vpop.permute.xlu0 %1274
      %vm1278 = vcmask 785920
      %1279 = vst.msk [vmem:[#allocation3] sm:$0xff] %vm1278, %v1273
      %1280 = vst.msk [vmem:[#allocation3 + $0x18] sm:$0xff] %vm1278, %v1275
      %v1281 = vld [vmem:[%s527] ss:$2 sm:$0xf]
      %v1282 = vld [vmem:[%s698] ss:$2 sm:$0xf]
      %v1283 = vld [vmem:[%s700] ss:$2 sm:$0xf]
      %v1284 = vld [vmem:[%s702] ss:$2 sm:$0xf]
      %v1289 = vcombine.low %v1281, %v1282
      %v1290 = vcombine.low %v1283, %v1284
      %1291 = vrot.lane.b32.xlu0 %v1289, 96
      %v1292 = vpop.permute.xlu0 %1291
      %1293 = vrot.lane.b32.xlu0 %v1290, 96
      %v1294 = vpop.permute.xlu0 %1293
      %vm1297 = vcmask 1048320
      %1298 = vst.msk [vmem:[#allocation3] sm:$0xff] %vm1297, %v1292
      %1299 = vst.msk [vmem:[#allocation3 + $0x18] sm:$0xff] %vm1297, %v1294
      %v1300 = vld [vmem:[%s753] ss:$2 sm:$0xf]
      %v1301 = vld [vmem:[%s755] ss:$2 sm:$0xf]
      %v1302 = vld [vmem:[%s757] ss:$2 sm:$0xf]
      %v1303 = vld [vmem:[%s759] ss:$2 sm:$0xf]
      %v1308 = vcombine.low %v1300, %v1301
      %v1309 = vcombine.low %v1302, %v1303
      %1312 = vst.msk [vmem:[#allocation3 + $0x8] sm:$0xff] %vm1199, %v1308
      %1313 = vst.msk [vmem:[#allocation3 + $0x20] sm:$0xff] %vm1199, %v1309
      %v1314 = vld [vmem:[%s810] ss:$2 sm:$0xf]
      %v1315 = vld [vmem:[%s812] ss:$2 sm:$0xf]
      %v1316 = vld [vmem:[%s814] ss:$2 sm:$0xf]
      %v1317 = vld [vmem:[%s816] ss:$2 sm:$0xf]
      %v1322 = vcombine.low %v1314, %v1315
      %v1323 = vcombine.low %v1316, %v1317
      %1324 = vrot.lane.b32.xlu0 %v1322, 32
      %v1325 = vpop.permute.xlu0 %1324
      %1326 = vrot.lane.b32.xlu0 %v1323, 32
      %v1327 = vpop.permute.xlu0 %1326
      %1330 = vst.msk [vmem:[#allocation3 + $0x8] sm:$0xff] %vm1259, %v1325
      %1331 = vst.msk [vmem:[#allocation3 + $0x20] sm:$0xff] %vm1259, %v1327
      %v1332 = vld [vmem:[%s867] ss:$2 sm:$0xf]
      %v1333 = vld [vmem:[%s869] ss:$2 sm:$0xf]
      %v1334 = vld [vmem:[%s871] ss:$2 sm:$0xf]
      %v1335 = vld [vmem:[%s873] ss:$2 sm:$0xf]
      %v1340 = vcombine.low %v1332, %v1333
      %v1341 = vcombine.low %v1334, %v1335
      %1342 = vrot.lane.b32.xlu0 %v1340, 64
      %v1343 = vpop.permute.xlu0 %1342
      %1344 = vrot.lane.b32.xlu0 %v1341, 64
      %v1345 = vpop.permute.xlu0 %1344
      %1348 = vst.msk [vmem:[#allocation3 + $0x8] sm:$0xff] %vm1278, %v1343
      %1349 = vst.msk [vmem:[#allocation3 + $0x20] sm:$0xff] %vm1278, %v1345
      %v1350 = vld [vmem:[%s924] ss:$2 sm:$0xf]
      %v1351 = vld [vmem:[%s926] ss:$2 sm:$0xf]
      %v1352 = vld [vmem:[%s928] ss:$2 sm:$0xf]
      %v1353 = vld [vmem:[%s930] ss:$2 sm:$0xf]
      %v1358 = vcombine.low %v1350, %v1351
      %v1359 = vcombine.low %v1352, %v1353
      %1360 = vrot.lane.b32.xlu0 %v1358, 96
      %v1361 = vpop.permute.xlu0 %1360
      %1362 = vrot.lane.b32.xlu0 %v1359, 96
      %v1363 = vpop.permute.xlu0 %1362
      %1366 = vst.msk [vmem:[#allocation3 + $0x8] sm:$0xff] %vm1297, %v1361
      %1367 = vst.msk [vmem:[#allocation3 + $0x20] sm:$0xff] %vm1297, %v1363
      %v1368 = vld [vmem:[%s981] ss:$2 sm:$0xf]
      %v1369 = vld [vmem:[%s983] ss:$2 sm:$0xf]
      %v1370 = vld [vmem:[%s985] ss:$2 sm:$0xf]
      %v1371 = vld [vmem:[%s987] ss:$2 sm:$0xf]
      %v1376 = vcombine.low %v1368, %v1369
      %v1377 = vcombine.low %v1370, %v1371
      %1380 = vst.msk [vmem:[#allocation3 + $0x10] sm:$0xff] %vm1199, %v1376
      %1381 = vst.msk [vmem:[#allocation3 + $0x28] sm:$0xff] %vm1199, %v1377
      %v1382 = vld [vmem:[#allocation3] sm:$0xff]
      %v1383 = vld [vmem:[#allocation3 + $0x8] sm:$0xff]
      %v1384 = vld [vmem:[#allocation3 + $0x10] sm:$0xff]
      %v1385 = vld [vmem:[#allocation3 + $0x18] sm:$0xff]
      %v1386 = vld [vmem:[#allocation3 + $0x20] sm:$0xff]
      %v1387 = vld [vmem:[#allocation3 + $0x28] sm:$0xff]
      %v1388 = vld [vmem:[%s3] sm:$0xff]
      %v1389 = vld [vmem:[%s3 + $0x8] sm:$0xff]
      %v1390 = vld [vmem:[%s3 + $0x10] sm:$0xff]
      %v1391 = vld [vmem:[%s3 + $0x18] sm:$0xff]
      %v1392 = vld [vmem:[%s3 + $0x20] sm:$0xff]
      %v1393 = vld [vmem:[%s3 + $0x28] sm:$0xff]
      %v1394 = vld [vmem:[%s3 + $0x30] sm:$0xff]
      %v1395 = vld [vmem:[%s3 + $0x38] sm:$0xff]
      %v1396 = vld [vmem:[%s3 + $0x40] sm:$0xff]
      %v1397 = vld [vmem:[%s3 + $0x48] sm:$0xff]
      %v1398 = vld [vmem:[%s3 + $0x50] sm:$0xff]
      %v1399 = vld [vmem:[%s3 + $0x58] sm:$0xff]
      %v1400 = vld [vmem:[%s3 + $0x60] sm:$0xff]
      %v1401 = vld [vmem:[%s3 + $0x68] sm:$0xff]
      %v1402 = vld [vmem:[%s3 + $0x70] sm:$0xff]
      %v1403 = vld [vmem:[%s3 + $0x78] sm:$0xff]
      %v1404 = vld [vmem:[%s3 + $0x80] sm:$0xff]
      %v1405 = vld [vmem:[%s3 + $0x88] sm:$0xff]
      %v1406 = vld [vmem:[%s3 + $0x90] sm:$0xff]
      %v1407 = vld [vmem:[%s3 + $0x98] sm:$0xff]
      %v1408 = vld [vmem:[%s3 + $0xa0] sm:$0xff]
      %v1409 = vld [vmem:[%s3 + $0xa8] sm:$0xff]
      %v1410 = vld [vmem:[%s3 + $0xb0] sm:$0xff]
      %v1411 = vld [vmem:[%s3 + $0xb8] sm:$0xff]
      %v1412 = vld [vmem:[%s3 + $0xc0] sm:$0xff]
      %v1413 = vld [vmem:[%s3 + $0xc8] sm:$0xff]
      %v1414 = vld [vmem:[%s3 + $0xd0] sm:$0xff]
      %v1415 = vld [vmem:[%s3 + $0xd8] sm:$0xff]
      %v1416 = vld [vmem:[%s3 + $0xe0] sm:$0xff]
      %v1417 = vld [vmem:[%s3 + $0xe8] sm:$0xff]
      %v1418 = vld [vmem:[%s3 + $0xf0] sm:$0xff]
      %v1419 = vld [vmem:[%s3 + $0xf8] sm:$0xff]
      %v1420 = vld [vmem:[%s3 + $0x100] sm:$0xff]
      %v1421 = vld [vmem:[%s3 + $0x108] sm:$0xff]
      %v1422 = vld [vmem:[%s3 + $0x110] sm:$0xff]
      %v1423 = vld [vmem:[%s3 + $0x118] sm:$0xff]
      %v1424 = vld [vmem:[%s4] sm:$0x1]
      %v1426 = vlaneseq
      %v1427 = vshrl.u32 %v1426, 7
      %v1428 = vsub.s32 0, %v1427
      %v1429 = vrot.slane %v1424, %v1428
      %v1432 = vsel %vm1199, %v1384, 0
      %v1435 = vsel %vm1199, %v1387, 0
      %1437 = vmatprep.subr.mxu0 0.0
      %1438 = vmatpush1.msra.mxu0 %v1403
      %1439 = vmatprep.subr.mxu0 0.0
      %1440 = vmatpush1.msra.mxu0 %v1402
      %1441 = vmatprep.subr.mxu0 0.0
      %1442 = vmatpush1.msra.mxu0 %v1401
      %1443 = vmatprep.subr.mxu0 0.0
      %1444 = vmatpush1.msra.mxu0 %v1400
      %1445 = vmatprep.subr.mxu0 0.0
      %1446 = vmatpush1.msra.mxu0 %v1399
      %1447 = vmatprep.subr.mxu0 0.0
      %1448 = vmatpush1.msra.mxu0 %v1398
      %1449 = vmatprep.subr.mxu0 0.0
      %1450 = vmatpush1.msra.mxu0 %v1397
      %1451 = vmatprep.subr.mxu0 0.0
      %1452 = vmatpush1.msra.mxu0 %v1396
      %1453 = vmatprep.subr.mxu0 0.0
      %1454 = vmatpush1.msra.mxu0 %v1395
      %1455 = vmatprep.subr.mxu0 0.0
      %1456 = vmatpush1.msra.mxu0 %v1394
      %1457 = vmatprep.subr.mxu0 0.0
      %1458 = vmatpush1.msra.mxu0 %v1393
      %1459 = vmatprep.subr.mxu0 0.0
      %1460 = vmatpush1.msra.mxu0 %v1392
      %1461 = vmatprep.subr.mxu0 0.0
      %1462 = vmatpush1.msra.mxu0 %v1391
      %1463 = vmatprep.subr.mxu0 0.0
      %1464 = vmatpush1.msra.mxu0 %v1390
      %1465 = vmatprep.subr.mxu0 0.0
      %1466 = vmatpush1.msra.mxu0 %v1389
      %1467 = vmatprep.subr.mxu0 0.0
      %1468 = vmatpush1.msra.mxu0 %v1388
      %1469 = vmatprep.subr.mxu0 0.0
      %1470 = vmatpush2.msra.mxu0 %v1419
      %1471 = vmatprep.subr.mxu0 0.0
      %1472 = vmatpush2.msra.mxu0 %v1418
      %1473 = vmatprep.subr.mxu0 0.0
      %1474 = vmatpush2.msra.mxu0 %v1417
      %1475 = vmatprep.subr.mxu0 0.0
      %1476 = vmatpush2.msra.mxu0 %v1416
      %1477 = vmatprep.subr.mxu0 0.0
      %1478 = vmatpush2.msra.mxu0 %v1415
      %1479 = vmatprep.subr.mxu0 0.0
      %1480 = vmatpush2.msra.mxu0 %v1414
      %1481 = vmatprep.subr.mxu0 0.0
      %1482 = vmatpush2.msra.mxu0 %v1413
      %1483 = vmatprep.subr.mxu0 0.0
      %1484 = vmatpush2.msra.mxu0 %v1412
      %1485 = vmatprep.subr.mxu0 0.0
      %1486 = vmatpush2.msra.mxu0 %v1411
      %1487 = vmatprep.subr.mxu0 0.0
      %1488 = vmatpush2.msra.mxu0 %v1410
      %1489 = vmatprep.subr.mxu0 0.0
      %1490 = vmatpush2.msra.mxu0 %v1409
      %1491 = vmatprep.subr.mxu0 0.0
      %1492 = vmatpush2.msra.mxu0 %v1408
      %1493 = vmatprep.subr.mxu0 0.0
      %1494 = vmatpush2.msra.mxu0 %v1407
      %1495 = vmatprep.subr.mxu0 0.0
      %1496 = vmatpush2.msra.mxu0 %v1406
      %1497 = vmatprep.subr.mxu0 0.0
      %1498 = vmatpush2.msra.mxu0 %v1405
      %1499 = vmatprep.subr.mxu0 0.0
      %1500 = vmatpush2.msra.mxu0 %v1404
      %1501 = vmatprep.mubr.f32.mxu0 %v1383
      %1502 = vmatmul.mubr.f32.gmra.mxu0 %v1382
      %v1503 = vpop.f32.mrf.mxu0
      %v1504 = vadd.f32 %v1429, %v1503
      %v1505 = vpop.f32.mrf.mxu0
      %1506 = vmatprep.mubr.f32.mxu0 %v1386
      %1507 = vmatmul.mubr.f32.gmra.mxu0 %v1385
      %v1508 = vpop.f32.mrf.mxu0
      %v1509 = vadd.f32 %v1429, %v1508
      %v1510 = vpop.f32.mrf.mxu0
      %1511 = vdwg.mxu0
      %1512 = vmatprep.subr.mxu0 0.0
      %1513 = vmatpush1.msra.mxu0 0.0
      %1514 = vmatprep.subr.mxu0 0.0
      %1515 = vmatpush1.msra.mxu0 0.0
      %1516 = vmatprep.subr.mxu0 0.0
      %1517 = vmatpush1.msra.mxu0 0.0
      %1518 = vmatprep.subr.mxu0 0.0
      %1519 = vmatpush1.msra.mxu0 0.0
      %1520 = vmatprep.subr.mxu0 0.0
      %1521 = vmatpush1.msra.mxu0 0.0
      %1522 = vmatprep.subr.mxu0 0.0
      %1523 = vmatpush1.msra.mxu0 0.0
      %1524 = vmatprep.subr.mxu0 0.0
      %1525 = vmatpush1.msra.mxu0 0.0
      %1526 = vmatprep.subr.mxu0 0.0
      %1527 = vmatpush1.msra.mxu0 0.0
      %1528 = vmatprep.subr.mxu0 0.0
      %1529 = vmatpush1.msra.mxu0 0.0
      %1530 = vmatprep.subr.mxu0 0.0
      %1531 = vmatpush1.msra.mxu0 0.0
      %1532 = vmatprep.subr.mxu0 0.0
      %1533 = vmatpush1.msra.mxu0 0.0
      %1534 = vmatprep.subr.mxu0 0.0
      %1535 = vmatpush1.msra.mxu0 0.0
      %1536 = vmatprep.subr.mxu0 0.0
      %1537 = vmatpush1.msra.mxu0 %v1423
      %1538 = vmatprep.subr.mxu0 0.0
      %1539 = vmatpush1.msra.mxu0 %v1422
      %1540 = vmatprep.subr.mxu0 0.0
      %1541 = vmatpush1.msra.mxu0 %v1421
      %1542 = vmatprep.subr.mxu0 0.0
      %1543 = vmatpush1.msra.mxu0 %v1420
      %1544 = vmatprep.subr.mxu0 0.0
      %1545 = vmatpush2.msra.mxu0 0.0
      %1546 = vmatprep.subr.mxu0 0.0
      %1547 = vmatpush2.msra.mxu0 0.0
      %1548 = vmatprep.subr.mxu0 0.0
      %1549 = vmatpush2.msra.mxu0 0.0
      %1550 = vmatprep.subr.mxu0 0.0
      %1551 = vmatpush2.msra.mxu0 0.0
      %1552 = vmatprep.subr.mxu0 0.0
      %1553 = vmatpush2.msra.mxu0 0.0
      %1554 = vmatprep.subr.mxu0 0.0
      %1555 = vmatpush2.msra.mxu0 0.0
      %1556 = vmatprep.subr.mxu0 0.0
      %1557 = vmatpush2.msra.mxu0 0.0
      %1558 = vmatprep.subr.mxu0 0.0
      %1559 = vmatpush2.msra.mxu0 0.0
      %1560 = vmatprep.subr.mxu0 0.0
      %1561 = vmatpush2.msra.mxu0 0.0
      %1562 = vmatprep.subr.mxu0 0.0
      %1563 = vmatpush2.msra.mxu0 0.0
      %1564 = vmatprep.subr.mxu0 0.0
      %1565 = vmatpush2.msra.mxu0 0.0
      %1566 = vmatprep.subr.mxu0 0.0
      %1567 = vmatpush2.msra.mxu0 0.0
      %1568 = vmatprep.subr.mxu0 0.0
      %1569 = vmatpush2.msra.mxu0 0.0
      %1570 = vmatprep.subr.mxu0 0.0
      %1571 = vmatpush2.msra.mxu0 0.0
      %1572 = vmatprep.subr.mxu0 0.0
      %1573 = vmatpush2.msra.mxu0 0.0
      %1574 = vmatprep.subr.mxu0 0.0
      %1575 = vmatpush2.msra.mxu0 0.0
      %1576 = vmatprep.mubr.f32.mxu0 0.0
      %1577 = vmatmul.mubr.f32.gmra.mxu0 %v1432
      %v1578 = vpop.f32.mrf.mxu0
      %v1579 = vadd.f32 %v1504, %v1578
      %v1580 = vpop.f32.mrf.mxu0
      %1581 = vmatprep.mubr.f32.mxu0 0.0
      %1582 = vmatmul.mubr.f32.gmra.mxu0 %v1435
      %v1583 = vpop.f32.mrf.mxu0
      %v1584 = vadd.f32 %v1509, %v1583
      %v1585 = vpop.f32.mrf.mxu0
      %1586 = vdwg.mxu0
      %v1587 = vmax.f32 %v1579, 0.0
      %v1588 = vmax.f32 %v1584, 0.0
      %v1591 = vcombine.high %v1587, %v1587
      %v1592 = vcombine.high %v1588, %v1588
      %vm1595 = vcmask 259072
      %1596 = vst.msk [vmem:[#allocation2] sm:$0x3f] %vm1595, -inf
      %1597 = vst.msk [vmem:[#allocation2 + $0x18] sm:$0x3f] %vm1595, -inf
      %1598 = vst.msk [vmem:[#allocation2 + $0x30] sm:$0x3f] %vm1595, -inf
      %1599 = vst.msk [vmem:[#allocation2 + $0x48] sm:$0x3f] %vm1595, -inf
      %1600 = vst.msk [vmem:[#allocation2 + $0x60] sm:$0x3f] %vm1595, -inf
      %1601 = vst.msk [vmem:[#allocation2 + $0x78] sm:$0x3f] %vm1595, -inf
      %vm1602 = vcmask 257024
      %1603 = vst.msk [vmem:[%s527 + $0x1] sm:$0xf] %vm1602, %v1587
      %1604 = vst.msk [vmem:[%s527 + $0x19] sm:$0xf] %vm1602, %v1591
      %1605 = vst.msk [vmem:[%s527 + $0x31] sm:$0xf] %vm1602, %v1588
      %1606 = vst.msk [vmem:[%s527 + $0x49] sm:$0xf] %vm1602, %v1592
      %v1607 = vld [vmem:[#allocation2] sm:$0xf]
      %v1608 = vld [vmem:[#allocation2 + $0x18] sm:$0xf]
      %v1609 = vld [vmem:[#allocation2 + $0x30] sm:$0xf]
      %v1610 = vld [vmem:[#allocation2 + $0x48] sm:$0xf]
      %v1611 = vld [vmem:[#allocation2 + $0x1] sm:$0xf]
      %v1612 = vld [vmem:[#allocation2 + $0x19] sm:$0xf]
      %v1613 = vld [vmem:[#allocation2 + $0x31] sm:$0xf]
      %v1614 = vld [vmem:[#allocation2 + $0x49] sm:$0xf]
      %v1615 = vmax.f32 %v1607, %v1611
      %v1616 = vmax.f32 %v1608, %v1612
      %v1617 = vmax.f32 %v1609, %v1613
      %v1618 = vmax.f32 %v1610, %v1614
      %v1619 = vld [vmem:[#allocation2 + $0x2] sm:$0xf]
      %v1620 = vld [vmem:[#allocation2 + $0x1a] sm:$0xf]
      %v1621 = vld [vmem:[#allocation2 + $0x32] sm:$0xf]
      %v1622 = vld [vmem:[#allocation2 + $0x4a] sm:$0xf]
      %v1623 = vmax.f32 %v1615, %v1619
      %v1624 = vmax.f32 %v1616, %v1620
      %v1625 = vmax.f32 %v1617, %v1621
      %v1626 = vmax.f32 %v1618, %v1622
      %v1627 = vld [vmem:[%s527] sm:$0xf]
      %v1628 = vld [vmem:[%s527 + $0x18] sm:$0xf]
      %v1629 = vld [vmem:[%s527 + $0x30] sm:$0xf]
      %v1630 = vld [vmem:[%s527 + $0x48] sm:$0xf]
      %v1631 = vmax.f32 %v1623, %v1627
      %v1632 = vmax.f32 %v1624, %v1628
      %v1633 = vmax.f32 %v1625, %v1629
      %v1634 = vmax.f32 %v1626, %v1630
      %v1635 = vld [vmem:[%s527 + $0x1] sm:$0xf]
      %v1636 = vld [vmem:[%s527 + $0x19] sm:$0xf]
      %v1637 = vld [vmem:[%s527 + $0x31] sm:$0xf]
      %v1638 = vld [vmem:[%s527 + $0x49] sm:$0xf]
      %v1639 = vmax.f32 %v1631, %v1635
      %v1640 = vmax.f32 %v1632, %v1636
      %v1641 = vmax.f32 %v1633, %v1637
      %v1642 = vmax.f32 %v1634, %v1638
      %v1643 = vld [vmem:[%s527 + $0x2] sm:$0xf]
      %v1644 = vld [vmem:[%s527 + $0x1a] sm:$0xf]
      %v1645 = vld [vmem:[%s527 + $0x32] sm:$0xf]
      %v1646 = vld [vmem:[%s527 + $0x4a] sm:$0xf]
      %v1647 = vmax.f32 %v1639, %v1643
      %v1648 = vmax.f32 %v1640, %v1644
      %v1649 = vmax.f32 %v1641, %v1645
      %v1650 = vmax.f32 %v1642, %v1646
      %v1651 = vld [vmem:[%s867] sm:$0xf]
      %v1652 = vld [vmem:[%s867 + $0x18] sm:$0xf]
      %v1653 = vld [vmem:[%s867 + $0x30] sm:$0xf]
      %v1654 = vld [vmem:[%s867 + $0x48] sm:$0xf]
      %v1655 = vmax.f32 %v1647, %v1651
      %v1656 = vmax.f32 %v1648, %v1652
      %v1657 = vmax.f32 %v1649, %v1653
      %v1658 = vmax.f32 %v1650, %v1654
      %v1659 = vld [vmem:[%s867 + $0x1] sm:$0xf]
      %v1660 = vld [vmem:[%s867 + $0x19] sm:$0xf]
      %v1661 = vld [vmem:[%s867 + $0x31] sm:$0xf]
      %v1662 = vld [vmem:[%s867 + $0x49] sm:$0xf]
      %v1663 = vmax.f32 %v1655, %v1659
      %v1664 = vmax.f32 %v1656, %v1660
      %v1665 = vmax.f32 %v1657, %v1661
      %v1666 = vmax.f32 %v1658, %v1662
      %v1667 = vld [vmem:[%s867 + $0x2] sm:$0xf]
      %v1668 = vld [vmem:[%s867 + $0x1a] sm:$0xf]
      %v1669 = vld [vmem:[%s867 + $0x32] sm:$0xf]
      %v1670 = vld [vmem:[%s867 + $0x4a] sm:$0xf]
      %v1671 = vmax.f32 %v1663, %v1667
      %v1672 = vmax.f32 %v1664, %v1668
      %v1673 = vmax.f32 %v1665, %v1669
      %v1674 = vmax.f32 %v1666, %v1670
      %1675 = vst.msk [vmem:[#allocation2] sm:$0x3f] %vm1595, 0.0
      %1676 = vst.msk [vmem:[#allocation2 + $0x18] sm:$0x3f] %vm1595, 0.0
      %1677 = vst.msk [vmem:[#allocation2 + $0x30] sm:$0x3f] %vm1595, 0.0
      %1678 = vst.msk [vmem:[#allocation2 + $0x48] sm:$0x3f] %vm1595, 0.0
      %1679 = vst.msk [vmem:[#allocation2 + $0x60] sm:$0x3f] %vm1595, 0.0
      %1680 = vst.msk [vmem:[#allocation2 + $0x78] sm:$0x3f] %vm1595, 0.0
      %1681 = vst.msk [vmem:[%s527 + $0x1] sm:$0xf] %vm1602, %v1671
      %1682 = vst.msk [vmem:[%s527 + $0x19] sm:$0xf] %vm1602, %v1672
      %1683 = vst.msk [vmem:[%s527 + $0x31] sm:$0xf] %vm1602, %v1673
      %1684 = vst.msk [vmem:[%s527 + $0x49] sm:$0xf] %vm1602, %v1674
      %v1685 = vld [vmem:[#allocation2] ss:$2 sm:$0x3]
      %v1686 = vld [vmem:[%s561] ss:$2 sm:$0x3]
      %v1689 = vcombine.low %v1685, %v1686
      %v1691 = vunpack.c.l.s4 1983009808
      %v1692 = vunpack.c.0.s8 %v1691
      %v1693 = vlaneseq
      %v1694 = vshrl.u32 %v1693, 7
      %v1695 = vsub.s32 %v1692, %v1694
      %v1696 = vrot.slane %v1689, %v1695
      %1698 = vst.msk [vmem:[#allocation3] sm:$0xf] %vm1602, %v1696
      %v1699 = vld [vmem:[%s583] ss:$2 sm:$0x3]
      %v1700 = vld [vmem:[%s585] ss:$2 sm:$0x3]
      %v1703 = vcombine.low %v1699, %v1700
      %v1705 = vunpack.c.l.s4 1983009808
      %v1706 = vunpack.c.0.s8 %v1705
      %v1707 = vlaneseq
      %v1708 = vshrl.u32 %v1707, 7
      %v1709 = vsub.s32 %v1706, %v1708
      %v1710 = vrot.slane %v1703, %v1709
      %1711 = vrot.lane.b32.xlu0 %v1710, 32
      %v1712 = vpop.permute.xlu0 %1711
      %vm1714 = vcmask 519424
      %1715 = vst.msk [vmem:[#allocation3] sm:$0xf] %vm1714, %v1712
      %v1716 = vld [vmem:[%s640] ss:$2 sm:$0x3]
      %v1717 = vld [vmem:[%s642] ss:$2 sm:$0x3]
      %v1720 = vcombine.low %v1716, %v1717
      %v1722 = vunpack.c.l.s4 1983009808
      %v1723 = vunpack.c.0.s8 %v1722
      %v1724 = vlaneseq
      %v1725 = vshrl.u32 %v1724, 7
      %v1726 = vsub.s32 %v1723, %v1725
      %v1727 = vrot.slane %v1720, %v1726
      %1728 = vrot.lane.b32.xlu0 %v1727, 64
      %v1729 = vpop.permute.xlu0 %1728
      %vm1731 = vcmask 781824
      %1732 = vst.msk [vmem:[#allocation3] sm:$0xf] %vm1731, %v1729
      %v1733 = vld [vmem:[%s527] ss:$2 sm:$0x3]
      %v1734 = vld [vmem:[%s698] ss:$2 sm:$0x3]
      %v1737 = vcombine.low %v1733, %v1734
      %v1739 = vunpack.c.l.s4 1983009808
      %v1740 = vunpack.c.0.s8 %v1739
      %v1741 = vlaneseq
      %v1742 = vshrl.u32 %v1741, 7
      %v1743 = vsub.s32 %v1740, %v1742
      %v1744 = vrot.slane %v1737, %v1743
      %1745 = vrot.lane.b32.xlu0 %v1744, 96
      %v1746 = vpop.permute.xlu0 %1745
      %vm1748 = vcmask 1044224
      %1749 = vst.msk [vmem:[#allocation3] sm:$0xf] %vm1748, %v1746
      %v1750 = vld [vmem:[%s753] ss:$2 sm:$0x3]
      %v1751 = vld [vmem:[%s755] ss:$2 sm:$0x3]
      %v1754 = vcombine.low %v1750, %v1751
      %v1756 = vunpack.c.l.s4 1983009808
      %v1757 = vunpack.c.0.s8 %v1756
      %v1758 = vlaneseq
      %v1759 = vshrl.u32 %v1758, 7
      %v1760 = vsub.s32 %v1757, %v1759
      %v1761 = vrot.slane %v1754, %v1760
      %1763 = vst.msk [vmem:[#allocation3 + $0x8] sm:$0xf] %vm1602, %v1761
      %v1764 = vld [vmem:[%s810] ss:$2 sm:$0x3]
      %v1765 = vld [vmem:[%s812] ss:$2 sm:$0x3]
      %v1768 = vcombine.low %v1764, %v1765
      %v1770 = vunpack.c.l.s4 1983009808
      %v1771 = vunpack.c.0.s8 %v1770
      %v1772 = vlaneseq
      %v1773 = vshrl.u32 %v1772, 7
      %v1774 = vsub.s32 %v1771, %v1773
      %v1775 = vrot.slane %v1768, %v1774
      %1776 = vrot.lane.b32.xlu0 %v1775, 32
      %v1777 = vpop.permute.xlu0 %1776
      %1779 = vst.msk [vmem:[#allocation3 + $0x8] sm:$0xf] %vm1714, %v1777
      %v1780 = vld [vmem:[%s867] ss:$2 sm:$0x3]
      %v1781 = vld [vmem:[%s869] ss:$2 sm:$0x3]
      %v1784 = vcombine.low %v1780, %v1781
      %v1786 = vunpack.c.l.s4 1983009808
      %v1787 = vunpack.c.0.s8 %v1786
      %v1788 = vlaneseq
      %v1789 = vshrl.u32 %v1788, 7
      %v1790 = vsub.s32 %v1787, %v1789
      %v1791 = vrot.slane %v1784, %v1790
      %1792 = vrot.lane.b32.xlu0 %v1791, 64
      %v1793 = vpop.permute.xlu0 %1792
      %1795 = vst.msk [vmem:[#allocation3 + $0x8] sm:$0xf] %vm1731, %v1793
      %v1796 = vld [vmem:[%s924] ss:$2 sm:$0x3]
      %v1797 = vld [vmem:[%s926] ss:$2 sm:$0x3]
      %v1800 = vcombine.low %v1796, %v1797
      %v1802 = vunpack.c.l.s4 1983009808
      %v1803 = vunpack.c.0.s8 %v1802
      %v1804 = vlaneseq
      %v1805 = vshrl.u32 %v1804, 7
      %v1806 = vsub.s32 %v1803, %v1805
      %v1807 = vrot.slane %v1800, %v1806
      %1808 = vrot.lane.b32.xlu0 %v1807, 96
      %v1809 = vpop.permute.xlu0 %1808
      %1811 = vst.msk [vmem:[#allocation3 + $0x8] sm:$0xf] %vm1748, %v1809
      %v1812 = vld [vmem:[%s981] ss:$2 sm:$0x3]
      %v1813 = vld [vmem:[%s983] ss:$2 sm:$0x3]
      %v1816 = vcombine.low %v1812, %v1813
      %v1818 = vunpack.c.l.s4 1983009808
      %v1819 = vunpack.c.0.s8 %v1818
      %v1820 = vlaneseq
      %v1821 = vshrl.u32 %v1820, 7
      %v1822 = vsub.s32 %v1819, %v1821
      %v1823 = vrot.slane %v1816, %v1822
      %1825 = vst.msk [vmem:[#allocation3 + $0x10] sm:$0xf] %vm1602, %v1823
      %v1826 = vld [vmem:[#allocation3] sm:$0xf]
      %v1827 = vld [vmem:[#allocation3 + $0x8] sm:$0xf]
      %v1828 = vld [vmem:[#allocation3 + $0x10] sm:$0xf]
      %v1829 = vld [vmem:[%s5] sm:$0xff]
      %v1830 = vld [vmem:[%s5 + $0x8] sm:$0xff]
      %v1831 = vld [vmem:[%s5 + $0x10] sm:$0xff]
      %v1832 = vld [vmem:[%s5 + $0x18] sm:$0xff]
      %v1833 = vld [vmem:[%s5 + $0x20] sm:$0xff]
      %v1834 = vld [vmem:[%s5 + $0x28] sm:$0xff]
      %v1835 = vld [vmem:[%s5 + $0x30] sm:$0xff]
      %v1836 = vld [vmem:[%s5 + $0x38] sm:$0xff]
      %v1837 = vld [vmem:[%s5 + $0x40] sm:$0xff]
      %v1838 = vld [vmem:[%s5 + $0x48] sm:$0xff]
      %v1839 = vld [vmem:[%s5 + $0x50] sm:$0xff]
      %v1840 = vld [vmem:[%s5 + $0x58] sm:$0xff]
      %v1841 = vld [vmem:[%s5 + $0x60] sm:$0xff]
      %v1842 = vld [vmem:[%s5 + $0x68] sm:$0xff]
      %v1843 = vld [vmem:[%s5 + $0x70] sm:$0xff]
      %v1844 = vld [vmem:[%s5 + $0x78] sm:$0xff]
      %v1845 = vld [vmem:[%s5 + $0x80] sm:$0xff]
      %v1846 = vld [vmem:[%s5 + $0x88] sm:$0xff]
      %v1847 = vld [vmem:[%s5 + $0x90] sm:$0xff]
      %v1848 = vld [vmem:[%s5 + $0x98] sm:$0xff]
      %v1849 = vld [vmem:[%s5 + $0xa0] sm:$0xff]
      %v1850 = vld [vmem:[%s5 + $0xa8] sm:$0xff]
      %v1851 = vld [vmem:[%s5 + $0xb0] sm:$0xff]
      %v1852 = vld [vmem:[%s5 + $0xb8] sm:$0xff]
      %v1853 = vld [vmem:[%s5 + $0xc0] sm:$0xff]
      %v1854 = vld [vmem:[%s5 + $0xc8] sm:$0xff]
      %v1855 = vld [vmem:[%s5 + $0xd0] sm:$0xff]
      %v1856 = vld [vmem:[%s5 + $0xd8] sm:$0xff]
      %v1857 = vld [vmem:[%s5 + $0xe0] sm:$0xff]
      %v1858 = vld [vmem:[%s5 + $0xe8] sm:$0xff]
      %v1859 = vld [vmem:[%s5 + $0xf0] sm:$0xff]
      %v1860 = vld [vmem:[%s5 + $0xf8] sm:$0xff]
      %v1861 = vld [vmem:[%s5 + $0x100] sm:$0xff]
      %v1862 = vld [vmem:[%s5 + $0x108] sm:$0xff]
      %v1863 = vld [vmem:[%s5 + $0x110] sm:$0xff]
      %v1864 = vld [vmem:[%s5 + $0x118] sm:$0xff]
      %v1865 = vld [vmem:[%s6] sm:$0x1]
      %v1867 = vlaneseq
      %v1868 = vshrl.u32 %v1867, 7
      %v1869 = vsub.s32 0, %v1868
      %v1870 = vrot.slane %v1865, %v1869
      %v1873 = vsel %vm1199, %v1828, 0
      %1875 = vmatprep.subr.mxu0 0.0
      %1876 = vmatpush1.msra.mxu0 %v1844
      %1877 = vmatprep.subr.mxu0 0.0
      %1878 = vmatpush1.msra.mxu0 %v1843
      %1879 = vmatprep.subr.mxu0 0.0
      %1880 = vmatpush1.msra.mxu0 %v1842
      %1881 = vmatprep.subr.mxu0 0.0
      %1882 = vmatpush1.msra.mxu0 %v1841
      %1883 = vmatprep.subr.mxu0 0.0
      %1884 = vmatpush1.msra.mxu0 %v1840
      %1885 = vmatprep.subr.mxu0 0.0
      %1886 = vmatpush1.msra.mxu0 %v1839
      %1887 = vmatprep.subr.mxu0 0.0
      %1888 = vmatpush1.msra.mxu0 %v1838
      %1889 = vmatprep.subr.mxu0 0.0
      %1890 = vmatpush1.msra.mxu0 %v1837
      %1891 = vmatprep.subr.mxu0 0.0
      %1892 = vmatpush1.msra.mxu0 %v1836
      %1893 = vmatprep.subr.mxu0 0.0
      %1894 = vmatpush1.msra.mxu0 %v1835
      %1895 = vmatprep.subr.mxu0 0.0
      %1896 = vmatpush1.msra.mxu0 %v1834
      %1897 = vmatprep.subr.mxu0 0.0
      %1898 = vmatpush1.msra.mxu0 %v1833
      %1899 = vmatprep.subr.mxu0 0.0
      %1900 = vmatpush1.msra.mxu0 %v1832
      %1901 = vmatprep.subr.mxu0 0.0
      %1902 = vmatpush1.msra.mxu0 %v1831
      %1903 = vmatprep.subr.mxu0 0.0
      %1904 = vmatpush1.msra.mxu0 %v1830
      %1905 = vmatprep.subr.mxu0 0.0
      %1906 = vmatpush1.msra.mxu0 %v1829
      %1907 = vmatprep.subr.mxu0 0.0
      %1908 = vmatpush2.msra.mxu0 %v1860
      %1909 = vmatprep.subr.mxu0 0.0
      %1910 = vmatpush2.msra.mxu0 %v1859
      %1911 = vmatprep.subr.mxu0 0.0
      %1912 = vmatpush2.msra.mxu0 %v1858
      %1913 = vmatprep.subr.mxu0 0.0
      %1914 = vmatpush2.msra.mxu0 %v1857
      %1915 = vmatprep.subr.mxu0 0.0
      %1916 = vmatpush2.msra.mxu0 %v1856
      %1917 = vmatprep.subr.mxu0 0.0
      %1918 = vmatpush2.msra.mxu0 %v1855
      %1919 = vmatprep.subr.mxu0 0.0
      %1920 = vmatpush2.msra.mxu0 %v1854
      %1921 = vmatprep.subr.mxu0 0.0
      %1922 = vmatpush2.msra.mxu0 %v1853
      %1923 = vmatprep.subr.mxu0 0.0
      %1924 = vmatpush2.msra.mxu0 %v1852
      %1925 = vmatprep.subr.mxu0 0.0
      %1926 = vmatpush2.msra.mxu0 %v1851
      %1927 = vmatprep.subr.mxu0 0.0
      %1928 = vmatpush2.msra.mxu0 %v1850
      %1929 = vmatprep.subr.mxu0 0.0
      %1930 = vmatpush2.msra.mxu0 %v1849
      %1931 = vmatprep.subr.mxu0 0.0
      %1932 = vmatpush2.msra.mxu0 %v1848
      %1933 = vmatprep.subr.mxu0 0.0
      %1934 = vmatpush2.msra.mxu0 %v1847
      %1935 = vmatprep.subr.mxu0 0.0
      %1936 = vmatpush2.msra.mxu0 %v1846
      %1937 = vmatprep.subr.mxu0 0.0
      %1938 = vmatpush2.msra.mxu0 %v1845
      %1939 = vmatprep.mubr.f32.mxu0 %v1827
      %1940 = vmatmul.mubr.f32.gmra.mxu0 %v1826
      %v1941 = vpop.f32.mrf.mxu0
      %v1942 = vadd.f32 %v1870, %v1941
      %v1943 = vpop.f32.mrf.mxu0
      %1944 = vdwg.mxu0
      %1945 = vmatprep.subr.mxu0 0.0
      %1946 = vmatpush1.msra.mxu0 0.0
      %1947 = vmatprep.subr.mxu0 0.0
      %1948 = vmatpush1.msra.mxu0 0.0
      %1949 = vmatprep.subr.mxu0 0.0
      %1950 = vmatpush1.msra.mxu0 0.0
      %1951 = vmatprep.subr.mxu0 0.0
      %1952 = vmatpush1.msra.mxu0 0.0
      %1953 = vmatprep.subr.mxu0 0.0
      %1954 = vmatpush1.msra.mxu0 0.0
      %1955 = vmatprep.subr.mxu0 0.0
      %1956 = vmatpush1.msra.mxu0 0.0
      %1957 = vmatprep.subr.mxu0 0.0
      %1958 = vmatpush1.msra.mxu0 0.0
      %1959 = vmatprep.subr.mxu0 0.0
      %1960 = vmatpush1.msra.mxu0 0.0
      %1961 = vmatprep.subr.mxu0 0.0
      %1962 = vmatpush1.msra.mxu0 0.0
      %1963 = vmatprep.subr.mxu0 0.0
      %1964 = vmatpush1.msra.mxu0 0.0
      %1965 = vmatprep.subr.mxu0 0.0
      %1966 = vmatpush1.msra.mxu0 0.0
      %1967 = vmatprep.subr.mxu0 0.0
      %1968 = vmatpush1.msra.mxu0 0.0
      %1969 = vmatprep.subr.mxu0 0.0
      %1970 = vmatpush1.msra.mxu0 %v1864
      %1971 = vmatprep.subr.mxu0 0.0
      %1972 = vmatpush1.msra.mxu0 %v1863
      %1973 = vmatprep.subr.mxu0 0.0
      %1974 = vmatpush1.msra.mxu0 %v1862
      %1975 = vmatprep.subr.mxu0 0.0
      %1976 = vmatpush1.msra.mxu0 %v1861
      %1977 = vmatprep.subr.mxu0 0.0
      %1978 = vmatpush2.msra.mxu0 0.0
      %1979 = vmatprep.subr.mxu0 0.0
      %1980 = vmatpush2.msra.mxu0 0.0
      %1981 = vmatprep.subr.mxu0 0.0
      %1982 = vmatpush2.msra.mxu0 0.0
      %1983 = vmatprep.subr.mxu0 0.0
      %1984 = vmatpush2.msra.mxu0 0.0
      %1985 = vmatprep.subr.mxu0 0.0
      %1986 = vmatpush2.msra.mxu0 0.0
      %1987 = vmatprep.subr.mxu0 0.0
      %1988 = vmatpush2.msra.mxu0 0.0
      %1989 = vmatprep.subr.mxu0 0.0
      %1990 = vmatpush2.msra.mxu0 0.0
      %1991 = vmatprep.subr.mxu0 0.0
      %1992 = vmatpush2.msra.mxu0 0.0
      %1993 = vmatprep.subr.mxu0 0.0
      %1994 = vmatpush2.msra.mxu0 0.0
      %1995 = vmatprep.subr.mxu0 0.0
      %1996 = vmatpush2.msra.mxu0 0.0
      %1997 = vmatprep.subr.mxu0 0.0
      %1998 = vmatpush2.msra.mxu0 0.0
      %1999 = vmatprep.subr.mxu0 0.0
      %2000 = vmatpush2.msra.mxu0 0.0
      %2001 = vmatprep.subr.mxu0 0.0
      %2002 = vmatpush2.msra.mxu0 0.0
      %2003 = vmatprep.subr.mxu0 0.0
      %2004 = vmatpush2.msra.mxu0 0.0
      %2005 = vmatprep.subr.mxu0 0.0
      %2006 = vmatpush2.msra.mxu0 0.0
      %2007 = vmatprep.subr.mxu0 0.0
      %2008 = vmatpush2.msra.mxu0 0.0
      %2009 = vmatprep.mubr.f32.mxu0 0.0
      %2010 = vmatmul.mubr.f32.gmra.mxu0 %v1873
      %v2011 = vpop.f32.mrf.mxu0
      %v2012 = vadd.f32 %v1942, %v2011
      %v2013 = vpop.f32.mrf.mxu0
      %2014 = vdwg.mxu0
      %v2015 = vmax.f32 %v2012, 0.0
      %v2018 = vunpack.c.l.s4 1983009808
      %v2019 = vunpack.c.0.s8 %v2018
      %v2020 = vlaneseq
      %v2021 = vshrl.u32 %v2020, 7
      %v2022 = vsub.s32 %v2019, %v2021
      %v2023 = vrot.slane %v2015, %v2022
      %v2024 = vcombine.high %v2023, %v2023
      %2027 = vst.msk [vmem:[#allocation2] sm:$0xf] %vm1602, 0.0
      %2028 = vst.msk [vmem:[#allocation2 + $0x18] sm:$0xf] %vm1602, 0.0
      %2029 = vst.msk [vmem:[#allocation2 + $0x30] sm:$0xf] %vm1602, 0.0
      %2030 = vst.msk [vmem:[#allocation2 + $0x48] sm:$0xf] %vm1602, 0.0
      %2031 = vst.msk [vmem:[%s527 + $0x1] sm:$0x3] %vm1201, %v2023
      %2032 = vst.msk [vmem:[%s527 + $0x19] sm:$0x3] %vm1201, %v2024
      %v2033 = vld [vmem:[#allocation2] sm:$0x3]
      %v2034 = vld [vmem:[#allocation2 + $0x18] sm:$0x3]
      %v2037 = vcombine.low %v2033, %v2034
      %v2039 = vunpack.c.l.s4 1983009808
      %v2040 = vunpack.c.0.s8 %v2039
      %v2041 = vlaneseq
      %v2042 = vshrl.u32 %v2041, 7
      %v2043 = vsub.s32 %v2040, %v2042
      %v2044 = vrot.slane %v2037, %v2043
      %2046 = vst.msk [vmem:[#allocation3] sm:$0xf] %vm1602, %v2044
      %v2047 = vld [vmem:[#allocation2 + $0x1] sm:$0x3]
      %v2048 = vld [vmem:[#allocation2 + $0x19] sm:$0x3]
      %v2051 = vcombine.low %v2047, %v2048
      %v2053 = vunpack.c.l.s4 1983009808
      %v2054 = vunpack.c.0.s8 %v2053
      %v2055 = vlaneseq
      %v2056 = vshrl.u32 %v2055, 7
      %v2057 = vsub.s32 %v2054, %v2056
      %v2058 = vrot.slane %v2051, %v2057
      %2059 = vrot.lane.b32.xlu0 %v2058, 32
      %v2060 = vpop.permute.xlu0 %2059
      %2062 = vst.msk [vmem:[#allocation3] sm:$0xf] %vm1714, %v2060
      %v2063 = vld [vmem:[#allocation2 + $0x2] sm:$0x3]
      %v2064 = vld [vmem:[#allocation2 + $0x1a] sm:$0x3]
      %v2067 = vcombine.low %v2063, %v2064
      %v2069 = vunpack.c.l.s4 1983009808
      %v2070 = vunpack.c.0.s8 %v2069
      %v2071 = vlaneseq
      %v2072 = vshrl.u32 %v2071, 7
      %v2073 = vsub.s32 %v2070, %v2072
      %v2074 = vrot.slane %v2067, %v2073
      %2075 = vrot.lane.b32.xlu0 %v2074, 64
      %v2076 = vpop.permute.xlu0 %2075
      %2078 = vst.msk [vmem:[#allocation3] sm:$0xf] %vm1731, %v2076
      %v2079 = vld [vmem:[%s527] sm:$0x3]
      %v2080 = vld [vmem:[%s527 + $0x18] sm:$0x3]
      %v2083 = vcombine.low %v2079, %v2080
      %v2085 = vunpack.c.l.s4 1983009808
      %v2086 = vunpack.c.0.s8 %v2085
      %v2087 = vlaneseq
      %v2088 = vshrl.u32 %v2087, 7
      %v2089 = vsub.s32 %v2086, %v2088
      %v2090 = vrot.slane %v2083, %v2089
      %2091 = vrot.lane.b32.xlu0 %v2090, 96
      %v2092 = vpop.permute.xlu0 %2091
      %2094 = vst.msk [vmem:[#allocation3] sm:$0xf] %vm1748, %v2092
      %v2095 = vld [vmem:[%s527 + $0x1] sm:$0x3]
      %v2096 = vld [vmem:[%s527 + $0x19] sm:$0x3]
      %v2099 = vcombine.low %v2095, %v2096
      %v2101 = vunpack.c.l.s4 1983009808
      %v2102 = vunpack.c.0.s8 %v2101
      %v2103 = vlaneseq
      %v2104 = vshrl.u32 %v2103, 7
      %v2105 = vsub.s32 %v2102, %v2104
      %v2106 = vrot.slane %v2099, %v2105
      %2108 = vst.msk [vmem:[#allocation3 + $0x8] sm:$0xf] %vm1602, %v2106
      %v2109 = vld [vmem:[%s527 + $0x2] sm:$0x3]
      %v2110 = vld [vmem:[%s527 + $0x1a] sm:$0x3]
      %v2113 = vcombine.low %v2109, %v2110
      %v2115 = vunpack.c.l.s4 1983009808
      %v2116 = vunpack.c.0.s8 %v2115
      %v2117 = vlaneseq
      %v2118 = vshrl.u32 %v2117, 7
      %v2119 = vsub.s32 %v2116, %v2118
      %v2120 = vrot.slane %v2113, %v2119
      %2121 = vrot.lane.b32.xlu0 %v2120, 32
      %v2122 = vpop.permute.xlu0 %2121
      %2124 = vst.msk [vmem:[#allocation3 + $0x8] sm:$0xf] %vm1714, %v2122
      %v2125 = vld [vmem:[%s867] sm:$0x3]
      %v2126 = vld [vmem:[%s867 + $0x18] sm:$0x3]
      %v2129 = vcombine.low %v2125, %v2126
      %v2131 = vunpack.c.l.s4 1983009808
      %v2132 = vunpack.c.0.s8 %v2131
      %v2133 = vlaneseq
      %v2134 = vshrl.u32 %v2133, 7
      %v2135 = vsub.s32 %v2132, %v2134
      %v2136 = vrot.slane %v2129, %v2135
      %2137 = vrot.lane.b32.xlu0 %v2136, 64
      %v2138 = vpop.permute.xlu0 %2137
      %2140 = vst.msk [vmem:[#allocation3 + $0x8] sm:$0xf] %vm1731, %v2138
      %v2141 = vld [vmem:[%s867 + $0x1] sm:$0x3]
      %v2142 = vld [vmem:[%s867 + $0x19] sm:$0x3]
      %v2145 = vcombine.low %v2141, %v2142
      %v2147 = vunpack.c.l.s4 1983009808
      %v2148 = vunpack.c.0.s8 %v2147
      %v2149 = vlaneseq
      %v2150 = vshrl.u32 %v2149, 7
      %v2151 = vsub.s32 %v2148, %v2150
      %v2152 = vrot.slane %v2145, %v2151
      %2153 = vrot.lane.b32.xlu0 %v2152, 96
      %v2154 = vpop.permute.xlu0 %2153
      %2156 = vst.msk [vmem:[#allocation3 + $0x8] sm:$0xf] %vm1748, %v2154
      %v2157 = vld [vmem:[%s867 + $0x2] sm:$0x3]
      %v2158 = vld [vmem:[%s867 + $0x1a] sm:$0x3]
      %v2161 = vcombine.low %v2157, %v2158
      %v2163 = vunpack.c.l.s4 1983009808
      %v2164 = vunpack.c.0.s8 %v2163
      %v2165 = vlaneseq
      %v2166 = vshrl.u32 %v2165, 7
      %v2167 = vsub.s32 %v2164, %v2166
      %v2168 = vrot.slane %v2161, %v2167
      %2170 = vst.msk [vmem:[#allocation3 + $0x10] sm:$0xf] %vm1602, %v2168
      %v2171 = vld [vmem:[#allocation3] sm:$0xf]
      %v2172 = vld [vmem:[#allocation3 + $0x8] sm:$0xf]
      %v2173 = vld [vmem:[#allocation3 + $0x10] sm:$0xf]
      %v2174 = vld [vmem:[%s7] sm:$0xff]
      %v2175 = vld [vmem:[%s7 + $0x8] sm:$0xff]
      %v2176 = vld [vmem:[%s7 + $0x10] sm:$0xff]
      %v2177 = vld [vmem:[%s7 + $0x18] sm:$0xff]
      %v2178 = vld [vmem:[%s7 + $0x20] sm:$0xff]
      %v2179 = vld [vmem:[%s7 + $0x28] sm:$0xff]
      %v2180 = vld [vmem:[%s7 + $0x30] sm:$0xff]
      %v2181 = vld [vmem:[%s7 + $0x38] sm:$0xff]
      %v2182 = vld [vmem:[%s7 + $0x40] sm:$0xff]
      %v2183 = vld [vmem:[%s7 + $0x48] sm:$0xff]
      %v2184 = vld [vmem:[%s7 + $0x50] sm:$0xff]
      %v2185 = vld [vmem:[%s7 + $0x58] sm:$0xff]
      %v2186 = vld [vmem:[%s7 + $0x60] sm:$0xff]
      %v2187 = vld [vmem:[%s7 + $0x68] sm:$0xff]
      %v2188 = vld [vmem:[%s7 + $0x70] sm:$0xff]
      %v2189 = vld [vmem:[%s7 + $0x78] sm:$0xff]
      %v2190 = vld [vmem:[%s7 + $0x80] sm:$0xff]
      %v2191 = vld [vmem:[%s7 + $0x88] sm:$0xff]
      %v2192 = vld [vmem:[%s7 + $0x90] sm:$0xff]
      %v2193 = vld [vmem:[%s7 + $0x98] sm:$0xff]
      %v2194 = vld [vmem:[%s7 + $0xa0] sm:$0xff]
      %v2195 = vld [vmem:[%s7 + $0xa8] sm:$0xff]
      %v2196 = vld [vmem:[%s7 + $0xb0] sm:$0xff]
      %v2197 = vld [vmem:[%s7 + $0xb8] sm:$0xff]
      %v2198 = vld [vmem:[%s7 + $0xc0] sm:$0xff]
      %v2199 = vld [vmem:[%s7 + $0xc8] sm:$0xff]
      %v2200 = vld [vmem:[%s7 + $0xd0] sm:$0xff]
      %v2201 = vld [vmem:[%s7 + $0xd8] sm:$0xff]
      %v2202 = vld [vmem:[%s7 + $0xe0] sm:$0xff]
      %v2203 = vld [vmem:[%s7 + $0xe8] sm:$0xff]
      %v2204 = vld [vmem:[%s7 + $0xf0] sm:$0xff]
      %v2205 = vld [vmem:[%s7 + $0xf8] sm:$0xff]
      %v2206 = vld [vmem:[%s7 + $0x100] sm:$0xff]
      %v2207 = vld [vmem:[%s7 + $0x108] sm:$0xff]
      %v2208 = vld [vmem:[%s7 + $0x110] sm:$0xff]
      %v2209 = vld [vmem:[%s7 + $0x118] sm:$0xff]
      %v2210 = vld [vmem:[%s8] sm:$0x1]
      %v2212 = vlaneseq
      %v2213 = vshrl.u32 %v2212, 7
      %v2214 = vsub.s32 0, %v2213
      %v2215 = vrot.slane %v2210, %v2214
      %v2218 = vsel %vm1199, %v2173, 0
      %2220 = vmatprep.subr.mxu0 0.0
      %2221 = vmatpush1.msra.mxu0 %v2189
      %2222 = vmatprep.subr.mxu0 0.0
      %2223 = vmatpush1.msra.mxu0 %v2188
      %2224 = vmatprep.subr.mxu0 0.0
      %2225 = vmatpush1.msra.mxu0 %v2187
      %2226 = vmatprep.subr.mxu0 0.0
      %2227 = vmatpush1.msra.mxu0 %v2186
      %2228 = vmatprep.subr.mxu0 0.0
      %2229 = vmatpush1.msra.mxu0 %v2185
      %2230 = vmatprep.subr.mxu0 0.0
      %2231 = vmatpush1.msra.mxu0 %v2184
      %2232 = vmatprep.subr.mxu0 0.0
      %2233 = vmatpush1.msra.mxu0 %v2183
      %2234 = vmatprep.subr.mxu0 0.0
      %2235 = vmatpush1.msra.mxu0 %v2182
      %2236 = vmatprep.subr.mxu0 0.0
      %2237 = vmatpush1.msra.mxu0 %v2181
      %2238 = vmatprep.subr.mxu0 0.0
      %2239 = vmatpush1.msra.mxu0 %v2180
      %2240 = vmatprep.subr.mxu0 0.0
      %2241 = vmatpush1.msra.mxu0 %v2179
      %2242 = vmatprep.subr.mxu0 0.0
      %2243 = vmatpush1.msra.mxu0 %v2178
      %2244 = vmatprep.subr.mxu0 0.0
      %2245 = vmatpush1.msra.mxu0 %v2177
      %2246 = vmatprep.subr.mxu0 0.0
      %2247 = vmatpush1.msra.mxu0 %v2176
      %2248 = vmatprep.subr.mxu0 0.0
      %2249 = vmatpush1.msra.mxu0 %v2175
      %2250 = vmatprep.subr.mxu0 0.0
      %2251 = vmatpush1.msra.mxu0 %v2174
      %2252 = vmatprep.subr.mxu0 0.0
      %2253 = vmatpush2.msra.mxu0 %v2205
      %2254 = vmatprep.subr.mxu0 0.0
      %2255 = vmatpush2.msra.mxu0 %v2204
      %2256 = vmatprep.subr.mxu0 0.0
      %2257 = vmatpush2.msra.mxu0 %v2203
      %2258 = vmatprep.subr.mxu0 0.0
      %2259 = vmatpush2.msra.mxu0 %v2202
      %2260 = vmatprep.subr.mxu0 0.0
      %2261 = vmatpush2.msra.mxu0 %v2201
      %2262 = vmatprep.subr.mxu0 0.0
      %2263 = vmatpush2.msra.mxu0 %v2200
      %2264 = vmatprep.subr.mxu0 0.0
      %2265 = vmatpush2.msra.mxu0 %v2199
      %2266 = vmatprep.subr.mxu0 0.0
      %2267 = vmatpush2.msra.mxu0 %v2198
      %2268 = vmatprep.subr.mxu0 0.0
      %2269 = vmatpush2.msra.mxu0 %v2197
      %2270 = vmatprep.subr.mxu0 0.0
      %2271 = vmatpush2.msra.mxu0 %v2196
      %2272 = vmatprep.subr.mxu0 0.0
      %2273 = vmatpush2.msra.mxu0 %v2195
      %2274 = vmatprep.subr.mxu0 0.0
      %2275 = vmatpush2.msra.mxu0 %v2194
      %2276 = vmatprep.subr.mxu0 0.0
      %2277 = vmatpush2.msra.mxu0 %v2193
      %2278 = vmatprep.subr.mxu0 0.0
      %2279 = vmatpush2.msra.mxu0 %v2192
      %2280 = vmatprep.subr.mxu0 0.0
      %2281 = vmatpush2.msra.mxu0 %v2191
      %2282 = vmatprep.subr.mxu0 0.0
      %2283 = vmatpush2.msra.mxu0 %v2190
      %2284 = vmatprep.mubr.f32.mxu0 %v2172
      %2285 = vmatmul.mubr.f32.gmra.mxu0 %v2171
      %v2286 = vpop.f32.mrf.mxu0
      %v2287 = vadd.f32 %v2215, %v2286
      %v2288 = vpop.f32.mrf.mxu0
      %2289 = vdwg.mxu0
      %2290 = vmatprep.subr.mxu0 0.0
      %2291 = vmatpush1.msra.mxu0 0.0
      %2292 = vmatprep.subr.mxu0 0.0
      %2293 = vmatpush1.msra.mxu0 0.0
      %2294 = vmatprep.subr.mxu0 0.0
      %2295 = vmatpush1.msra.mxu0 0.0
      %2296 = vmatprep.subr.mxu0 0.0
      %2297 = vmatpush1.msra.mxu0 0.0
      %2298 = vmatprep.subr.mxu0 0.0
      %2299 = vmatpush1.msra.mxu0 0.0
      %2300 = vmatprep.subr.mxu0 0.0
      %2301 = vmatpush1.msra.mxu0 0.0
      %2302 = vmatprep.subr.mxu0 0.0
      %2303 = vmatpush1.msra.mxu0 0.0
      %2304 = vmatprep.subr.mxu0 0.0
      %2305 = vmatpush1.msra.mxu0 0.0
      %2306 = vmatprep.subr.mxu0 0.0
      %2307 = vmatpush1.msra.mxu0 0.0
      %2308 = vmatprep.subr.mxu0 0.0
      %2309 = vmatpush1.msra.mxu0 0.0
      %2310 = vmatprep.subr.mxu0 0.0
      %2311 = vmatpush1.msra.mxu0 0.0
      %2312 = vmatprep.subr.mxu0 0.0
      %2313 = vmatpush1.msra.mxu0 0.0
      %2314 = vmatprep.subr.mxu0 0.0
      %2315 = vmatpush1.msra.mxu0 %v2209
      %2316 = vmatprep.subr.mxu0 0.0
      %2317 = vmatpush1.msra.mxu0 %v2208
      %2318 = vmatprep.subr.mxu0 0.0
      %2319 = vmatpush1.msra.mxu0 %v2207
      %2320 = vmatprep.subr.mxu0 0.0
      %2321 = vmatpush1.msra.mxu0 %v2206
      %2322 = vmatprep.subr.mxu0 0.0
      %2323 = vmatpush2.msra.mxu0 0.0
      %2324 = vmatprep.subr.mxu0 0.0
      %2325 = vmatpush2.msra.mxu0 0.0
      %2326 = vmatprep.subr.mxu0 0.0
      %2327 = vmatpush2.msra.mxu0 0.0
      %2328 = vmatprep.subr.mxu0 0.0
      %2329 = vmatpush2.msra.mxu0 0.0
      %2330 = vmatprep.subr.mxu0 0.0
      %2331 = vmatpush2.msra.mxu0 0.0
      %2332 = vmatprep.subr.mxu0 0.0
      %2333 = vmatpush2.msra.mxu0 0.0
      %2334 = vmatprep.subr.mxu0 0.0
      %2335 = vmatpush2.msra.mxu0 0.0
      %2336 = vmatprep.subr.mxu0 0.0
      %2337 = vmatpush2.msra.mxu0 0.0
      %2338 = vmatprep.subr.mxu0 0.0
      %2339 = vmatpush2.msra.mxu0 0.0
      %2340 = vmatprep.subr.mxu0 0.0
      %2341 = vmatpush2.msra.mxu0 0.0
      %2342 = vmatprep.subr.mxu0 0.0
      %2343 = vmatpush2.msra.mxu0 0.0
      %2344 = vmatprep.subr.mxu0 0.0
      %2345 = vmatpush2.msra.mxu0 0.0
      %2346 = vmatprep.subr.mxu0 0.0
      %2347 = vmatpush2.msra.mxu0 0.0
      %2348 = vmatprep.subr.mxu0 0.0
      %2349 = vmatpush2.msra.mxu0 0.0
      %2350 = vmatprep.subr.mxu0 0.0
      %2351 = vmatpush2.msra.mxu0 0.0
      %2352 = vmatprep.subr.mxu0 0.0
      %2353 = vmatpush2.msra.mxu0 0.0
      %2354 = vmatprep.mubr.f32.mxu0 0.0
      %2355 = vmatmul.mubr.f32.gmra.mxu0 %v2218
      %v2356 = vpop.f32.mrf.mxu0
      %v2357 = vadd.f32 %v2287, %v2356
      %v2358 = vpop.f32.mrf.mxu0
      %2359 = vdwg.mxu0
      %v2360 = vmax.f32 %v2357, 0.0
      %v2363 = vunpack.c.l.s4 1983009808
      %v2364 = vunpack.c.0.s8 %v2363
      %v2365 = vlaneseq
      %v2366 = vshrl.u32 %v2365, 7
      %v2367 = vsub.s32 %v2364, %v2366
      %v2368 = vrot.slane %v2360, %v2367
      %v2369 = vcombine.high %v2368, %v2368
      %2372 = vst.msk [vmem:[#allocation2] sm:$0xf] %vm1602, -inf
      %2373 = vst.msk [vmem:[#allocation2 + $0x18] sm:$0xf] %vm1602, -inf
      %2374 = vst.msk [vmem:[#allocation2 + $0x30] sm:$0xf] %vm1602, -inf
      %2375 = vst.msk [vmem:[#allocation2 + $0x48] sm:$0xf] %vm1602, -inf
      %2376 = vst.msk [vmem:[%s527 + $0x1] sm:$0x3] %vm1201, %v2368
      %2377 = vst.msk [vmem:[%s527 + $0x19] sm:$0x3] %vm1201, %v2369
      %v2378 = vld [vmem:[#allocation2] sm:$0x3]
      %v2379 = vld [vmem:[#allocation2 + $0x18] sm:$0x3]
      %v2380 = vld [vmem:[#allocation2 + $0x1] sm:$0x3]
      %v2381 = vld [vmem:[#allocation2 + $0x19] sm:$0x3]
      %v2382 = vmax.f32 %v2378, %v2380
      %v2383 = vmax.f32 %v2379, %v2381
      %v2384 = vld [vmem:[#allocation2 + $0x2] sm:$0x3]
      %v2385 = vld [vmem:[#allocation2 + $0x1a] sm:$0x3]
      %v2386 = vmax.f32 %v2382, %v2384
      %v2387 = vmax.f32 %v2383, %v2385
      %v2388 = vld [vmem:[%s527] sm:$0x3]
      %v2389 = vld [vmem:[%s527 + $0x18] sm:$0x3]
      %v2390 = vmax.f32 %v2386, %v2388
      %v2391 = vmax.f32 %v2387, %v2389
      %v2392 = vld [vmem:[%s527 + $0x1] sm:$0x3]
      %v2393 = vld [vmem:[%s527 + $0x19] sm:$0x3]
      %v2394 = vmax.f32 %v2390, %v2392
      %v2395 = vmax.f32 %v2391, %v2393
      %v2396 = vld [vmem:[%s527 + $0x2] sm:$0x3]
      %v2397 = vld [vmem:[%s527 + $0x1a] sm:$0x3]
      %v2398 = vmax.f32 %v2394, %v2396
      %v2399 = vmax.f32 %v2395, %v2397
      %v2400 = vld [vmem:[%s867] sm:$0x3]
      %v2401 = vld [vmem:[%s867 + $0x18] sm:$0x3]
      %v2402 = vmax.f32 %v2398, %v2400
      %v2403 = vmax.f32 %v2399, %v2401
      %v2404 = vld [vmem:[%s867 + $0x1] sm:$0x3]
      %v2405 = vld [vmem:[%s867 + $0x19] sm:$0x3]
      %v2406 = vmax.f32 %v2402, %v2404
      %v2407 = vmax.f32 %v2403, %v2405
      %v2408 = vld [vmem:[%s867 + $0x2] sm:$0x3]
      %v2409 = vld [vmem:[%s867 + $0x1a] sm:$0x3]
      %v2410 = vmax.f32 %v2406, %v2408
      %v2411 = vmax.f32 %v2407, %v2409
      %2412 = vst.msk [vmem:[#allocation2] sm:$0xf] %vm1602, 0.0
      %2413 = vst.msk [vmem:[#allocation2 + $0x18] sm:$0xf] %vm1602, 0.0
      %2414 = vst.msk [vmem:[#allocation2 + $0x30] sm:$0xf] %vm1602, 0.0
      %2415 = vst.msk [vmem:[#allocation2 + $0x48] sm:$0xf] %vm1602, 0.0
      %2416 = vst.msk [vmem:[%s527 + $0x1] sm:$0x3] %vm1201, %v2410
      %2417 = vst.msk [vmem:[%s527 + $0x19] sm:$0x3] %vm1201, %v2411
      %v2418 = vld [vmem:[#allocation2] sm:$0x3]
      %v2419 = vld [vmem:[#allocation2 + $0x18] sm:$0x3]
      %v2422 = vcombine.low %v2418, %v2419
      %v2424 = vunpack.c.l.s4 1983009808
      %v2425 = vunpack.c.0.s8 %v2424
      %v2426 = vlaneseq
      %v2427 = vshrl.u32 %v2426, 7
      %v2428 = vsub.s32 %v2425, %v2427
      %v2429 = vrot.slane %v2422, %v2428
      %2431 = vst.msk [vmem:[#allocation3] sm:$0xf] %vm1602, %v2429
      %v2432 = vld [vmem:[#allocation2 + $0x1] sm:$0x3]
      %v2433 = vld [vmem:[#allocation2 + $0x19] sm:$0x3]
      %v2436 = vcombine.low %v2432, %v2433
      %v2438 = vunpack.c.l.s4 1983009808
      %v2439 = vunpack.c.0.s8 %v2438
      %v2440 = vlaneseq
      %v2441 = vshrl.u32 %v2440, 7
      %v2442 = vsub.s32 %v2439, %v2441
      %v2443 = vrot.slane %v2436, %v2442
      %2444 = vrot.lane.b32.xlu0 %v2443, 32
      %v2445 = vpop.permute.xlu0 %2444
      %2447 = vst.msk [vmem:[#allocation3] sm:$0xf] %vm1714, %v2445
      %v2448 = vld [vmem:[#allocation2 + $0x2] sm:$0x3]
      %v2449 = vld [vmem:[#allocation2 + $0x1a] sm:$0x3]
      %v2452 = vcombine.low %v2448, %v2449
      %v2454 = vunpack.c.l.s4 1983009808
      %v2455 = vunpack.c.0.s8 %v2454
      %v2456 = vlaneseq
      %v2457 = vshrl.u32 %v2456, 7
      %v2458 = vsub.s32 %v2455, %v2457
      %v2459 = vrot.slane %v2452, %v2458
      %2460 = vrot.lane.b32.xlu0 %v2459, 64
      %v2461 = vpop.permute.xlu0 %2460
      %2463 = vst.msk [vmem:[#allocation3] sm:$0xf] %vm1731, %v2461
      %v2464 = vld [vmem:[%s527] sm:$0x3]
      %v2465 = vld [vmem:[%s527 + $0x18] sm:$0x3]
      %v2468 = vcombine.low %v2464, %v2465
      %v2470 = vunpack.c.l.s4 1983009808
      %v2471 = vunpack.c.0.s8 %v2470
      %v2472 = vlaneseq
      %v2473 = vshrl.u32 %v2472, 7
      %v2474 = vsub.s32 %v2471, %v2473
      %v2475 = vrot.slane %v2468, %v2474
      %2476 = vrot.lane.b32.xlu0 %v2475, 96
      %v2477 = vpop.permute.xlu0 %2476
      %2479 = vst.msk [vmem:[#allocation3] sm:$0xf] %vm1748, %v2477
      %v2480 = vld [vmem:[%s527 + $0x1] sm:$0x3]
      %v2481 = vld [vmem:[%s527 + $0x19] sm:$0x3]
      %v2484 = vcombine.low %v2480, %v2481
      %v2486 = vunpack.c.l.s4 1983009808
      %v2487 = vunpack.c.0.s8 %v2486
      %v2488 = vlaneseq
      %v2489 = vshrl.u32 %v2488, 7
      %v2490 = vsub.s32 %v2487, %v2489
      %v2491 = vrot.slane %v2484, %v2490
      %2493 = vst.msk [vmem:[#allocation3 + $0x8] sm:$0xf] %vm1602, %v2491
      %v2494 = vld [vmem:[%s527 + $0x2] sm:$0x3]
      %v2495 = vld [vmem:[%s527 + $0x1a] sm:$0x3]
      %v2498 = vcombine.low %v2494, %v2495
      %v2500 = vunpack.c.l.s4 1983009808
      %v2501 = vunpack.c.0.s8 %v2500
      %v2502 = vlaneseq
      %v2503 = vshrl.u32 %v2502, 7
      %v2504 = vsub.s32 %v2501, %v2503
      %v2505 = vrot.slane %v2498, %v2504
      %2506 = vrot.lane.b32.xlu0 %v2505, 32
      %v2507 = vpop.permute.xlu0 %2506
      %2509 = vst.msk [vmem:[#allocation3 + $0x8] sm:$0xf] %vm1714, %v2507
      %v2510 = vld [vmem:[%s867] sm:$0x3]
      %v2511 = vld [vmem:[%s867 + $0x18] sm:$0x3]
      %v2514 = vcombine.low %v2510, %v2511
      %v2516 = vunpack.c.l.s4 1983009808
      %v2517 = vunpack.c.0.s8 %v2516
      %v2518 = vlaneseq
      %v2519 = vshrl.u32 %v2518, 7
      %v2520 = vsub.s32 %v2517, %v2519
      %v2521 = vrot.slane %v2514, %v2520
      %2522 = vrot.lane.b32.xlu0 %v2521, 64
      %v2523 = vpop.permute.xlu0 %2522
      %2525 = vst.msk [vmem:[#allocation3 + $0x8] sm:$0xf] %vm1731, %v2523
      %v2526 = vld [vmem:[%s867 + $0x1] sm:$0x3]
      %v2527 = vld [vmem:[%s867 + $0x19] sm:$0x3]
      %v2530 = vcombine.low %v2526, %v2527
      %v2532 = vunpack.c.l.s4 1983009808
      %v2533 = vunpack.c.0.s8 %v2532
      %v2534 = vlaneseq
      %v2535 = vshrl.u32 %v2534, 7
      %v2536 = vsub.s32 %v2533, %v2535
      %v2537 = vrot.slane %v2530, %v2536
      %2538 = vrot.lane.b32.xlu0 %v2537, 96
      %v2539 = vpop.permute.xlu0 %2538
      %2541 = vst.msk [vmem:[#allocation3 + $0x8] sm:$0xf] %vm1748, %v2539
      %v2542 = vld [vmem:[%s867 + $0x2] sm:$0x3]
      %v2543 = vld [vmem:[%s867 + $0x1a] sm:$0x3]
      %v2546 = vcombine.low %v2542, %v2543
      %v2548 = vunpack.c.l.s4 1983009808
      %v2549 = vunpack.c.0.s8 %v2548
      %v2550 = vlaneseq
      %v2551 = vshrl.u32 %v2550, 7
      %v2552 = vsub.s32 %v2549, %v2551
      %v2553 = vrot.slane %v2546, %v2552
      %2555 = vst.msk [vmem:[#allocation3 + $0x10] sm:$0xf] %vm1602, %v2553
      %v2556 = vld [vmem:[#allocation3] sm:$0xf]
      %v2557 = vld [vmem:[#allocation3 + $0x8] sm:$0xf]
      %v2558 = vld [vmem:[#allocation3 + $0x10] sm:$0xf]
      %v2559 = vld [vmem:[%s9] sm:$0xff]
      %v2560 = vld [vmem:[%s9 + $0x8] sm:$0xff]
      %v2561 = vld [vmem:[%s9 + $0x10] sm:$0xff]
      %v2562 = vld [vmem:[%s9 + $0x18] sm:$0xff]
      %v2563 = vld [vmem:[%s9 + $0x20] sm:$0xff]
      %v2564 = vld [vmem:[%s9 + $0x28] sm:$0xff]
      %v2565 = vld [vmem:[%s9 + $0x30] sm:$0xff]
      %v2566 = vld [vmem:[%s9 + $0x38] sm:$0xff]
      %v2567 = vld [vmem:[%s9 + $0x40] sm:$0xff]
      %v2568 = vld [vmem:[%s9 + $0x48] sm:$0xff]
      %v2569 = vld [vmem:[%s9 + $0x50] sm:$0xff]
      %v2570 = vld [vmem:[%s9 + $0x58] sm:$0xff]
      %v2571 = vld [vmem:[%s9 + $0x60] sm:$0xff]
      %v2572 = vld [vmem:[%s9 + $0x68] sm:$0xff]
      %v2573 = vld [vmem:[%s9 + $0x70] sm:$0xff]
      %v2574 = vld [vmem:[%s9 + $0x78] sm:$0xff]
      %v2575 = vld [vmem:[%s9 + $0x80] sm:$0xff]
      %v2576 = vld [vmem:[%s9 + $0x88] sm:$0xff]
      %v2577 = vld [vmem:[%s9 + $0x90] sm:$0xff]
      %v2578 = vld [vmem:[%s9 + $0x98] sm:$0xff]
      %v2579 = vld [vmem:[%s9 + $0xa0] sm:$0xff]
      %v2580 = vld [vmem:[%s9 + $0xa8] sm:$0xff]
      %v2581 = vld [vmem:[%s9 + $0xb0] sm:$0xff]
      %v2582 = vld [vmem:[%s9 + $0xb8] sm:$0xff]
      %v2583 = vld [vmem:[%s9 + $0xc0] sm:$0xff]
      %v2584 = vld [vmem:[%s9 + $0xc8] sm:$0xff]
      %v2585 = vld [vmem:[%s9 + $0xd0] sm:$0xff]
      %v2586 = vld [vmem:[%s9 + $0xd8] sm:$0xff]
      %v2587 = vld [vmem:[%s9 + $0xe0] sm:$0xff]
      %v2588 = vld [vmem:[%s9 + $0xe8] sm:$0xff]
      %v2589 = vld [vmem:[%s9 + $0xf0] sm:$0xff]
      %v2590 = vld [vmem:[%s9 + $0xf8] sm:$0xff]
      %v2591 = vld [vmem:[%s9 + $0x100] sm:$0xff]
      %v2592 = vld [vmem:[%s9 + $0x108] sm:$0xff]
      %v2593 = vld [vmem:[%s9 + $0x110] sm:$0xff]
      %v2594 = vld [vmem:[%s9 + $0x118] sm:$0xff]
      %v2595 = vld [vmem:[%s10] sm:$0x1]
      %v2597 = vlaneseq
      %v2598 = vshrl.u32 %v2597, 7
      %v2599 = vsub.s32 0, %v2598
      %v2600 = vrot.slane %v2595, %v2599
      %v2603 = vsel %vm1199, %v2558, 0
      %2605 = vmatprep.subr.mxu0 0.0
      %2606 = vmatpush1.msra.mxu0 %v2574
      %2607 = vmatprep.subr.mxu0 0.0
      %2608 = vmatpush1.msra.mxu0 %v2573
      %2609 = vmatprep.subr.mxu0 0.0
      %2610 = vmatpush1.msra.mxu0 %v2572
      %2611 = vmatprep.subr.mxu0 0.0
      %2612 = vmatpush1.msra.mxu0 %v2571
      %2613 = vmatprep.subr.mxu0 0.0
      %2614 = vmatpush1.msra.mxu0 %v2570
      %2615 = vmatprep.subr.mxu0 0.0
      %2616 = vmatpush1.msra.mxu0 %v2569
      %2617 = vmatprep.subr.mxu0 0.0
      %2618 = vmatpush1.msra.mxu0 %v2568
      %2619 = vmatprep.subr.mxu0 0.0
      %2620 = vmatpush1.msra.mxu0 %v2567
      %2621 = vmatprep.subr.mxu0 0.0
      %2622 = vmatpush1.msra.mxu0 %v2566
      %2623 = vmatprep.subr.mxu0 0.0
      %2624 = vmatpush1.msra.mxu0 %v2565
      %2625 = vmatprep.subr.mxu0 0.0
      %2626 = vmatpush1.msra.mxu0 %v2564
      %2627 = vmatprep.subr.mxu0 0.0
      %2628 = vmatpush1.msra.mxu0 %v2563
      %2629 = vmatprep.subr.mxu0 0.0
      %2630 = vmatpush1.msra.mxu0 %v2562
      %2631 = vmatprep.subr.mxu0 0.0
      %2632 = vmatpush1.msra.mxu0 %v2561
      %2633 = vmatprep.subr.mxu0 0.0
      %2634 = vmatpush1.msra.mxu0 %v2560
      %2635 = vmatprep.subr.mxu0 0.0
      %2636 = vmatpush1.msra.mxu0 %v2559
      %2637 = vmatprep.subr.mxu0 0.0
      %2638 = vmatpush2.msra.mxu0 %v2590
      %2639 = vmatprep.subr.mxu0 0.0
      %2640 = vmatpush2.msra.mxu0 %v2589
      %2641 = vmatprep.subr.mxu0 0.0
      %2642 = vmatpush2.msra.mxu0 %v2588
      %2643 = vmatprep.subr.mxu0 0.0
      %2644 = vmatpush2.msra.mxu0 %v2587
      %2645 = vmatprep.subr.mxu0 0.0
      %2646 = vmatpush2.msra.mxu0 %v2586
      %2647 = vmatprep.subr.mxu0 0.0
      %2648 = vmatpush2.msra.mxu0 %v2585
      %2649 = vmatprep.subr.mxu0 0.0
      %2650 = vmatpush2.msra.mxu0 %v2584
      %2651 = vmatprep.subr.mxu0 0.0
      %2652 = vmatpush2.msra.mxu0 %v2583
      %2653 = vmatprep.subr.mxu0 0.0
      %2654 = vmatpush2.msra.mxu0 %v2582
      %2655 = vmatprep.subr.mxu0 0.0
      %2656 = vmatpush2.msra.mxu0 %v2581
      %2657 = vmatprep.subr.mxu0 0.0
      %2658 = vmatpush2.msra.mxu0 %v2580
      %2659 = vmatprep.subr.mxu0 0.0
      %2660 = vmatpush2.msra.mxu0 %v2579
      %2661 = vmatprep.subr.mxu0 0.0
      %2662 = vmatpush2.msra.mxu0 %v2578
      %2663 = vmatprep.subr.mxu0 0.0
      %2664 = vmatpush2.msra.mxu0 %v2577
      %2665 = vmatprep.subr.mxu0 0.0
      %2666 = vmatpush2.msra.mxu0 %v2576
      %2667 = vmatprep.subr.mxu0 0.0
      %2668 = vmatpush2.msra.mxu0 %v2575
      %2669 = vmatprep.mubr.f32.mxu0 %v2557
      %2670 = vmatmul.mubr.f32.gmra.mxu0 %v2556
      %v2671 = vpop.f32.mrf.mxu0
      %v2672 = vadd.f32 %v2600, %v2671
      %v2673 = vpop.f32.mrf.mxu0
      %2674 = vdwg.mxu0
      %2675 = vmatprep.subr.mxu0 0.0
      %2676 = vmatpush1.msra.mxu0 0.0
      %2677 = vmatprep.subr.mxu0 0.0
      %2678 = vmatpush1.msra.mxu0 0.0
      %2679 = vmatprep.subr.mxu0 0.0
      %2680 = vmatpush1.msra.mxu0 0.0
      %2681 = vmatprep.subr.mxu0 0.0
      %2682 = vmatpush1.msra.mxu0 0.0
      %2683 = vmatprep.subr.mxu0 0.0
      %2684 = vmatpush1.msra.mxu0 0.0
      %2685 = vmatprep.subr.mxu0 0.0
      %2686 = vmatpush1.msra.mxu0 0.0
      %2687 = vmatprep.subr.mxu0 0.0
      %2688 = vmatpush1.msra.mxu0 0.0
      %2689 = vmatprep.subr.mxu0 0.0
      %2690 = vmatpush1.msra.mxu0 0.0
      %2691 = vmatprep.subr.mxu0 0.0
      %2692 = vmatpush1.msra.mxu0 0.0
      %2693 = vmatprep.subr.mxu0 0.0
      %2694 = vmatpush1.msra.mxu0 0.0
      %2695 = vmatprep.subr.mxu0 0.0
      %2696 = vmatpush1.msra.mxu0 0.0
      %2697 = vmatprep.subr.mxu0 0.0
      %2698 = vmatpush1.msra.mxu0 0.0
      %2699 = vmatprep.subr.mxu0 0.0
      %2700 = vmatpush1.msra.mxu0 %v2594
      %2701 = vmatprep.subr.mxu0 0.0
      %2702 = vmatpush1.msra.mxu0 %v2593
      %2703 = vmatprep.subr.mxu0 0.0
      %2704 = vmatpush1.msra.mxu0 %v2592
      %2705 = vmatprep.subr.mxu0 0.0
      %2706 = vmatpush1.msra.mxu0 %v2591
      %2707 = vmatprep.subr.mxu0 0.0
      %2708 = vmatpush2.msra.mxu0 0.0
      %2709 = vmatprep.subr.mxu0 0.0
      %2710 = vmatpush2.msra.mxu0 0.0
      %2711 = vmatprep.subr.mxu0 0.0
      %2712 = vmatpush2.msra.mxu0 0.0
      %2713 = vmatprep.subr.mxu0 0.0
      %2714 = vmatpush2.msra.mxu0 0.0
      %2715 = vmatprep.subr.mxu0 0.0
      %2716 = vmatpush2.msra.mxu0 0.0
      %2717 = vmatprep.subr.mxu0 0.0
      %2718 = vmatpush2.msra.mxu0 0.0
      %2719 = vmatprep.subr.mxu0 0.0
      %2720 = vmatpush2.msra.mxu0 0.0
      %2721 = vmatprep.subr.mxu0 0.0
      %2722 = vmatpush2.msra.mxu0 0.0
      %2723 = vmatprep.subr.mxu0 0.0
      %2724 = vmatpush2.msra.mxu0 0.0
      %2725 = vmatprep.subr.mxu0 0.0
      %2726 = vmatpush2.msra.mxu0 0.0
      %2727 = vmatprep.subr.mxu0 0.0
      %2728 = vmatpush2.msra.mxu0 0.0
      %2729 = vmatprep.subr.mxu0 0.0
      %2730 = vmatpush2.msra.mxu0 0.0
      %2731 = vmatprep.subr.mxu0 0.0
      %2732 = vmatpush2.msra.mxu0 0.0
      %2733 = vmatprep.subr.mxu0 0.0
      %2734 = vmatpush2.msra.mxu0 0.0
      %2735 = vmatprep.subr.mxu0 0.0
      %2736 = vmatpush2.msra.mxu0 0.0
      %2737 = vmatprep.subr.mxu0 0.0
      %2738 = vmatpush2.msra.mxu0 0.0
      %2739 = vmatprep.mubr.f32.mxu0 0.0
      %2740 = vmatmul.mubr.f32.gmra.mxu0 %v2603
      %v2741 = vpop.f32.mrf.mxu0
      %v2742 = vadd.f32 %v2672, %v2741
      %v2743 = vpop.f32.mrf.mxu0
      %2744 = vdwg.mxu0
      %v2745 = vmax.f32 %v2742, 0.0
      %v2748 = vunpack.c.l.s4 1983009808
      %v2749 = vunpack.c.0.s8 %v2748
      %v2750 = vlaneseq
      %v2751 = vshrl.u32 %v2750, 7
      %v2752 = vsub.s32 %v2749, %v2751
      %v2753 = vrot.slane %v2745, %v2752
      %v2754 = vcombine.high %v2753, %v2753
      %2757 = vst.msk [vmem:[#allocation2] sm:$0xf] %vm1602, 0.0
      %2758 = vst.msk [vmem:[#allocation2 + $0x18] sm:$0xf] %vm1602, 0.0
      %2759 = vst.msk [vmem:[#allocation2 + $0x30] sm:$0xf] %vm1602, 0.0
      %2760 = vst.msk [vmem:[#allocation2 + $0x48] sm:$0xf] %vm1602, 0.0
      %2761 = vst.msk [vmem:[%s527 + $0x1] sm:$0x3] %vm1201, %v2753
      %2762 = vst.msk [vmem:[%s527 + $0x19] sm:$0x3] %vm1201, %v2754
      %v2763 = vld [vmem:[#allocation2] sm:$0x3]
      %v2764 = vld [vmem:[#allocation2 + $0x18] sm:$0x3]
      %v2767 = vcombine.low %v2763, %v2764
      %v2769 = vunpack.c.l.s4 1983009808
      %v2770 = vunpack.c.0.s8 %v2769
      %v2771 = vlaneseq
      %v2772 = vshrl.u32 %v2771, 7
      %v2773 = vsub.s32 %v2770, %v2772
      %v2774 = vrot.slane %v2767, %v2773
      %2776 = vst.msk [vmem:[#allocation3] sm:$0xf] %vm1602, %v2774
      %v2777 = vld [vmem:[#allocation2 + $0x1] sm:$0x3]
      %v2778 = vld [vmem:[#allocation2 + $0x19] sm:$0x3]
      %v2781 = vcombine.low %v2777, %v2778
      %v2783 = vunpack.c.l.s4 1983009808
      %v2784 = vunpack.c.0.s8 %v2783
      %v2785 = vlaneseq
      %v2786 = vshrl.u32 %v2785, 7
      %v2787 = vsub.s32 %v2784, %v2786
      %v2788 = vrot.slane %v2781, %v2787
      %2789 = vrot.lane.b32.xlu0 %v2788, 32
      %v2790 = vpop.permute.xlu0 %2789
      %2792 = vst.msk [vmem:[#allocation3] sm:$0xf] %vm1714, %v2790
      %v2793 = vld [vmem:[#allocation2 + $0x2] sm:$0x3]
      %v2794 = vld [vmem:[#allocation2 + $0x1a] sm:$0x3]
      %v2797 = vcombine.low %v2793, %v2794
      %v2799 = vunpack.c.l.s4 1983009808
      %v2800 = vunpack.c.0.s8 %v2799
      %v2801 = vlaneseq
      %v2802 = vshrl.u32 %v2801, 7
      %v2803 = vsub.s32 %v2800, %v2802
      %v2804 = vrot.slane %v2797, %v2803
      %2805 = vrot.lane.b32.xlu0 %v2804, 64
      %v2806 = vpop.permute.xlu0 %2805
      %2808 = vst.msk [vmem:[#allocation3] sm:$0xf] %vm1731, %v2806
      %v2809 = vld [vmem:[%s527] sm:$0x3]
      %v2810 = vld [vmem:[%s527 + $0x18] sm:$0x3]
      %v2813 = vcombine.low %v2809, %v2810
      %v2815 = vunpack.c.l.s4 1983009808
      %v2816 = vunpack.c.0.s8 %v2815
      %v2817 = vlaneseq
      %v2818 = vshrl.u32 %v2817, 7
      %v2819 = vsub.s32 %v2816, %v2818
      %v2820 = vrot.slane %v2813, %v2819
      %2821 = vrot.lane.b32.xlu0 %v2820, 96
      %v2822 = vpop.permute.xlu0 %2821
      %2824 = vst.msk [vmem:[#allocation3] sm:$0xf] %vm1748, %v2822
      %v2825 = vld [vmem:[%s527 + $0x1] sm:$0x3]
      %v2826 = vld [vmem:[%s527 + $0x19] sm:$0x3]
      %v2829 = vcombine.low %v2825, %v2826
      %v2831 = vunpack.c.l.s4 1983009808
      %v2832 = vunpack.c.0.s8 %v2831
      %v2833 = vlaneseq
      %v2834 = vshrl.u32 %v2833, 7
      %v2835 = vsub.s32 %v2832, %v2834
      %v2836 = vrot.slane %v2829, %v2835
      %2838 = vst.msk [vmem:[#allocation3 + $0x8] sm:$0xf] %vm1602, %v2836
      %v2839 = vld [vmem:[%s527 + $0x2] sm:$0x3]
      %v2840 = vld [vmem:[%s527 + $0x1a] sm:$0x3]
      %v2843 = vcombine.low %v2839, %v2840
      %v2845 = vunpack.c.l.s4 1983009808
      %v2846 = vunpack.c.0.s8 %v2845
      %v2847 = vlaneseq
      %v2848 = vshrl.u32 %v2847, 7
      %v2849 = vsub.s32 %v2846, %v2848
      %v2850 = vrot.slane %v2843, %v2849
      %2851 = vrot.lane.b32.xlu0 %v2850, 32
      %v2852 = vpop.permute.xlu0 %2851
      %2854 = vst.msk [vmem:[#allocation3 + $0x8] sm:$0xf] %vm1714, %v2852
      %v2855 = vld [vmem:[%s867] sm:$0x3]
      %v2856 = vld [vmem:[%s867 + $0x18] sm:$0x3]
      %v2859 = vcombine.low %v2855, %v2856
      %v2861 = vunpack.c.l.s4 1983009808
      %v2862 = vunpack.c.0.s8 %v2861
      %v2863 = vlaneseq
      %v2864 = vshrl.u32 %v2863, 7
      %v2865 = vsub.s32 %v2862, %v2864
      %v2866 = vrot.slane %v2859, %v2865
      %2867 = vrot.lane.b32.xlu0 %v2866, 64
      %v2868 = vpop.permute.xlu0 %2867
      %2870 = vst.msk [vmem:[#allocation3 + $0x8] sm:$0xf] %vm1731, %v2868
      %v2871 = vld [vmem:[%s867 + $0x1] sm:$0x3]
      %v2872 = vld [vmem:[%s867 + $0x19] sm:$0x3]
      %v2875 = vcombine.low %v2871, %v2872
      %v2877 = vunpack.c.l.s4 1983009808
      %v2878 = vunpack.c.0.s8 %v2877
      %v2879 = vlaneseq
      %v2880 = vshrl.u32 %v2879, 7
      %v2881 = vsub.s32 %v2878, %v2880
      %v2882 = vrot.slane %v2875, %v2881
      %2883 = vrot.lane.b32.xlu0 %v2882, 96
      %v2884 = vpop.permute.xlu0 %2883
      %2886 = vst.msk [vmem:[#allocation3 + $0x8] sm:$0xf] %vm1748, %v2884
      %v2887 = vld [vmem:[%s867 + $0x2] sm:$0x3]
      %v2888 = vld [vmem:[%s867 + $0x1a] sm:$0x3]
      %v2891 = vcombine.low %v2887, %v2888
      %v2893 = vunpack.c.l.s4 1983009808
      %v2894 = vunpack.c.0.s8 %v2893
      %v2895 = vlaneseq
      %v2896 = vshrl.u32 %v2895, 7
      %v2897 = vsub.s32 %v2894, %v2896
      %v2898 = vrot.slane %v2891, %v2897
      %2900 = vst.msk [vmem:[#allocation3 + $0x10] sm:$0xf] %vm1602, %v2898
      %v2901 = vld [vmem:[#allocation3] sm:$0xf]
      %v2902 = vld [vmem:[#allocation3 + $0x8] sm:$0xf]
      %v2903 = vld [vmem:[#allocation3 + $0x10] sm:$0xf]
      %v2904 = vld [vmem:[%s11] sm:$0xff]
      %v2905 = vld [vmem:[%s11 + $0x8] sm:$0xff]
      %v2906 = vld [vmem:[%s11 + $0x10] sm:$0xff]
      %v2907 = vld [vmem:[%s11 + $0x18] sm:$0xff]
      %v2908 = vld [vmem:[%s11 + $0x20] sm:$0xff]
      %v2909 = vld [vmem:[%s11 + $0x28] sm:$0xff]
      %v2910 = vld [vmem:[%s11 + $0x30] sm:$0xff]
      %v2911 = vld [vmem:[%s11 + $0x38] sm:$0xff]
      %v2912 = vld [vmem:[%s11 + $0x40] sm:$0xff]
      %v2913 = vld [vmem:[%s11 + $0x48] sm:$0xff]
      %v2914 = vld [vmem:[%s11 + $0x50] sm:$0xff]
      %v2915 = vld [vmem:[%s11 + $0x58] sm:$0xff]
      %v2916 = vld [vmem:[%s11 + $0x60] sm:$0xff]
      %v2917 = vld [vmem:[%s11 + $0x68] sm:$0xff]
      %v2918 = vld [vmem:[%s11 + $0x70] sm:$0xff]
      %v2919 = vld [vmem:[%s11 + $0x78] sm:$0xff]
      %v2920 = vld [vmem:[%s11 + $0x80] sm:$0xff]
      %v2921 = vld [vmem:[%s11 + $0x88] sm:$0xff]
      %v2922 = vld [vmem:[%s11 + $0x90] sm:$0xff]
      %v2923 = vld [vmem:[%s11 + $0x98] sm:$0xff]
      %v2924 = vld [vmem:[%s11 + $0xa0] sm:$0xff]
      %v2925 = vld [vmem:[%s11 + $0xa8] sm:$0xff]
      %v2926 = vld [vmem:[%s11 + $0xb0] sm:$0xff]
      %v2927 = vld [vmem:[%s11 + $0xb8] sm:$0xff]
      %v2928 = vld [vmem:[%s11 + $0xc0] sm:$0xff]
      %v2929 = vld [vmem:[%s11 + $0xc8] sm:$0xff]
      %v2930 = vld [vmem:[%s11 + $0xd0] sm:$0xff]
      %v2931 = vld [vmem:[%s11 + $0xd8] sm:$0xff]
      %v2932 = vld [vmem:[%s11 + $0xe0] sm:$0xff]
      %v2933 = vld [vmem:[%s11 + $0xe8] sm:$0xff]
      %v2934 = vld [vmem:[%s11 + $0xf0] sm:$0xff]
      %v2935 = vld [vmem:[%s11 + $0xf8] sm:$0xff]
      %v2936 = vld [vmem:[%s11 + $0x100] sm:$0xff]
      %v2937 = vld [vmem:[%s11 + $0x108] sm:$0xff]
      %v2938 = vld [vmem:[%s11 + $0x110] sm:$0xff]
      %v2939 = vld [vmem:[%s11 + $0x118] sm:$0xff]
      %v2940 = vld [vmem:[%s12] sm:$0x1]
      %v2942 = vlaneseq
      %v2943 = vshrl.u32 %v2942, 7
      %v2944 = vsub.s32 0, %v2943
      %v2945 = vrot.slane %v2940, %v2944
      %v2948 = vsel %vm1199, %v2903, 0
      %2950 = vmatprep.subr.mxu0 0.0
      %2951 = vmatpush1.msra.mxu0 %v2919
      %2952 = vmatprep.subr.mxu0 0.0
      %2953 = vmatpush1.msra.mxu0 %v2918
      %2954 = vmatprep.subr.mxu0 0.0
      %2955 = vmatpush1.msra.mxu0 %v2917
      %2956 = vmatprep.subr.mxu0 0.0
      %2957 = vmatpush1.msra.mxu0 %v2916
      %2958 = vmatprep.subr.mxu0 0.0
      %2959 = vmatpush1.msra.mxu0 %v2915
      %2960 = vmatprep.subr.mxu0 0.0
      %2961 = vmatpush1.msra.mxu0 %v2914
      %2962 = vmatprep.subr.mxu0 0.0
      %2963 = vmatpush1.msra.mxu0 %v2913
      %2964 = vmatprep.subr.mxu0 0.0
      %2965 = vmatpush1.msra.mxu0 %v2912
      %2966 = vmatprep.subr.mxu0 0.0
      %2967 = vmatpush1.msra.mxu0 %v2911
      %2968 = vmatprep.subr.mxu0 0.0
      %2969 = vmatpush1.msra.mxu0 %v2910
      %2970 = vmatprep.subr.mxu0 0.0
      %2971 = vmatpush1.msra.mxu0 %v2909
      %2972 = vmatprep.subr.mxu0 0.0
      %2973 = vmatpush1.msra.mxu0 %v2908
      %2974 = vmatprep.subr.mxu0 0.0
      %2975 = vmatpush1.msra.mxu0 %v2907
      %2976 = vmatprep.subr.mxu0 0.0
      %2977 = vmatpush1.msra.mxu0 %v2906
      %2978 = vmatprep.subr.mxu0 0.0
      %2979 = vmatpush1.msra.mxu0 %v2905
      %2980 = vmatprep.subr.mxu0 0.0
      %2981 = vmatpush1.msra.mxu0 %v2904
      %2982 = vmatprep.subr.mxu0 0.0
      %2983 = vmatpush2.msra.mxu0 %v2935
      %2984 = vmatprep.subr.mxu0 0.0
      %2985 = vmatpush2.msra.mxu0 %v2934
      %2986 = vmatprep.subr.mxu0 0.0
      %2987 = vmatpush2.msra.mxu0 %v2933
      %2988 = vmatprep.subr.mxu0 0.0
      %2989 = vmatpush2.msra.mxu0 %v2932
      %2990 = vmatprep.subr.mxu0 0.0
      %2991 = vmatpush2.msra.mxu0 %v2931
      %2992 = vmatprep.subr.mxu0 0.0
      %2993 = vmatpush2.msra.mxu0 %v2930
      %2994 = vmatprep.subr.mxu0 0.0
      %2995 = vmatpush2.msra.mxu0 %v2929
      %2996 = vmatprep.subr.mxu0 0.0
      %2997 = vmatpush2.msra.mxu0 %v2928
      %2998 = vmatprep.subr.mxu0 0.0
      %2999 = vmatpush2.msra.mxu0 %v2927
      %3000 = vmatprep.subr.mxu0 0.0
      %3001 = vmatpush2.msra.mxu0 %v2926
      %3002 = vmatprep.subr.mxu0 0.0
      %3003 = vmatpush2.msra.mxu0 %v2925
      %3004 = vmatprep.subr.mxu0 0.0
      %3005 = vmatpush2.msra.mxu0 %v2924
      %3006 = vmatprep.subr.mxu0 0.0
      %3007 = vmatpush2.msra.mxu0 %v2923
      %3008 = vmatprep.subr.mxu0 0.0
      %3009 = vmatpush2.msra.mxu0 %v2922
      %3010 = vmatprep.subr.mxu0 0.0
      %3011 = vmatpush2.msra.mxu0 %v2921
      %3012 = vmatprep.subr.mxu0 0.0
      %3013 = vmatpush2.msra.mxu0 %v2920
      %3014 = vmatprep.mubr.f32.mxu0 %v2902
      %3015 = vmatmul.mubr.f32.gmra.mxu0 %v2901
      %v3016 = vpop.f32.mrf.mxu0
      %v3017 = vadd.f32 %v2945, %v3016
      %v3018 = vpop.f32.mrf.mxu0
      %3019 = vdwg.mxu0
      %3020 = vmatprep.subr.mxu0 0.0
      %3021 = vmatpush1.msra.mxu0 0.0
      %3022 = vmatprep.subr.mxu0 0.0
      %3023 = vmatpush1.msra.mxu0 0.0
      %3024 = vmatprep.subr.mxu0 0.0
      %3025 = vmatpush1.msra.mxu0 0.0
      %3026 = vmatprep.subr.mxu0 0.0
      %3027 = vmatpush1.msra.mxu0 0.0
      %3028 = vmatprep.subr.mxu0 0.0
      %3029 = vmatpush1.msra.mxu0 0.0
      %3030 = vmatprep.subr.mxu0 0.0
      %3031 = vmatpush1.msra.mxu0 0.0
      %3032 = vmatprep.subr.mxu0 0.0
      %3033 = vmatpush1.msra.mxu0 0.0
      %3034 = vmatprep.subr.mxu0 0.0
      %3035 = vmatpush1.msra.mxu0 0.0
      %3036 = vmatprep.subr.mxu0 0.0
      %3037 = vmatpush1.msra.mxu0 0.0
      %3038 = vmatprep.subr.mxu0 0.0
      %3039 = vmatpush1.msra.mxu0 0.0
      %3040 = vmatprep.subr.mxu0 0.0
      %3041 = vmatpush1.msra.mxu0 0.0
      %3042 = vmatprep.subr.mxu0 0.0
      %3043 = vmatpush1.msra.mxu0 0.0
      %3044 = vmatprep.subr.mxu0 0.0
      %3045 = vmatpush1.msra.mxu0 %v2939
      %3046 = vmatprep.subr.mxu0 0.0
      %3047 = vmatpush1.msra.mxu0 %v2938
      %3048 = vmatprep.subr.mxu0 0.0
      %3049 = vmatpush1.msra.mxu0 %v2937
      %3050 = vmatprep.subr.mxu0 0.0
      %3051 = vmatpush1.msra.mxu0 %v2936
      %3052 = vmatprep.subr.mxu0 0.0
      %3053 = vmatpush2.msra.mxu0 0.0
      %3054 = vmatprep.subr.mxu0 0.0
      %3055 = vmatpush2.msra.mxu0 0.0
      %3056 = vmatprep.subr.mxu0 0.0
      %3057 = vmatpush2.msra.mxu0 0.0
      %3058 = vmatprep.subr.mxu0 0.0
      %3059 = vmatpush2.msra.mxu0 0.0
      %3060 = vmatprep.subr.mxu0 0.0
      %3061 = vmatpush2.msra.mxu0 0.0
      %3062 = vmatprep.subr.mxu0 0.0
      %3063 = vmatpush2.msra.mxu0 0.0
      %3064 = vmatprep.subr.mxu0 0.0
      %3065 = vmatpush2.msra.mxu0 0.0
      %3066 = vmatprep.subr.mxu0 0.0
      %3067 = vmatpush2.msra.mxu0 0.0
      %3068 = vmatprep.subr.mxu0 0.0
      %3069 = vmatpush2.msra.mxu0 0.0
      %3070 = vmatprep.subr.mxu0 0.0
      %3071 = vmatpush2.msra.mxu0 0.0
      %3072 = vmatprep.subr.mxu0 0.0
      %3073 = vmatpush2.msra.mxu0 0.0
      %3074 = vmatprep.subr.mxu0 0.0
      %3075 = vmatpush2.msra.mxu0 0.0
      %3076 = vmatprep.subr.mxu0 0.0
      %3077 = vmatpush2.msra.mxu0 0.0
      %3078 = vmatprep.subr.mxu0 0.0
      %3079 = vmatpush2.msra.mxu0 0.0
      %3080 = vmatprep.subr.mxu0 0.0
      %3081 = vmatpush2.msra.mxu0 0.0
      %3082 = vmatprep.subr.mxu0 0.0
      %3083 = vmatpush2.msra.mxu0 0.0
      %3084 = vmatprep.mubr.f32.mxu0 0.0
      %3085 = vmatmul.mubr.f32.gmra.mxu0 %v2948
      %v3086 = vpop.f32.mrf.mxu0
      %v3087 = vadd.f32 %v3017, %v3086
      %v3088 = vpop.f32.mrf.mxu0
      %3089 = vdwg.mxu0
      %vm3090 = vcmask 814080
      %3091 = vst.msk [vmem:[%s438] sm:$0xf] %vm3090, %v3087
      %p3092 = scmp.lt.s32.totalorder %s24, 1
      %s3093 = scalar_select %p3092, %s24, 1
      %s3094 = smul.addr %s3093, 4
      %s3095 = scalar_lea.vmem %s13, %s3094
      // Predicated region
      $region73: #{simssd_forward.1} parent=71 // pred_check
        %p3096 = pneg %p320
      $region74: #{simssd_forward.1} parent=71 // pred_check_branch
        %3098 = sbr.rel (%p3096) target = $region76
      $region75: #{simssd_forward.1} parent=71 // pred_region
        _
      $region76: #{simssd_forward.1} parent=71 // pred_fallthru
        _
    $region72: #{simssd_forward.1} parent=5 // pred_fallthru
      _
    %p3099 = scmp.le.s32.totalorder 2, %s19
    // Predicated region
    $region77: #{simssd_forward.1} parent=5 // pred_check
      %p3100 = pneg %p3099
    $region78: #{simssd_forward.1} parent=5 // pred_check_branch
      %3102 = sbr.rel (%p3100) target = $region80
    $region79: #{simssd_forward.1} parent=5 // pred_region
      %s3103 = ssub.s32 %s19, 2
      // Predicated region
      $region81: #{simssd_forward.1} parent=79 // pred_check
        %p3104 = pneg %p326
      $region82: #{simssd_forward.1} parent=79 // pred_check_branch
        %3106 = sbr.rel (%p3104) target = $region84
      $region83: #{simssd_forward.1} parent=79 // pred_region
        %p3107 = scmp.lt.s32.totalorder %s25, 1
        %s3108 = scalar_select %p3107, %s25, 1
        %s3109 = smul.addr %s3108, 4
        %s3110 = scalar_lea.vmem %s13, %s3109
      $region84: #{simssd_forward.1} parent=79 // pred_fallthru
        _
    $region80: #{simssd_forward.1} parent=5 // pred_fallthru
      _
  $region6: #{simssd_forward.1} parent=0 // loop_footer
    %s23 = sadd.s32 1, %s19
  $region7: #{simssd_forward.1} parent=0 // loop_footer_branch
    %18 = sbr.rel target = $region3
  $region8: #{simssd_forward.1} parent=0 // loop_exit
    _

</llo_original>
